<compile_context>
chip_gen: v5e
topology: v5e:2x2
jax: 0.10.0
libtpu: 0.0.40
codegen_flags: <defaults>
</compile_context>

<pallas_src>
import math

import jax
import jax.numpy as jnp
from jax import lax
from jax.experimental import pallas as pl
from jax.experimental.pallas import tpu as pltpu


def _round_up(x, m):
    return ((x + m - 1) // m) * m


def _choose_row_tile(n_rows, k_h, w_e, w_o, w_out,
                     dma_budget_bytes=5 * 1024 * 1024,
                     acc_budget_elems=16384):
    """Pick (rows-per-block R, padded row count).

    R is a multiple of 8 (sublane constraint), sized so that
      * one (xe + xo) input block is <= ~5 MiB (=> <= ~20 MiB double-buffered,
        inside the 32 MiB scoped-VMEM limit on v5e/v6e/v7x), and
      * the two (R, w_out) f32 accumulators stay within ~32 vregs.
    When there are >= 16 row slabs we force >= 2 grid steps so v7x's second
    TensorCore is not idle under dimension_semantics=("parallel",).
    """
    lanes = lambda w: _round_up(max(w, 1), 128)
    row_bytes = 4 * k_h * (lanes(w_e) + lanes(w_o))
    r_dma = max(8, (dma_budget_bytes // row_bytes) // 8 * 8)
    r_acc = max(8, (acc_budget_elems // lanes(w_out)) // 8 * 8)
    r = min(r_dma, r_acc)
    nr8 = _round_up(n_rows, 8)
    r = min(r, nr8)
    if r >= nr8 and nr8 >= 16:           # keep >= 2 grid steps (v7x megacore)
        r = max(8, _round_up(nr8 // 2, 8))
    nr_pad = _round_up(n_rows, r)
    return r, nr_pad


# ----------------------------------------------------------------------------
# Pallas kernel: fused row-slab conv (stencil FMAs) + bias + L2-norm + (x+1)/2
# ----------------------------------------------------------------------------
def _uc_conv_norm_pallas(w_flat, bias, xe, xo, *, k_h, k_w, r_tile, w_out):
    k_h_arr, nr_pad, w_e = xe.shape
    assert k_h_arr == k_h
    w_o = xo.shape[2]
    n_even = (k_w + 1) // 2
    n_odd = k_w // 2

    def kernel(w_ref, b_ref, xe_ref, xo_ref, o_ref):
        # w_ref : SMEM (2*k_h*k_w,) conv weights, (c, kh, kw) row-major
        # b_ref : SMEM (2,)          conv bias
        # xe_ref: VMEM (k_h, R, w_e) even input columns of the row slabs
        # xo_ref: VMEM (k_h, R, w_o) odd  input columns of the row slabs
        # o_ref : VMEM (2, R, Wo)    normalized output tile
        acc0 = jnp.zeros((r_tile, w_out), jnp.float32)
        acc1 = jnp.zeros((r_tile, w_out), jnp.float32)
        # 2 x (k_h*k_w) stencil taps as scalar-broadcast VPU FMAs.  The even/
        # odd pre-split removed the W-stride of 2, so every slice below is a
        # contiguous lane window (no strided lane gathers in-kernel).
        for kh in range(k_h):
            for m in range(n_even):                        # taps kw = 2m
                sl = xe_ref[kh, :, pl.ds(m, w_out)]        # (R, Wo)
                acc0 = acc0 + w_ref[(0 * k_h + kh) * k_w + 2 * m] * sl
                acc1 = acc1 + w_ref[(1 * k_h + kh) * k_w + 2 * m] * sl
            for m in range(n_odd):                         # taps kw = 2m + 1
                sl = xo_ref[kh, :, pl.ds(m, w_out)]        # (R, Wo)
                acc0 = acc0 + w_ref[(0 * k_h + kh) * k_w + 2 * m + 1] * sl
                acc1 = acc1 + w_ref[(1 * k_h + kh) * k_w + 2 * m + 1] * sl
        y0 = acc0 + b_ref[0]
        y1 = acc1 + b_ref[1]
        # Exact epilogue (no approx reciprocal): kernel is VPU-bound, so the
        # sqrt/divide are free.  eps is added to the norm (after the sqrt) to
        # match torch.norm(...) + 1e-12 exactly.
        nrm = jnp.sqrt(y0 * y0 + y1 * y1) + 1e-12
        o_ref[0] = (y0 / nrm + 1.0) * 0.5
        o_ref[1] = (y1 / nrm + 1.0) * 0.5

    grid = (nr_pad // r_tile,)
    return pl.pallas_call(
        kernel,
        out_shape=jax.ShapeDtypeStruct((2, nr_pad, w_out), jnp.float32),
        grid=grid,
        in_specs=[
            pl.BlockSpec(memory_space=pltpu.MemorySpace.SMEM),       # weights
            pl.BlockSpec(memory_space=pltpu.MemorySpace.SMEM),       # bias
            pl.BlockSpec((k_h, r_tile, w_e), lambda i: (0, i, 0)),   # even cols
            pl.BlockSpec((k_h, r_tile, w_o), lambda i: (0, i, 0)),   # odd cols
        ],
        out_specs=pl.BlockSpec((2, r_tile, w_out), lambda i: (0, i, 0)),
        compiler_params=pltpu.CompilerParams(
            dimension_semantics=("parallel",),   # shard row tiles across TCs (v7x)
            vmem_limit_bytes=32 * 1024 * 1024,   # safe on v5e/v6e/v7x
        ),
    )(w_flat, bias, xe, xo)


# ----------------------------------------------------------------------------
# Module wrapper (cheap, input-sized glue in plain JAX)
# ----------------------------------------------------------------------------
class UnitCirclePallas:
    def __init__(self, pad_h, pad_w, kernel_h, kernel_w, key):
        self.pad_h, self.pad_w = pad_h, pad_w          # unused in forward (as in PyTorch)
        self.kernel_h, self.kernel_w = kernel_h, kernel_w
        # Conv2d(1, 2, kernel_size=(kernel_w, kernel_h), stride=(11, 2), bias=True)
        # -> weight OIHW shape (2, 1, kernel_w, kernel_h)
        self.kH = kernel_w   # kernel extent along H
        self.kW = kernel_h   # kernel extent along W
        self.sH, self.sW = 11, 2
        n = kernel_w * kernel_h * 2                    # kernel_size[0]*kernel_size[1]*out_channels
        std = math.sqrt(2.0 / n)
        kw_, kb_ = jax.random.split(key)
        self.weight = std * jax.random.normal(kw_, (2, 1, self.kH, self.kW), jnp.float32)
        fan_in = 1 * self.kH * self.kW
        bound = 1.0 / math.sqrt(fan_in)
        self.bias = jax.random.uniform(kb_, (2,), jnp.float32, -bound, bound)

    def _circular_cat(self, x):
        # TODO(synk): fold the circular wrap into the kernel's row-slab DMAs
        # (two small extra column copies) instead of materializing the concat.
        size = (self.kW - 1) // 2
        if size == 0:
            return x
        return jnp.concatenate([x[..., -size:], x, x[..., :size]], axis=-1)

    def forward(self, x):
        # x: (N, 1, H, W) float32 (NCHW, like PyTorch)
        kH, kW, sH, sW = self.kH, self.kW, self.sH, self.sW
        assert sW == 2, "module fixes stride=(11, 2)"
        xp = self._circular_cat(x)                     # (N, 1, H, Wp)
        N, _, H, Wp = xp.shape
        Ho = (H - kH) // sH + 1
        Wo = (Wp - kW) // sW + 1
        NR = N * Ho

        # --- JAX-side layout prep: input-sized traffic only (no im2col) ----
        # Output row ho reads input rows [ho*sH, ho*sH + kH).  With the
        # module's kH == sH == 11 these slabs are disjoint; the gather also
        # handles the general case.
        row_idx = (jnp.arange(Ho)[:, None] * sH + jnp.arange(kH)[None, :]).reshape(-1)
        xs = jnp.take(xp[:, 0, :, :], row_idx, axis=1)                  # (N, Ho*kH, Wp)
        xs = xs.reshape(N, Ho, kH, Wp).transpose(2, 0, 1, 3).reshape(kH, NR, Wp)
        # Even/odd column split turns the stride-2 W conv into two stride-1
        # correlations -> contiguous lane slices inside the kernel.
        xe = xs[:, :, 0::2]                                             # (kH, NR, ceil(Wp/2))
        xo = xs[:, :, 1::2]                                             # (kH, NR, floor(Wp/2))

        r_tile, nr_pad = _choose_row_tile(NR, kH, xe.shape[2], xo.shape[2], Wo)
        if nr_pad != NR:
            # Zero rows give y = bias -> finite norm (exact reciprocal, so no
            # inf/NaN even for tiny norms); they are sliced off below.
            pad = nr_pad - NR
            xe = jnp.pad(xe, ((0, 0), (0, pad), (0, 0)))
            xo = jnp.pad(xo, ((0, 0), (0, pad), (0, 0)))

        w_flat = self.weight.reshape(-1)               # (2*kH*kW,), (c, kh, kw) row-major
        out = _uc_conv_norm_pallas(w_flat, self.bias, xe, xo,
                                   k_h=kH, k_w=kW, r_tile=r_tile, w_out=Wo)
        out = out[:, :NR, :].reshape(2, N, Ho, Wo).transpose(1, 0, 2, 3)   # NCHW
        return out


# ----------------------------------------------------------------------------
# Pure-JAX reference (for correctness check only)
# ----------------------------------------------------------------------------
def _reference(mod, x):
    xp = mod._circular_cat(x)
    y = lax.conv_general_dilated(
        xp, mod.weight, window_strides=(mod.sH, mod.sW), padding="VALID",
        dimension_numbers=("NCHW", "OIHW", "NCHW"),
        precision=lax.Precision.HIGHEST)
    y = y + mod.bias.reshape(1, 2, 1, 1)
    nrm = jnp.sqrt(jnp.sum(y * y, axis=1, keepdims=True)) + 1e-12
    return (y / nrm + 1.0) / 2.0


if __name__ == "__main__":
    key = jax.random.PRNGKey(0)
    k_param, k_x = jax.random.split(key)

    # Module config: kernel_h=15 (width kernel / circular pad), kernel_w=11 (height kernel)
    mod = UnitCirclePallas(pad_h=0, pad_w=0, kernel_h=15, kernel_w=11, key=k_param)

    # Small input consistent with the forward: N=2, C=1, H=22, W=16 -> output (2, 2, 2, 8)
    x = jax.random.normal(k_x, (2, 1, 22, 16), jnp.float32)

    out = jax.block_until_ready(mod.forward(x))
    ref = jax.block_until_ready(_reference(mod, x))

    assert out.shape == ref.shape == (2, 2, 2, 8), (out.shape, ref.shape)
    # Exact epilogue now (no approx reciprocal); the only difference vs. the
    # HIGHEST-precision reference conv is f32 summation order over 165 taps.
    max_err = float(jnp.max(jnp.abs(out - ref)))
    assert jnp.allclose(out, ref, atol=2e-4, rtol=2e-4), max_err

    print("KERNEL_OK")
</pallas_src>

<mosaic_0001>
module attributes {stable_mosaic.version = 11 : i64} {
  func.func @kernel(%arg0: i32, %arg1: memref<330xf32, #tpu.memory_space<smem>>, %arg2: memref<2xf32, #tpu.memory_space<smem>>, %arg3: memref<11x8x15xf32, #tpu.memory_space<vmem>>, %arg4: memref<11x8x15xf32, #tpu.memory_space<vmem>>, %arg5: memref<2x8x8xf32, #tpu.memory_space<vmem>>) attributes {dimension_semantics = [#tpu.dimension_semantics<parallel>], iteration_bounds = array<i64: 1>, scalar_prefetch = 0 : i64, scratch_operands = 0 : i64, tpu.core_type = #tpu.core_type<tc>, window_params = [{transform_indices = @transform_0, window_bounds = array<i64: 330>}, {transform_indices = @transform_1, window_bounds = array<i64: 2>}, {transform_indices = @transform_2, window_bounds = array<i64: 11, 8, 15>}, {transform_indices = @transform_3, window_bounds = array<i64: 11, 8, 15>}, {transform_indices = @transform_4, window_bounds = array<i64: 2, 8, 8>}]} {
    %cst = arith.constant 0.000000e+00 : f32
    %0 = vector.broadcast %cst : f32 to vector<8x8xf32>
    %cst_0 = arith.constant 0.000000e+00 : f32
    %1 = vector.broadcast %cst_0 : f32 to vector<8x8xf32>
    %c0 = arith.constant 0 : index
    %c0_1 = arith.constant 0 : index
    %c0_2 = arith.constant 0 : index
    %2 = vector.load %arg3[%c0, %c0_1, %c0_2] : memref<11x8x15xf32, #tpu.memory_space<vmem>>, vector<1x8x8xf32>
    %3 = vector.shape_cast %2 : vector<1x8x8xf32> to vector<8x8xf32>
    %c0_3 = arith.constant 0 : index
    %4 = memref.load %arg1[%c0_3] : memref<330xf32, #tpu.memory_space<smem>>
    %5 = vector.broadcast %4 : f32 to vector<8x8xf32>
    %6 = arith.mulf %5, %3 : vector<8x8xf32>
    %7 = arith.addf %0, %6 : vector<8x8xf32>
    %c165 = arith.constant 165 : index
    %8 = memref.load %arg1[%c165] : memref<330xf32, #tpu.memory_space<smem>>
    %9 = vector.broadcast %8 : f32 to vector<8x8xf32>
    %10 = arith.mulf %9, %3 : vector<8x8xf32>
    %11 = arith.addf %1, %10 : vector<8x8xf32>
    %c0_4 = arith.constant 0 : index
    %c0_5 = arith.constant 0 : index
    %c1 = arith.constant 1 : index
    %12 = vector.load %arg3[%c0_4, %c0_5, %c1] : memref<11x8x15xf32, #tpu.memory_space<vmem>>, vector<1x8x8xf32>
    %13 = vector.shape_cast %12 : vector<1x8x8xf32> to vector<8x8xf32>
    %c2 = arith.constant 2 : index
    %14 = memref.load %arg1[%c2] : memref<330xf32, #tpu.memory_space<smem>>
    %15 = vector.broadcast %14 : f32 to vector<8x8xf32>
    %16 = arith.mulf %15, %13 : vector<8x8xf32>
    %17 = arith.addf %7, %16 : vector<8x8xf32>
    %c167 = arith.constant 167 : index
    %18 = memref.load %arg1[%c167] : memref<330xf32, #tpu.memory_space<smem>>
    %19 = vector.broadcast %18 : f32 to vector<8x8xf32>
    %20 = arith.mulf %19, %13 : vector<8x8xf32>
    %21 = arith.addf %11, %20 : vector<8x8xf32>
    %c0_6 = arith.constant 0 : index
    %c0_7 = arith.constant 0 : index
    %c2_8 = arith.constant 2 : index
    %22 = vector.load %arg3[%c0_6, %c0_7, %c2_8] : memref<11x8x15xf32, #tpu.memory_space<vmem>>, vector<1x8x8xf32>
    %23 = vector.shape_cast %22 : vector<1x8x8xf32> to vector<8x8xf32>
    %c4 = arith.constant 4 : index
    %24 = memref.load %arg1[%c4] : memref<330xf32, #tpu.memory_space<smem>>
    %25 = vector.broadcast %24 : f32 to vector<8x8xf32>
    %26 = arith.mulf %25, %23 : vector<8x8xf32>
    %27 = arith.addf %17, %26 : vector<8x8xf32>
    %c169 = arith.constant 169 : index
    %28 = memref.load %arg1[%c169] : memref<330xf32, #tpu.memory_space<smem>>
    %29 = vector.broadcast %28 : f32 to vector<8x8xf32>
    %30 = arith.mulf %29, %23 : vector<8x8xf32>
    %31 = arith.addf %21, %30 : vector<8x8xf32>
    %c0_9 = arith.constant 0 : index
    %c0_10 = arith.constant 0 : index
    %c3 = arith.constant 3 : index
    %32 = vector.load %arg3[%c0_9, %c0_10, %c3] : memref<11x8x15xf32, #tpu.memory_space<vmem>>, vector<1x8x8xf32>
    %33 = vector.shape_cast %32 : vector<1x8x8xf32> to vector<8x8xf32>
    %c6 = arith.constant 6 : index
    %34 = memref.load %arg1[%c6] : memref<330xf32, #tpu.memory_space<smem>>
    %35 = vector.broadcast %34 : f32 to vector<8x8xf32>
    %36 = arith.mulf %35, %33 : vector<8x8xf32>
    %37 = arith.addf %27, %36 : vector<8x8xf32>
    %c171 = arith.constant 171 : index
    %38 = memref.load %arg1[%c171] : memref<330xf32, #tpu.memory_space<smem>>
    %39 = vector.broadcast %38 : f32 to vector<8x8xf32>
    %40 = arith.mulf %39, %33 : vector<8x8xf32>
    %41 = arith.addf %31, %40 : vector<8x8xf32>
    %c0_11 = arith.constant 0 : index
    %c0_12 = arith.constant 0 : index
    %c4_13 = arith.constant 4 : index
    %42 = vector.load %arg3[%c0_11, %c0_12, %c4_13] : memref<11x8x15xf32, #tpu.memory_space<vmem>>, vector<1x8x8xf32>
    %43 = vector.shape_cast %42 : vector<1x8x8xf32> to vector<8x8xf32>
    %c8 = arith.constant 8 : index
    %44 = memref.load %arg1[%c8] : memref<330xf32, #tpu.memory_space<smem>>
    %45 = vector.broadcast %44 : f32 to vector<8x8xf32>
    %46 = arith.mulf %45, %43 : vector<8x8xf32>
    %47 = arith.addf %37, %46 : vector<8x8xf32>
    %c173 = arith.constant 173 : index
    %48 = memref.load %arg1[%c173] : memref<330xf32, #tpu.memory_space<smem>>
    %49 = vector.broadcast %48 : f32 to vector<8x8xf32>
    %50 = arith.mulf %49, %43 : vector<8x8xf32>
    %51 = arith.addf %41, %50 : vector<8x8xf32>
    %c0_14 = arith.constant 0 : index
    %c0_15 = arith.constant 0 : index
    %c5 = arith.constant 5 : index
    %52 = vector.load %arg3[%c0_14, %c0_15, %c5] : memref<11x8x15xf32, #tpu.memory_space<vmem>>, vector<1x8x8xf32>
    %53 = vector.shape_cast %52 : vector<1x8x8xf32> to vector<8x8xf32>
    %c10 = arith.constant 10 : index
    %54 = memref.load %arg1[%c10] : memref<330xf32, #tpu.memory_space<smem>>
    %55 = vector.broadcast %54 : f32 to vector<8x8xf32>
    %56 = arith.mulf %55, %53 : vector<8x8xf32>
    %57 = arith.addf %47, %56 : vector<8x8xf32>
    %c175 = arith.constant 175 : index
    %58 = memref.load %arg1[%c175] : memref<330xf32, #tpu.memory_space<smem>>
    %59 = vector.broadcast %58 : f32 to vector<8x8xf32>
    %60 = arith.mulf %59, %53 : vector<8x8xf32>
    %61 = arith.addf %51, %60 : vector<8x8xf32>
    %c0_16 = arith.constant 0 : index
    %c0_17 = arith.constant 0 : index
    %c6_18 = arith.constant 6 : index
    %62 = vector.load %arg3[%c0_16, %c0_17, %c6_18] : memref<11x8x15xf32, #tpu.memory_space<vmem>>, vector<1x8x8xf32>
    %63 = vector.shape_cast %62 : vector<1x8x8xf32> to vector<8x8xf32>
    %c12 = arith.constant 12 : index
    %64 = memref.load %arg1[%c12] : memref<330xf32, #tpu.memory_space<smem>>
    %65 = vector.broadcast %64 : f32 to vector<8x8xf32>
    %66 = arith.mulf %65, %63 : vector<8x8xf32>
    %67 = arith.addf %57, %66 : vector<8x8xf32>
    %c177 = arith.constant 177 : index
    %68 = memref.load %arg1[%c177] : memref<330xf32, #tpu.memory_space<smem>>
    %69 = vector.broadcast %68 : f32 to vector<8x8xf32>
    %70 = arith.mulf %69, %63 : vector<8x8xf32>
    %71 = arith.addf %61, %70 : vector<8x8xf32>
    %c0_19 = arith.constant 0 : index
    %c0_20 = arith.constant 0 : index
    %c7 = arith.constant 7 : index
    %72 = vector.load %arg3[%c0_19, %c0_20, %c7] : memref<11x8x15xf32, #tpu.memory_space<vmem>>, vector<1x8x8xf32>
    %73 = vector.shape_cast %72 : vector<1x8x8xf32> to vector<8x8xf32>
    %c14 = arith.constant 14 : index
    %74 = memref.load %arg1[%c14] : memref<330xf32, #tpu.memory_space<smem>>
    %75 = vector.broadcast %74 : f32 to vector<8x8xf32>
    %76 = arith.mulf %75, %73 : vector<8x8xf32>
    %77 = arith.addf %67, %76 : vector<8x8xf32>
    %c179 = arith.constant 179 : index
    %78 = memref.load %arg1[%c179] : memref<330xf32, #tpu.memory_space<smem>>
    %79 = vector.broadcast %78 : f32 to vector<8x8xf32>
    %80 = arith.mulf %79, %73 : vector<8x8xf32>
    %81 = arith.addf %71, %80 : vector<8x8xf32>
    %c0_21 = arith.constant 0 : index
    %c0_22 = arith.constant 0 : index
    %c0_23 = arith.constant 0 : index
    %82 = vector.load %arg4[%c0_21, %c0_22, %c0_23] : memref<11x8x15xf32, #tpu.memory_space<vmem>>, vector<1x8x8xf32>
    %83 = vector.shape_cast %82 : vector<1x8x8xf32> to vector<8x8xf32>
    %c1_24 = arith.constant 1 : index
    %84 = memref.load %arg1[%c1_24] : memref<330xf32, #tpu.memory_space<smem>>
    %85 = vector.broadcast %84 : f32 to vector<8x8xf32>
    %86 = arith.mulf %85, %83 : vector<8x8xf32>
    %87 = arith.addf %77, %86 : vector<8x8xf32>
    %c166 = arith.constant 166 : index
    %88 = memref.load %arg1[%c166] : memref<330xf32, #tpu.memory_space<smem>>
    %89 = vector.broadcast %88 : f32 to vector<8x8xf32>
    %90 = arith.mulf %89, %83 : vector<8x8xf32>
    %91 = arith.addf %81, %90 : vector<8x8xf32>
    %c0_25 = arith.constant 0 : index
    %c0_26 = arith.constant 0 : index
    %c1_27 = arith.constant 1 : index
    %92 = vector.load %arg4[%c0_25, %c0_26, %c1_27] : memref<11x8x15xf32, #tpu.memory_space<vmem>>, vector<1x8x8xf32>
    %93 = vector.shape_cast %92 : vector<1x8x8xf32> to vector<8x8xf32>
    %c3_28 = arith.constant 3 : index
    %94 = memref.load %arg1[%c3_28] : memref<330xf32, #tpu.memory_space<smem>>
    %95 = vector.broadcast %94 : f32 to vector<8x8xf32>
    %96 = arith.mulf %95, %93 : vector<8x8xf32>
    %97 = arith.addf %87, %96 : vector<8x8xf32>
    %c168 = arith.constant 168 : index
    %98 = memref.load %arg1[%c168] : memref<330xf32, #tpu.memory_space<smem>>
    %99 = vector.broadcast %98 : f32 to vector<8x8xf32>
    %100 = arith.mulf %99, %93 : vector<8x8xf32>
    %101 = arith.addf %91, %100 : vector<8x8xf32>
    %c0_29 = arith.constant 0 : index
    %c0_30 = arith.constant 0 : index
    %c2_31 = arith.constant 2 : index
    %102 = vector.load %arg4[%c0_29, %c0_30, %c2_31] : memref<11x8x15xf32, #tpu.memory_space<vmem>>, vector<1x8x8xf32>
    %103 = vector.shape_cast %102 : vector<1x8x8xf32> to vector<8x8xf32>
    %c5_32 = arith.constant 5 : index
    %104 = memref.load %arg1[%c5_32] : memref<330xf32, #tpu.memory_space<smem>>
    %105 = vector.broadcast %104 : f32 to vector<8x8xf32>
    %106 = arith.mulf %105, %103 : vector<8x8xf32>
    %107 = arith.addf %97, %106 : vector<8x8xf32>
    %c170 = arith.constant 170 : index
    %108 = memref.load %arg1[%c170] : memref<330xf32, #tpu.memory_space<smem>>
    %109 = vector.broadcast %108 : f32 to vector<8x8xf32>
    %110 = arith.mulf %109, %103 : vector<8x8xf32>
    %111 = arith.addf %101, %110 : vector<8x8xf32>
    %c0_33 = arith.constant 0 : index
    %c0_34 = arith.constant 0 : index
    %c3_35 = arith.constant 3 : index
    %112 = vector.load %arg4[%c0_33, %c0_34, %c3_35] : memref<11x8x15xf32, #tpu.memory_space<vmem>>, vector<1x8x8xf32>
    %113 = vector.shape_cast %112 : vector<1x8x8xf32> to vector<8x8xf32>
    %c7_36 = arith.constant 7 : index
    %114 = memref.load %arg1[%c7_36] : memref<330xf32, #tpu.memory_space<smem>>
    %115 = vector.broadcast %114 : f32 to vector<8x8xf32>
    %116 = arith.mulf %115, %113 : vector<8x8xf32>
    %117 = arith.addf %107, %116 : vector<8x8xf32>
    %c172 = arith.constant 172 : index
    %118 = memref.load %arg1[%c172] : memref<330xf32, #tpu.memory_space<smem>>
    %119 = vector.broadcast %118 : f32 to vector<8x8xf32>
    %120 = arith.mulf %119, %113 : vector<8x8xf32>
    %121 = arith.addf %111, %120 : vector<8x8xf32>
    %c0_37 = arith.constant 0 : index
    %c0_38 = arith.constant 0 : index
    %c4_39 = arith.constant 4 : index
    %122 = vector.load %arg4[%c0_37, %c0_38, %c4_39] : memref<11x8x15xf32, #tpu.memory_space<vmem>>, vector<1x8x8xf32>
    %123 = vector.shape_cast %122 : vector<1x8x8xf32> to vector<8x8xf32>
    %c9 = arith.constant 9 : index
    %124 = memref.load %arg1[%c9] : memref<330xf32, #tpu.memory_space<smem>>
    %125 = vector.broadcast %124 : f32 to vector<8x8xf32>
    %126 = arith.mulf %125, %123 : vector<8x8xf32>
    %127 = arith.addf %117, %126 : vector<8x8xf32>
    %c174 = arith.constant 174 : index
    %128 = memref.load %arg1[%c174] : memref<330xf32, #tpu.memory_space<smem>>
    %129 = vector.broadcast %128 : f32 to vector<8x8xf32>
    %130 = arith.mulf %129, %123 : vector<8x8xf32>
    %131 = arith.addf %121, %130 : vector<8x8xf32>
    %c0_40 = arith.constant 0 : index
    %c0_41 = arith.constant 0 : index
    %c5_42 = arith.constant 5 : index
    %132 = vector.load %arg4[%c0_40, %c0_41, %c5_42] : memref<11x8x15xf32, #tpu.memory_space<vmem>>, vector<1x8x8xf32>
    %133 = vector.shape_cast %132 : vector<1x8x8xf32> to vector<8x8xf32>
    %c11 = arith.constant 11 : index
    %134 = memref.load %arg1[%c11] : memref<330xf32, #tpu.memory_space<smem>>
    %135 = vector.broadcast %134 : f32 to vector<8x8xf32>
    %136 = arith.mulf %135, %133 : vector<8x8xf32>
    %137 = arith.addf %127, %136 : vector<8x8xf32>
    %c176 = arith.constant 176 : index
    %138 = memref.load %arg1[%c176] : memref<330xf32, #tpu.memory_space<smem>>
    %139 = vector.broadcast %138 : f32 to vector<8x8xf32>
    %140 = arith.mulf %139, %133 : vector<8x8xf32>
    %141 = arith.addf %131, %140 : vector<8x8xf32>
    %c0_43 = arith.constant 0 : index
    %c0_44 = arith.constant 0 : index
    %c6_45 = arith.constant 6 : index
    %142 = vector.load %arg4[%c0_43, %c0_44, %c6_45] : memref<11x8x15xf32, #tpu.memory_space<vmem>>, vector<1x8x8xf32>
    %143 = vector.shape_cast %142 : vector<1x8x8xf32> to vector<8x8xf32>
    %c13 = arith.constant 13 : index
    %144 = memref.load %arg1[%c13] : memref<330xf32, #tpu.memory_space<smem>>
    %145 = vector.broadcast %144 : f32 to vector<8x8xf32>
    %146 = arith.mulf %145, %143 : vector<8x8xf32>
    %147 = arith.addf %137, %146 : vector<8x8xf32>
    %c178 = arith.constant 178 : index
    %148 = memref.load %arg1[%c178] : memref<330xf32, #tpu.memory_space<smem>>
    %149 = vector.broadcast %148 : f32 to vector<8x8xf32>
    %150 = arith.mulf %149, %143 : vector<8x8xf32>
    %151 = arith.addf %141, %150 : vector<8x8xf32>
    %c1_46 = arith.constant 1 : index
    %c0_47 = arith.constant 0 : index
    %c0_48 = arith.constant 0 : index
    %152 = vector.load %arg3[%c1_46, %c0_47, %c0_48] : memref<11x8x15xf32, #tpu.memory_space<vmem>>, vector<1x8x8xf32>
    %153 = vector.shape_cast %152 : vector<1x8x8xf32> to vector<8x8xf32>
    %c15 = arith.constant 15 : index
    %154 = memref.load %arg1[%c15] : memref<330xf32, #tpu.memory_space<smem>>
    %155 = vector.broadcast %154 : f32 to vector<8x8xf32>
    %156 = arith.mulf %155, %153 : vector<8x8xf32>
    %157 = arith.addf %147, %156 : vector<8x8xf32>
    %c180 = arith.constant 180 : index
    %158 = memref.load %arg1[%c180] : memref<330xf32, #tpu.memory_space<smem>>
    %159 = vector.broadcast %158 : f32 to vector<8x8xf32>
    %160 = arith.mulf %159, %153 : vector<8x8xf32>
    %161 = arith.addf %151, %160 : vector<8x8xf32>
    %c1_49 = arith.constant 1 : index
    %c0_50 = arith.constant 0 : index
    %c1_51 = arith.constant 1 : index
    %162 = vector.load %arg3[%c1_49, %c0_50, %c1_51] : memref<11x8x15xf32, #tpu.memory_space<vmem>>, vector<1x8x8xf32>
    %163 = vector.shape_cast %162 : vector<1x8x8xf32> to vector<8x8xf32>
    %c17 = arith.constant 17 : index
    %164 = memref.load %arg1[%c17] : memref<330xf32, #tpu.memory_space<smem>>
    %165 = vector.broadcast %164 : f32 to vector<8x8xf32>
    %166 = arith.mulf %165, %163 : vector<8x8xf32>
    %167 = arith.addf %157, %166 : vector<8x8xf32>
    %c182 = arith.constant 182 : index
    %168 = memref.load %arg1[%c182] : memref<330xf32, #tpu.memory_space<smem>>
    %169 = vector.broadcast %168 : f32 to vector<8x8xf32>
    %170 = arith.mulf %169, %163 : vector<8x8xf32>
    %171 = arith.addf %161, %170 : vector<8x8xf32>
    %c1_52 = arith.constant 1 : index
    %c0_53 = arith.constant 0 : index
    %c2_54 = arith.constant 2 : index
    %172 = vector.load %arg3[%c1_52, %c0_53, %c2_54] : memref<11x8x15xf32, #tpu.memory_space<vmem>>, vector<1x8x8xf32>
    %173 = vector.shape_cast %172 : vector<1x8x8xf32> to vector<8x8xf32>
    %c19 = arith.constant 19 : index
    %174 = memref.load %arg1[%c19] : memref<330xf32, #tpu.memory_space<smem>>
    %175 = vector.broadcast %174 : f32 to vector<8x8xf32>
    %176 = arith.mulf %175, %173 : vector<8x8xf32>
    %177 = arith.addf %167, %176 : vector<8x8xf32>
    %c184 = arith.constant 184 : index
    %178 = memref.load %arg1[%c184] : memref<330xf32, #tpu.memory_space<smem>>
    %179 = vector.broadcast %178 : f32 to vector<8x8xf32>
    %180 = arith.mulf %179, %173 : vector<8x8xf32>
    %181 = arith.addf %171, %180 : vector<8x8xf32>
    %c1_55 = arith.constant 1 : index
    %c0_56 = arith.constant 0 : index
    %c3_57 = arith.constant 3 : index
    %182 = vector.load %arg3[%c1_55, %c0_56, %c3_57] : memref<11x8x15xf32, #tpu.memory_space<vmem>>, vector<1x8x8xf32>
    %183 = vector.shape_cast %182 : vector<1x8x8xf32> to vector<8x8xf32>
    %c21 = arith.constant 21 : index
    %184 = memref.load %arg1[%c21] : memref<330xf32, #tpu.memory_space<smem>>
    %185 = vector.broadcast %184 : f32 to vector<8x8xf32>
    %186 = arith.mulf %185, %183 : vector<8x8xf32>
    %187 = arith.addf %177, %186 : vector<8x8xf32>
    %c186 = arith.constant 186 : index
    %188 = memref.load %arg1[%c186] : memref<330xf32, #tpu.memory_space<smem>>
    %189 = vector.broadcast %188 : f32 to vector<8x8xf32>
    %190 = arith.mulf %189, %183 : vector<8x8xf32>
    %191 = arith.addf %181, %190 : vector<8x8xf32>
    %c1_58 = arith.constant 1 : index
    %c0_59 = arith.constant 0 : index
    %c4_60 = arith.constant 4 : index
    %192 = vector.load %arg3[%c1_58, %c0_59, %c4_60] : memref<11x8x15xf32, #tpu.memory_space<vmem>>, vector<1x8x8xf32>
    %193 = vector.shape_cast %192 : vector<1x8x8xf32> to vector<8x8xf32>
    %c23 = arith.constant 23 : index
    %194 = memref.load %arg1[%c23] : memref<330xf32, #tpu.memory_space<smem>>
    %195 = vector.broadcast %194 : f32 to vector<8x8xf32>
    %196 = arith.mulf %195, %193 : vector<8x8xf32>
    %197 = arith.addf %187, %196 : vector<8x8xf32>
    %c188 = arith.constant 188 : index
    %198 = memref.load %arg1[%c188] : memref<330xf32, #tpu.memory_space<smem>>
    %199 = vector.broadcast %198 : f32 to vector<8x8xf32>
    %200 = arith.mulf %199, %193 : vector<8x8xf32>
    %201 = arith.addf %191, %200 : vector<8x8xf32>
    %c1_61 = arith.constant 1 : index
    %c0_62 = arith.constant 0 : index
    %c5_63 = arith.constant 5 : index
    %202 = vector.load %arg3[%c1_61, %c0_62, %c5_63] : memref<11x8x15xf32, #tpu.memory_space<vmem>>, vector<1x8x8xf32>
    %203 = vector.shape_cast %202 : vector<1x8x8xf32> to vector<8x8xf32>
    %c25 = arith.constant 25 : index
    %204 = memref.load %arg1[%c25] : memref<330xf32, #tpu.memory_space<smem>>
    %205 = vector.broadcast %204 : f32 to vector<8x8xf32>
    %206 = arith.mulf %205, %203 : vector<8x8xf32>
    %207 = arith.addf %197, %206 : vector<8x8xf32>
    %c190 = arith.constant 190 : index
    %208 = memref.load %arg1[%c190] : memref<330xf32, #tpu.memory_space<smem>>
    %209 = vector.broadcast %208 : f32 to vector<8x8xf32>
    %210 = arith.mulf %209, %203 : vector<8x8xf32>
    %211 = arith.addf %201, %210 : vector<8x8xf32>
    %c1_64 = arith.constant 1 : index
    %c0_65 = arith.constant 0 : index
    %c6_66 = arith.constant 6 : index
    %212 = vector.load %arg3[%c1_64, %c0_65, %c6_66] : memref<11x8x15xf32, #tpu.memory_space<vmem>>, vector<1x8x8xf32>
    %213 = vector.shape_cast %212 : vector<1x8x8xf32> to vector<8x8xf32>
    %c27 = arith.constant 27 : index
    %214 = memref.load %arg1[%c27] : memref<330xf32, #tpu.memory_space<smem>>
    %215 = vector.broadcast %214 : f32 to vector<8x8xf32>
    %216 = arith.mulf %215, %213 : vector<8x8xf32>
    %217 = arith.addf %207, %216 : vector<8x8xf32>
    %c192 = arith.constant 192 : index
    %218 = memref.load %arg1[%c192] : memref<330xf32, #tpu.memory_space<smem>>
    %219 = vector.broadcast %218 : f32 to vector<8x8xf32>
    %220 = arith.mulf %219, %213 : vector<8x8xf32>
    %221 = arith.addf %211, %220 : vector<8x8xf32>
    %c1_67 = arith.constant 1 : index
    %c0_68 = arith.constant 0 : index
    %c7_69 = arith.constant 7 : index
    %222 = vector.load %arg3[%c1_67, %c0_68, %c7_69] : memref<11x8x15xf32, #tpu.memory_space<vmem>>, vector<1x8x8xf32>
    %223 = vector.shape_cast %222 : vector<1x8x8xf32> to vector<8x8xf32>
    %c29 = arith.constant 29 : index
    %224 = memref.load %arg1[%c29] : memref<330xf32, #tpu.memory_space<smem>>
    %225 = vector.broadcast %224 : f32 to vector<8x8xf32>
    %226 = arith.mulf %225, %223 : vector<8x8xf32>
    %227 = arith.addf %217, %226 : vector<8x8xf32>
    %c194 = arith.constant 194 : index
    %228 = memref.load %arg1[%c194] : memref<330xf32, #tpu.memory_space<smem>>
    %229 = vector.broadcast %228 : f32 to vector<8x8xf32>
    %230 = arith.mulf %229, %223 : vector<8x8xf32>
    %231 = arith.addf %221, %230 : vector<8x8xf32>
    %c1_70 = arith.constant 1 : index
    %c0_71 = arith.constant 0 : index
    %c0_72 = arith.constant 0 : index
    %232 = vector.load %arg4[%c1_70, %c0_71, %c0_72] : memref<11x8x15xf32, #tpu.memory_space<vmem>>, vector<1x8x8xf32>
    %233 = vector.shape_cast %232 : vector<1x8x8xf32> to vector<8x8xf32>
    %c16 = arith.constant 16 : index
    %234 = memref.load %arg1[%c16] : memref<330xf32, #tpu.memory_space<smem>>
    %235 = vector.broadcast %234 : f32 to vector<8x8xf32>
    %236 = arith.mulf %235, %233 : vector<8x8xf32>
    %237 = arith.addf %227, %236 : vector<8x8xf32>
    %c181 = arith.constant 181 : index
    %238 = memref.load %arg1[%c181] : memref<330xf32, #tpu.memory_space<smem>>
    %239 = vector.broadcast %238 : f32 to vector<8x8xf32>
    %240 = arith.mulf %239, %233 : vector<8x8xf32>
    %241 = arith.addf %231, %240 : vector<8x8xf32>
    %c1_73 = arith.constant 1 : index
    %c0_74 = arith.constant 0 : index
    %c1_75 = arith.constant 1 : index
    %242 = vector.load %arg4[%c1_73, %c0_74, %c1_75] : memref<11x8x15xf32, #tpu.memory_space<vmem>>, vector<1x8x8xf32>
    %243 = vector.shape_cast %242 : vector<1x8x8xf32> to vector<8x8xf32>
    %c18 = arith.constant 18 : index
    %244 = memref.load %arg1[%c18] : memref<330xf32, #tpu.memory_space<smem>>
    %245 = vector.broadcast %244 : f32 to vector<8x8xf32>
    %246 = arith.mulf %245, %243 : vector<8x8xf32>
    %247 = arith.addf %237, %246 : vector<8x8xf32>
    %c183 = arith.constant 183 : index
    %248 = memref.load %arg1[%c183] : memref<330xf32, #tpu.memory_space<smem>>
    %249 = vector.broadcast %248 : f32 to vector<8x8xf32>
    %250 = arith.mulf %249, %243 : vector<8x8xf32>
    %251 = arith.addf %241, %250 : vector<8x8xf32>
    %c1_76 = arith.constant 1 : index
    %c0_77 = arith.constant 0 : index
    %c2_78 = arith.constant 2 : index
    %252 = vector.load %arg4[%c1_76, %c0_77, %c2_78] : memref<11x8x15xf32, #tpu.memory_space<vmem>>, vector<1x8x8xf32>
    %253 = vector.shape_cast %252 : vector<1x8x8xf32> to vector<8x8xf32>
    %c20 = arith.constant 20 : index
    %254 = memref.load %arg1[%c20] : memref<330xf32, #tpu.memory_space<smem>>
    %255 = vector.broadcast %254 : f32 to vector<8x8xf32>
    %256 = arith.mulf %255, %253 : vector<8x8xf32>
    %257 = arith.addf %247, %256 : vector<8x8xf32>
    %c185 = arith.constant 185 : index
    %258 = memref.load %arg1[%c185] : memref<330xf32, #tpu.memory_space<smem>>
    %259 = vector.broadcast %258 : f32 to vector<8x8xf32>
    %260 = arith.mulf %259, %253 : vector<8x8xf32>
    %261 = arith.addf %251, %260 : vector<8x8xf32>
    %c1_79 = arith.constant 1 : index
    %c0_80 = arith.constant 0 : index
    %c3_81 = arith.constant 3 : index
    %262 = vector.load %arg4[%c1_79, %c0_80, %c3_81] : memref<11x8x15xf32, #tpu.memory_space<vmem>>, vector<1x8x8xf32>
    %263 = vector.shape_cast %262 : vector<1x8x8xf32> to vector<8x8xf32>
    %c22 = arith.constant 22 : index
    %264 = memref.load %arg1[%c22] : memref<330xf32, #tpu.memory_space<smem>>
    %265 = vector.broadcast %264 : f32 to vector<8x8xf32>
    %266 = arith.mulf %265, %263 : vector<8x8xf32>
    %267 = arith.addf %257, %266 : vector<8x8xf32>
    %c187 = arith.constant 187 : index
    %268 = memref.load %arg1[%c187] : memref<330xf32, #tpu.memory_space<smem>>
    %269 = vector.broadcast %268 : f32 to vector<8x8xf32>
    %270 = arith.mulf %269, %263 : vector<8x8xf32>
    %271 = arith.addf %261, %270 : vector<8x8xf32>
    %c1_82 = arith.constant 1 : index
    %c0_83 = arith.constant 0 : index
    %c4_84 = arith.constant 4 : index
    %272 = vector.load %arg4[%c1_82, %c0_83, %c4_84] : memref<11x8x15xf32, #tpu.memory_space<vmem>>, vector<1x8x8xf32>
    %273 = vector.shape_cast %272 : vector<1x8x8xf32> to vector<8x8xf32>
    %c24 = arith.constant 24 : index
    %274 = memref.load %arg1[%c24] : memref<330xf32, #tpu.memory_space<smem>>
    %275 = vector.broadcast %274 : f32 to vector<8x8xf32>
    %276 = arith.mulf %275, %273 : vector<8x8xf32>
    %277 = arith.addf %267, %276 : vector<8x8xf32>
    %c189 = arith.constant 189 : index
    %278 = memref.load %arg1[%c189] : memref<330xf32, #tpu.memory_space<smem>>
    %279 = vector.broadcast %278 : f32 to vector<8x8xf32>
    %280 = arith.mulf %279, %273 : vector<8x8xf32>
    %281 = arith.addf %271, %280 : vector<8x8xf32>
    %c1_85 = arith.constant 1 : index
    %c0_86 = arith.constant 0 : index
    %c5_87 = arith.constant 5 : index
    %282 = vector.load %arg4[%c1_85, %c0_86, %c5_87] : memref<11x8x15xf32, #tpu.memory_space<vmem>>, vector<1x8x8xf32>
    %283 = vector.shape_cast %282 : vector<1x8x8xf32> to vector<8x8xf32>
    %c26 = arith.constant 26 : index
    %284 = memref.load %arg1[%c26] : memref<330xf32, #tpu.memory_space<smem>>
    %285 = vector.broadcast %284 : f32 to vector<8x8xf32>
    %286 = arith.mulf %285, %283 : vector<8x8xf32>
    %287 = arith.addf %277, %286 : vector<8x8xf32>
    %c191 = arith.constant 191 : index
    %288 = memref.load %arg1[%c191] : memref<330xf32, #tpu.memory_space<smem>>
    %289 = vector.broadcast %288 : f32 to vector<8x8xf32>
    %290 = arith.mulf %289, %283 : vector<8x8xf32>
    %291 = arith.addf %281, %290 : vector<8x8xf32>
    %c1_88 = arith.constant 1 : index
    %c0_89 = arith.constant 0 : index
    %c6_90 = arith.constant 6 : index
    %292 = vector.load %arg4[%c1_88, %c0_89, %c6_90] : memref<11x8x15xf32, #tpu.memory_space<vmem>>, vector<1x8x8xf32>
    %293 = vector.shape_cast %292 : vector<1x8x8xf32> to vector<8x8xf32>
    %c28 = arith.constant 28 : index
    %294 = memref.load %arg1[%c28] : memref<330xf32, #tpu.memory_space<smem>>
    %295 = vector.broadcast %294 : f32 to vector<8x8xf32>
    %296 = arith.mulf %295, %293 : vector<8x8xf32>
    %297 = arith.addf %287, %296 : vector<8x8xf32>
    %c193 = arith.constant 193 : index
    %298 = memref.load %arg1[%c193] : memref<330xf32, #tpu.memory_space<smem>>
    %299 = vector.broadcast %298 : f32 to vector<8x8xf32>
    %300 = arith.mulf %299, %293 : vector<8x8xf32>
    %301 = arith.addf %291, %300 : vector<8x8xf32>
    %c2_91 = arith.constant 2 : index
    %c0_92 = arith.constant 0 : index
    %c0_93 = arith.constant 0 : index
    %302 = vector.load %arg3[%c2_91, %c0_92, %c0_93] : memref<11x8x15xf32, #tpu.memory_space<vmem>>, vector<1x8x8xf32>
    %303 = vector.shape_cast %302 : vector<1x8x8xf32> to vector<8x8xf32>
    %c30 = arith.constant 30 : index
    %304 = memref.load %arg1[%c30] : memref<330xf32, #tpu.memory_space<smem>>
    %305 = vector.broadcast %304 : f32 to vector<8x8xf32>
    %306 = arith.mulf %305, %303 : vector<8x8xf32>
    %307 = arith.addf %297, %306 : vector<8x8xf32>
    %c195 = arith.constant 195 : index
    %308 = memref.load %arg1[%c195] : memref<330xf32, #tpu.memory_space<smem>>
    %309 = vector.broadcast %308 : f32 to vector<8x8xf32>
    %310 = arith.mulf %309, %303 : vector<8x8xf32>
    %311 = arith.addf %301, %310 : vector<8x8xf32>
    %c2_94 = arith.constant 2 : index
    %c0_95 = arith.constant 0 : index
    %c1_96 = arith.constant 1 : index
    %312 = vector.load %arg3[%c2_94, %c0_95, %c1_96] : memref<11x8x15xf32, #tpu.memory_space<vmem>>, vector<1x8x8xf32>
    %313 = vector.shape_cast %312 : vector<1x8x8xf32> to vector<8x8xf32>
    %c32 = arith.constant 32 : index
    %314 = memref.load %arg1[%c32] : memref<330xf32, #tpu.memory_space<smem>>
    %315 = vector.broadcast %314 : f32 to vector<8x8xf32>
    %316 = arith.mulf %315, %313 : vector<8x8xf32>
    %317 = arith.addf %307, %316 : vector<8x8xf32>
    %c197 = arith.constant 197 : index
    %318 = memref.load %arg1[%c197] : memref<330xf32, #tpu.memory_space<smem>>
    %319 = vector.broadcast %318 : f32 to vector<8x8xf32>
    %320 = arith.mulf %319, %313 : vector<8x8xf32>
    %321 = arith.addf %311, %320 : vector<8x8xf32>
    %c2_97 = arith.constant 2 : index
    %c0_98 = arith.constant 0 : index
    %c2_99 = arith.constant 2 : index
    %322 = vector.load %arg3[%c2_97, %c0_98, %c2_99] : memref<11x8x15xf32, #tpu.memory_space<vmem>>, vector<1x8x8xf32>
    %323 = vector.shape_cast %322 : vector<1x8x8xf32> to vector<8x8xf32>
    %c34 = arith.constant 34 : index
    %324 = memref.load %arg1[%c34] : memref<330xf32, #tpu.memory_space<smem>>
    %325 = vector.broadcast %324 : f32 to vector<8x8xf32>
    %326 = arith.mulf %325, %323 : vector<8x8xf32>
    %327 = arith.addf %317, %326 : vector<8x8xf32>
    %c199 = arith.constant 199 : index
    %328 = memref.load %arg1[%c199] : memref<330xf32, #tpu.memory_space<smem>>
    %329 = vector.broadcast %328 : f32 to vector<8x8xf32>
    %330 = arith.mulf %329, %323 : vector<8x8xf32>
    %331 = arith.addf %321, %330 : vector<8x8xf32>
    %c2_100 = arith.constant 2 : index
    %c0_101 = arith.constant 0 : index
    %c3_102 = arith.constant 3 : index
    %332 = vector.load %arg3[%c2_100, %c0_101, %c3_102] : memref<11x8x15xf32, #tpu.memory_space<vmem>>, vector<1x8x8xf32>
    %333 = vector.shape_cast %332 : vector<1x8x8xf32> to vector<8x8xf32>
    %c36 = arith.constant 36 : index
    %334 = memref.load %arg1[%c36] : memref<330xf32, #tpu.memory_space<smem>>
    %335 = vector.broadcast %334 : f32 to vector<8x8xf32>
    %336 = arith.mulf %335, %333 : vector<8x8xf32>
    %337 = arith.addf %327, %336 : vector<8x8xf32>
    %c201 = arith.constant 201 : index
    %338 = memref.load %arg1[%c201] : memref<330xf32, #tpu.memory_space<smem>>
    %339 = vector.broadcast %338 : f32 to vector<8x8xf32>
    %340 = arith.mulf %339, %333 : vector<8x8xf32>
    %341 = arith.addf %331, %340 : vector<8x8xf32>
    %c2_103 = arith.constant 2 : index
    %c0_104 = arith.constant 0 : index
    %c4_105 = arith.constant 4 : index
    %342 = vector.load %arg3[%c2_103, %c0_104, %c4_105] : memref<11x8x15xf32, #tpu.memory_space<vmem>>, vector<1x8x8xf32>
    %343 = vector.shape_cast %342 : vector<1x8x8xf32> to vector<8x8xf32>
    %c38 = arith.constant 38 : index
    %344 = memref.load %arg1[%c38] : memref<330xf32, #tpu.memory_space<smem>>
    %345 = vector.broadcast %344 : f32 to vector<8x8xf32>
    %346 = arith.mulf %345, %343 : vector<8x8xf32>
    %347 = arith.addf %337, %346 : vector<8x8xf32>
    %c203 = arith.constant 203 : index
    %348 = memref.load %arg1[%c203] : memref<330xf32, #tpu.memory_space<smem>>
    %349 = vector.broadcast %348 : f32 to vector<8x8xf32>
    %350 = arith.mulf %349, %343 : vector<8x8xf32>
    %351 = arith.addf %341, %350 : vector<8x8xf32>
    %c2_106 = arith.constant 2 : index
    %c0_107 = arith.constant 0 : index
    %c5_108 = arith.constant 5 : index
    %352 = vector.load %arg3[%c2_106, %c0_107, %c5_108] : memref<11x8x15xf32, #tpu.memory_space<vmem>>, vector<1x8x8xf32>
    %353 = vector.shape_cast %352 : vector<1x8x8xf32> to vector<8x8xf32>
    %c40 = arith.constant 40 : index
    %354 = memref.load %arg1[%c40] : memref<330xf32, #tpu.memory_space<smem>>
    %355 = vector.broadcast %354 : f32 to vector<8x8xf32>
    %356 = arith.mulf %355, %353 : vector<8x8xf32>
    %357 = arith.addf %347, %356 : vector<8x8xf32>
    %c205 = arith.constant 205 : index
    %358 = memref.load %arg1[%c205] : memref<330xf32, #tpu.memory_space<smem>>
    %359 = vector.broadcast %358 : f32 to vector<8x8xf32>
    %360 = arith.mulf %359, %353 : vector<8x8xf32>
    %361 = arith.addf %351, %360 : vector<8x8xf32>
    %c2_109 = arith.constant 2 : index
    %c0_110 = arith.constant 0 : index
    %c6_111 = arith.constant 6 : index
    %362 = vector.load %arg3[%c2_109, %c0_110, %c6_111] : memref<11x8x15xf32, #tpu.memory_space<vmem>>, vector<1x8x8xf32>
    %363 = vector.shape_cast %362 : vector<1x8x8xf32> to vector<8x8xf32>
    %c42 = arith.constant 42 : index
    %364 = memref.load %arg1[%c42] : memref<330xf32, #tpu.memory_space<smem>>
    %365 = vector.broadcast %364 : f32 to vector<8x8xf32>
    %366 = arith.mulf %365, %363 : vector<8x8xf32>
    %367 = arith.addf %357, %366 : vector<8x8xf32>
    %c207 = arith.constant 207 : index
    %368 = memref.load %arg1[%c207] : memref<330xf32, #tpu.memory_space<smem>>
    %369 = vector.broadcast %368 : f32 to vector<8x8xf32>
    %370 = arith.mulf %369, %363 : vector<8x8xf32>
    %371 = arith.addf %361, %370 : vector<8x8xf32>
    %c2_112 = arith.constant 2 : index
    %c0_113 = arith.constant 0 : index
    %c7_114 = arith.constant 7 : index
    %372 = vector.load %arg3[%c2_112, %c0_113, %c7_114] : memref<11x8x15xf32, #tpu.memory_space<vmem>>, vector<1x8x8xf32>
    %373 = vector.shape_cast %372 : vector<1x8x8xf32> to vector<8x8xf32>
    %c44 = arith.constant 44 : index
    %374 = memref.load %arg1[%c44] : memref<330xf32, #tpu.memory_space<smem>>
    %375 = vector.broadcast %374 : f32 to vector<8x8xf32>
    %376 = arith.mulf %375, %373 : vector<8x8xf32>
    %377 = arith.addf %367, %376 : vector<8x8xf32>
    %c209 = arith.constant 209 : index
    %378 = memref.load %arg1[%c209] : memref<330xf32, #tpu.memory_space<smem>>
    %379 = vector.broadcast %378 : f32 to vector<8x8xf32>
    %380 = arith.mulf %379, %373 : vector<8x8xf32>
    %381 = arith.addf %371, %380 : vector<8x8xf32>
    %c2_115 = arith.constant 2 : index
    %c0_116 = arith.constant 0 : index
    %c0_117 = arith.constant 0 : index
    %382 = vector.load %arg4[%c2_115, %c0_116, %c0_117] : memref<11x8x15xf32, #tpu.memory_space<vmem>>, vector<1x8x8xf32>
    %383 = vector.shape_cast %382 : vector<1x8x8xf32> to vector<8x8xf32>
    %c31 = arith.constant 31 : index
    %384 = memref.load %arg1[%c31] : memref<330xf32, #tpu.memory_space<smem>>
    %385 = vector.broadcast %384 : f32 to vector<8x8xf32>
    %386 = arith.mulf %385, %383 : vector<8x8xf32>
    %387 = arith.addf %377, %386 : vector<8x8xf32>
    %c196 = arith.constant 196 : index
    %388 = memref.load %arg1[%c196] : memref<330xf32, #tpu.memory_space<smem>>
    %389 = vector.broadcast %388 : f32 to vector<8x8xf32>
    %390 = arith.mulf %389, %383 : vector<8x8xf32>
    %391 = arith.addf %381, %390 : vector<8x8xf32>
    %c2_118 = arith.constant 2 : index
    %c0_119 = arith.constant 0 : index
    %c1_120 = arith.constant 1 : index
    %392 = vector.load %arg4[%c2_118, %c0_119, %c1_120] : memref<11x8x15xf32, #tpu.memory_space<vmem>>, vector<1x8x8xf32>
    %393 = vector.shape_cast %392 : vector<1x8x8xf32> to vector<8x8xf32>
    %c33 = arith.constant 33 : index
    %394 = memref.load %arg1[%c33] : memref<330xf32, #tpu.memory_space<smem>>
    %395 = vector.broadcast %394 : f32 to vector<8x8xf32>
    %396 = arith.mulf %395, %393 : vector<8x8xf32>
    %397 = arith.addf %387, %396 : vector<8x8xf32>
    %c198 = arith.constant 198 : index
    %398 = memref.load %arg1[%c198] : memref<330xf32, #tpu.memory_space<smem>>
    %399 = vector.broadcast %398 : f32 to vector<8x8xf32>
    %400 = arith.mulf %399, %393 : vector<8x8xf32>
    %401 = arith.addf %391, %400 : vector<8x8xf32>
    %c2_121 = arith.constant 2 : index
    %c0_122 = arith.constant 0 : index
    %c2_123 = arith.constant 2 : index
    %402 = vector.load %arg4[%c2_121, %c0_122, %c2_123] : memref<11x8x15xf32, #tpu.memory_space<vmem>>, vector<1x8x8xf32>
    %403 = vector.shape_cast %402 : vector<1x8x8xf32> to vector<8x8xf32>
    %c35 = arith.constant 35 : index
    %404 = memref.load %arg1[%c35] : memref<330xf32, #tpu.memory_space<smem>>
    %405 = vector.broadcast %404 : f32 to vector<8x8xf32>
    %406 = arith.mulf %405, %403 : vector<8x8xf32>
    %407 = arith.addf %397, %406 : vector<8x8xf32>
    %c200 = arith.constant 200 : index
    %408 = memref.load %arg1[%c200] : memref<330xf32, #tpu.memory_space<smem>>
    %409 = vector.broadcast %408 : f32 to vector<8x8xf32>
    %410 = arith.mulf %409, %403 : vector<8x8xf32>
    %411 = arith.addf %401, %410 : vector<8x8xf32>
    %c2_124 = arith.constant 2 : index
    %c0_125 = arith.constant 0 : index
    %c3_126 = arith.constant 3 : index
    %412 = vector.load %arg4[%c2_124, %c0_125, %c3_126] : memref<11x8x15xf32, #tpu.memory_space<vmem>>, vector<1x8x8xf32>
    %413 = vector.shape_cast %412 : vector<1x8x8xf32> to vector<8x8xf32>
    %c37 = arith.constant 37 : index
    %414 = memref.load %arg1[%c37] : memref<330xf32, #tpu.memory_space<smem>>
    %415 = vector.broadcast %414 : f32 to vector<8x8xf32>
    %416 = arith.mulf %415, %413 : vector<8x8xf32>
    %417 = arith.addf %407, %416 : vector<8x8xf32>
    %c202 = arith.constant 202 : index
    %418 = memref.load %arg1[%c202] : memref<330xf32, #tpu.memory_space<smem>>
    %419 = vector.broadcast %418 : f32 to vector<8x8xf32>
    %420 = arith.mulf %419, %413 : vector<8x8xf32>
    %421 = arith.addf %411, %420 : vector<8x8xf32>
    %c2_127 = arith.constant 2 : index
    %c0_128 = arith.constant 0 : index
    %c4_129 = arith.constant 4 : index
    %422 = vector.load %arg4[%c2_127, %c0_128, %c4_129] : memref<11x8x15xf32, #tpu.memory_space<vmem>>, vector<1x8x8xf32>
    %423 = vector.shape_cast %422 : vector<1x8x8xf32> to vector<8x8xf32>
    %c39 = arith.constant 39 : index
    %424 = memref.load %arg1[%c39] : memref<330xf32, #tpu.memory_space<smem>>
    %425 = vector.broadcast %424 : f32 to vector<8x8xf32>
    %426 = arith.mulf %425, %423 : vector<8x8xf32>
    %427 = arith.addf %417, %426 : vector<8x8xf32>
    %c204 = arith.constant 204 : index
    %428 = memref.load %arg1[%c204] : memref<330xf32, #tpu.memory_space<smem>>
    %429 = vector.broadcast %428 : f32 to vector<8x8xf32>
    %430 = arith.mulf %429, %423 : vector<8x8xf32>
    %431 = arith.addf %421, %430 : vector<8x8xf32>
    %c2_130 = arith.constant 2 : index
    %c0_131 = arith.constant 0 : index
    %c5_132 = arith.constant 5 : index
    %432 = vector.load %arg4[%c2_130, %c0_131, %c5_132] : memref<11x8x15xf32, #tpu.memory_space<vmem>>, vector<1x8x8xf32>
    %433 = vector.shape_cast %432 : vector<1x8x8xf32> to vector<8x8xf32>
    %c41 = arith.constant 41 : index
    %434 = memref.load %arg1[%c41] : memref<330xf32, #tpu.memory_space<smem>>
    %435 = vector.broadcast %434 : f32 to vector<8x8xf32>
    %436 = arith.mulf %435, %433 : vector<8x8xf32>
    %437 = arith.addf %427, %436 : vector<8x8xf32>
    %c206 = arith.constant 206 : index
    %438 = memref.load %arg1[%c206] : memref<330xf32, #tpu.memory_space<smem>>
    %439 = vector.broadcast %438 : f32 to vector<8x8xf32>
    %440 = arith.mulf %439, %433 : vector<8x8xf32>
    %441 = arith.addf %431, %440 : vector<8x8xf32>
    %c2_133 = arith.constant 2 : index
    %c0_134 = arith.constant 0 : index
    %c6_135 = arith.constant 6 : index
    %442 = vector.load %arg4[%c2_133, %c0_134, %c6_135] : memref<11x8x15xf32, #tpu.memory_space<vmem>>, vector<1x8x8xf32>
    %443 = vector.shape_cast %442 : vector<1x8x8xf32> to vector<8x8xf32>
    %c43 = arith.constant 43 : index
    %444 = memref.load %arg1[%c43] : memref<330xf32, #tpu.memory_space<smem>>
    %445 = vector.broadcast %444 : f32 to vector<8x8xf32>
    %446 = arith.mulf %445, %443 : vector<8x8xf32>
    %447 = arith.addf %437, %446 : vector<8x8xf32>
    %c208 = arith.constant 208 : index
    %448 = memref.load %arg1[%c208] : memref<330xf32, #tpu.memory_space<smem>>
    %449 = vector.broadcast %448 : f32 to vector<8x8xf32>
    %450 = arith.mulf %449, %443 : vector<8x8xf32>
    %451 = arith.addf %441, %450 : vector<8x8xf32>
    %c3_136 = arith.constant 3 : index
    %c0_137 = arith.constant 0 : index
    %c0_138 = arith.constant 0 : index
    %452 = vector.load %arg3[%c3_136, %c0_137, %c0_138] : memref<11x8x15xf32, #tpu.memory_space<vmem>>, vector<1x8x8xf32>
    %453 = vector.shape_cast %452 : vector<1x8x8xf32> to vector<8x8xf32>
    %c45 = arith.constant 45 : index
    %454 = memref.load %arg1[%c45] : memref<330xf32, #tpu.memory_space<smem>>
    %455 = vector.broadcast %454 : f32 to vector<8x8xf32>
    %456 = arith.mulf %455, %453 : vector<8x8xf32>
    %457 = arith.addf %447, %456 : vector<8x8xf32>
    %c210 = arith.constant 210 : index
    %458 = memref.load %arg1[%c210] : memref<330xf32, #tpu.memory_space<smem>>
    %459 = vector.broadcast %458 : f32 to vector<8x8xf32>
    %460 = arith.mulf %459, %453 : vector<8x8xf32>
    %461 = arith.addf %451, %460 : vector<8x8xf32>
    %c3_139 = arith.constant 3 : index
    %c0_140 = arith.constant 0 : index
    %c1_141 = arith.constant 1 : index
    %462 = vector.load %arg3[%c3_139, %c0_140, %c1_141] : memref<11x8x15xf32, #tpu.memory_space<vmem>>, vector<1x8x8xf32>
    %463 = vector.shape_cast %462 : vector<1x8x8xf32> to vector<8x8xf32>
    %c47 = arith.constant 47 : index
    %464 = memref.load %arg1[%c47] : memref<330xf32, #tpu.memory_space<smem>>
    %465 = vector.broadcast %464 : f32 to vector<8x8xf32>
    %466 = arith.mulf %465, %463 : vector<8x8xf32>
    %467 = arith.addf %457, %466 : vector<8x8xf32>
    %c212 = arith.constant 212 : index
    %468 = memref.load %arg1[%c212] : memref<330xf32, #tpu.memory_space<smem>>
    %469 = vector.broadcast %468 : f32 to vector<8x8xf32>
    %470 = arith.mulf %469, %463 : vector<8x8xf32>
    %471 = arith.addf %461, %470 : vector<8x8xf32>
    %c3_142 = arith.constant 3 : index
    %c0_143 = arith.constant 0 : index
    %c2_144 = arith.constant 2 : index
    %472 = vector.load %arg3[%c3_142, %c0_143, %c2_144] : memref<11x8x15xf32, #tpu.memory_space<vmem>>, vector<1x8x8xf32>
    %473 = vector.shape_cast %472 : vector<1x8x8xf32> to vector<8x8xf32>
    %c49 = arith.constant 49 : index
    %474 = memref.load %arg1[%c49] : memref<330xf32, #tpu.memory_space<smem>>
    %475 = vector.broadcast %474 : f32 to vector<8x8xf32>
    %476 = arith.mulf %475, %473 : vector<8x8xf32>
    %477 = arith.addf %467, %476 : vector<8x8xf32>
    %c214 = arith.constant 214 : index
    %478 = memref.load %arg1[%c214] : memref<330xf32, #tpu.memory_space<smem>>
    %479 = vector.broadcast %478 : f32 to vector<8x8xf32>
    %480 = arith.mulf %479, %473 : vector<8x8xf32>
    %481 = arith.addf %471, %480 : vector<8x8xf32>
    %c3_145 = arith.constant 3 : index
    %c0_146 = arith.constant 0 : index
    %c3_147 = arith.constant 3 : index
    %482 = vector.load %arg3[%c3_145, %c0_146, %c3_147] : memref<11x8x15xf32, #tpu.memory_space<vmem>>, vector<1x8x8xf32>
    %483 = vector.shape_cast %482 : vector<1x8x8xf32> to vector<8x8xf32>
    %c51 = arith.constant 51 : index
    %484 = memref.load %arg1[%c51] : memref<330xf32, #tpu.memory_space<smem>>
    %485 = vector.broadcast %484 : f32 to vector<8x8xf32>
    %486 = arith.mulf %485, %483 : vector<8x8xf32>
    %487 = arith.addf %477, %486 : vector<8x8xf32>
    %c216 = arith.constant 216 : index
    %488 = memref.load %arg1[%c216] : memref<330xf32, #tpu.memory_space<smem>>
    %489 = vector.broadcast %488 : f32 to vector<8x8xf32>
    %490 = arith.mulf %489, %483 : vector<8x8xf32>
    %491 = arith.addf %481, %490 : vector<8x8xf32>
    %c3_148 = arith.constant 3 : index
    %c0_149 = arith.constant 0 : index
    %c4_150 = arith.constant 4 : index
    %492 = vector.load %arg3[%c3_148, %c0_149, %c4_150] : memref<11x8x15xf32, #tpu.memory_space<vmem>>, vector<1x8x8xf32>
    %493 = vector.shape_cast %492 : vector<1x8x8xf32> to vector<8x8xf32>
    %c53 = arith.constant 53 : index
    %494 = memref.load %arg1[%c53] : memref<330xf32, #tpu.memory_space<smem>>
    %495 = vector.broadcast %494 : f32 to vector<8x8xf32>
    %496 = arith.mulf %495, %493 : vector<8x8xf32>
    %497 = arith.addf %487, %496 : vector<8x8xf32>
    %c218 = arith.constant 218 : index
    %498 = memref.load %arg1[%c218] : memref<330xf32, #tpu.memory_space<smem>>
    %499 = vector.broadcast %498 : f32 to vector<8x8xf32>
    %500 = arith.mulf %499, %493 : vector<8x8xf32>
    %501 = arith.addf %491, %500 : vector<8x8xf32>
    %c3_151 = arith.constant 3 : index
    %c0_152 = arith.constant 0 : index
    %c5_153 = arith.constant 5 : index
    %502 = vector.load %arg3[%c3_151, %c0_152, %c5_153] : memref<11x8x15xf32, #tpu.memory_space<vmem>>, vector<1x8x8xf32>
    %503 = vector.shape_cast %502 : vector<1x8x8xf32> to vector<8x8xf32>
    %c55 = arith.constant 55 : index
    %504 = memref.load %arg1[%c55] : memref<330xf32, #tpu.memory_space<smem>>
    %505 = vector.broadcast %504 : f32 to vector<8x8xf32>
    %506 = arith.mulf %505, %503 : vector<8x8xf32>
    %507 = arith.addf %497, %506 : vector<8x8xf32>
    %c220 = arith.constant 220 : index
    %508 = memref.load %arg1[%c220] : memref<330xf32, #tpu.memory_space<smem>>
    %509 = vector.broadcast %508 : f32 to vector<8x8xf32>
    %510 = arith.mulf %509, %503 : vector<8x8xf32>
    %511 = arith.addf %501, %510 : vector<8x8xf32>
    %c3_154 = arith.constant 3 : index
    %c0_155 = arith.constant 0 : index
    %c6_156 = arith.constant 6 : index
    %512 = vector.load %arg3[%c3_154, %c0_155, %c6_156] : memref<11x8x15xf32, #tpu.memory_space<vmem>>, vector<1x8x8xf32>
    %513 = vector.shape_cast %512 : vector<1x8x8xf32> to vector<8x8xf32>
    %c57 = arith.constant 57 : index
    %514 = memref.load %arg1[%c57] : memref<330xf32, #tpu.memory_space<smem>>
    %515 = vector.broadcast %514 : f32 to vector<8x8xf32>
    %516 = arith.mulf %515, %513 : vector<8x8xf32>
    %517 = arith.addf %507, %516 : vector<8x8xf32>
    %c222 = arith.constant 222 : index
    %518 = memref.load %arg1[%c222] : memref<330xf32, #tpu.memory_space<smem>>
    %519 = vector.broadcast %518 : f32 to vector<8x8xf32>
    %520 = arith.mulf %519, %513 : vector<8x8xf32>
    %521 = arith.addf %511, %520 : vector<8x8xf32>
    %c3_157 = arith.constant 3 : index
    %c0_158 = arith.constant 0 : index
    %c7_159 = arith.constant 7 : index
    %522 = vector.load %arg3[%c3_157, %c0_158, %c7_159] : memref<11x8x15xf32, #tpu.memory_space<vmem>>, vector<1x8x8xf32>
    %523 = vector.shape_cast %522 : vector<1x8x8xf32> to vector<8x8xf32>
    %c59 = arith.constant 59 : index
    %524 = memref.load %arg1[%c59] : memref<330xf32, #tpu.memory_space<smem>>
    %525 = vector.broadcast %524 : f32 to vector<8x8xf32>
    %526 = arith.mulf %525, %523 : vector<8x8xf32>
    %527 = arith.addf %517, %526 : vector<8x8xf32>
    %c224 = arith.constant 224 : index
    %528 = memref.load %arg1[%c224] : memref<330xf32, #tpu.memory_space<smem>>
    %529 = vector.broadcast %528 : f32 to vector<8x8xf32>
    %530 = arith.mulf %529, %523 : vector<8x8xf32>
    %531 = arith.addf %521, %530 : vector<8x8xf32>
    %c3_160 = arith.constant 3 : index
    %c0_161 = arith.constant 0 : index
    %c0_162 = arith.constant 0 : index
    %532 = vector.load %arg4[%c3_160, %c0_161, %c0_162] : memref<11x8x15xf32, #tpu.memory_space<vmem>>, vector<1x8x8xf32>
    %533 = vector.shape_cast %532 : vector<1x8x8xf32> to vector<8x8xf32>
    %c46 = arith.constant 46 : index
    %534 = memref.load %arg1[%c46] : memref<330xf32, #tpu.memory_space<smem>>
    %535 = vector.broadcast %534 : f32 to vector<8x8xf32>
    %536 = arith.mulf %535, %533 : vector<8x8xf32>
    %537 = arith.addf %527, %536 : vector<8x8xf32>
    %c211 = arith.constant 211 : index
    %538 = memref.load %arg1[%c211] : memref<330xf32, #tpu.memory_space<smem>>
    %539 = vector.broadcast %538 : f32 to vector<8x8xf32>
    %540 = arith.mulf %539, %533 : vector<8x8xf32>
    %541 = arith.addf %531, %540 : vector<8x8xf32>
    %c3_163 = arith.constant 3 : index
    %c0_164 = arith.constant 0 : index
    %c1_165 = arith.constant 1 : index
    %542 = vector.load %arg4[%c3_163, %c0_164, %c1_165] : memref<11x8x15xf32, #tpu.memory_space<vmem>>, vector<1x8x8xf32>
    %543 = vector.shape_cast %542 : vector<1x8x8xf32> to vector<8x8xf32>
    %c48 = arith.constant 48 : index
    %544 = memref.load %arg1[%c48] : memref<330xf32, #tpu.memory_space<smem>>
    %545 = vector.broadcast %544 : f32 to vector<8x8xf32>
    %546 = arith.mulf %545, %543 : vector<8x8xf32>
    %547 = arith.addf %537, %546 : vector<8x8xf32>
    %c213 = arith.constant 213 : index
    %548 = memref.load %arg1[%c213] : memref<330xf32, #tpu.memory_space<smem>>
    %549 = vector.broadcast %548 : f32 to vector<8x8xf32>
    %550 = arith.mulf %549, %543 : vector<8x8xf32>
    %551 = arith.addf %541, %550 : vector<8x8xf32>
    %c3_166 = arith.constant 3 : index
    %c0_167 = arith.constant 0 : index
    %c2_168 = arith.constant 2 : index
    %552 = vector.load %arg4[%c3_166, %c0_167, %c2_168] : memref<11x8x15xf32, #tpu.memory_space<vmem>>, vector<1x8x8xf32>
    %553 = vector.shape_cast %552 : vector<1x8x8xf32> to vector<8x8xf32>
    %c50 = arith.constant 50 : index
    %554 = memref.load %arg1[%c50] : memref<330xf32, #tpu.memory_space<smem>>
    %555 = vector.broadcast %554 : f32 to vector<8x8xf32>
    %556 = arith.mulf %555, %553 : vector<8x8xf32>
    %557 = arith.addf %547, %556 : vector<8x8xf32>
    %c215 = arith.constant 215 : index
    %558 = memref.load %arg1[%c215] : memref<330xf32, #tpu.memory_space<smem>>
    %559 = vector.broadcast %558 : f32 to vector<8x8xf32>
    %560 = arith.mulf %559, %553 : vector<8x8xf32>
    %561 = arith.addf %551, %560 : vector<8x8xf32>
    %c3_169 = arith.constant 3 : index
    %c0_170 = arith.constant 0 : index
    %c3_171 = arith.constant 3 : index
    %562 = vector.load %arg4[%c3_169, %c0_170, %c3_171] : memref<11x8x15xf32, #tpu.memory_space<vmem>>, vector<1x8x8xf32>
    %563 = vector.shape_cast %562 : vector<1x8x8xf32> to vector<8x8xf32>
    %c52 = arith.constant 52 : index
    %564 = memref.load %arg1[%c52] : memref<330xf32, #tpu.memory_space<smem>>
    %565 = vector.broadcast %564 : f32 to vector<8x8xf32>
    %566 = arith.mulf %565, %563 : vector<8x8xf32>
    %567 = arith.addf %557, %566 : vector<8x8xf32>
    %c217 = arith.constant 217 : index
    %568 = memref.load %arg1[%c217] : memref<330xf32, #tpu.memory_space<smem>>
    %569 = vector.broadcast %568 : f32 to vector<8x8xf32>
    %570 = arith.mulf %569, %563 : vector<8x8xf32>
    %571 = arith.addf %561, %570 : vector<8x8xf32>
    %c3_172 = arith.constant 3 : index
    %c0_173 = arith.constant 0 : index
    %c4_174 = arith.constant 4 : index
    %572 = vector.load %arg4[%c3_172, %c0_173, %c4_174] : memref<11x8x15xf32, #tpu.memory_space<vmem>>, vector<1x8x8xf32>
    %573 = vector.shape_cast %572 : vector<1x8x8xf32> to vector<8x8xf32>
    %c54 = arith.constant 54 : index
    %574 = memref.load %arg1[%c54] : memref<330xf32, #tpu.memory_space<smem>>
    %575 = vector.broadcast %574 : f32 to vector<8x8xf32>
    %576 = arith.mulf %575, %573 : vector<8x8xf32>
    %577 = arith.addf %567, %576 : vector<8x8xf32>
    %c219 = arith.constant 219 : index
    %578 = memref.load %arg1[%c219] : memref<330xf32, #tpu.memory_space<smem>>
    %579 = vector.broadcast %578 : f32 to vector<8x8xf32>
    %580 = arith.mulf %579, %573 : vector<8x8xf32>
    %581 = arith.addf %571, %580 : vector<8x8xf32>
    %c3_175 = arith.constant 3 : index
    %c0_176 = arith.constant 0 : index
    %c5_177 = arith.constant 5 : index
    %582 = vector.load %arg4[%c3_175, %c0_176, %c5_177] : memref<11x8x15xf32, #tpu.memory_space<vmem>>, vector<1x8x8xf32>
    %583 = vector.shape_cast %582 : vector<1x8x8xf32> to vector<8x8xf32>
    %c56 = arith.constant 56 : index
    %584 = memref.load %arg1[%c56] : memref<330xf32, #tpu.memory_space<smem>>
    %585 = vector.broadcast %584 : f32 to vector<8x8xf32>
    %586 = arith.mulf %585, %583 : vector<8x8xf32>
    %587 = arith.addf %577, %586 : vector<8x8xf32>
    %c221 = arith.constant 221 : index
    %588 = memref.load %arg1[%c221] : memref<330xf32, #tpu.memory_space<smem>>
    %589 = vector.broadcast %588 : f32 to vector<8x8xf32>
    %590 = arith.mulf %589, %583 : vector<8x8xf32>
    %591 = arith.addf %581, %590 : vector<8x8xf32>
    %c3_178 = arith.constant 3 : index
    %c0_179 = arith.constant 0 : index
    %c6_180 = arith.constant 6 : index
    %592 = vector.load %arg4[%c3_178, %c0_179, %c6_180] : memref<11x8x15xf32, #tpu.memory_space<vmem>>, vector<1x8x8xf32>
    %593 = vector.shape_cast %592 : vector<1x8x8xf32> to vector<8x8xf32>
    %c58 = arith.constant 58 : index
    %594 = memref.load %arg1[%c58] : memref<330xf32, #tpu.memory_space<smem>>
    %595 = vector.broadcast %594 : f32 to vector<8x8xf32>
    %596 = arith.mulf %595, %593 : vector<8x8xf32>
    %597 = arith.addf %587, %596 : vector<8x8xf32>
    %c223 = arith.constant 223 : index
    %598 = memref.load %arg1[%c223] : memref<330xf32, #tpu.memory_space<smem>>
    %599 = vector.broadcast %598 : f32 to vector<8x8xf32>
    %600 = arith.mulf %599, %593 : vector<8x8xf32>
    %601 = arith.addf %591, %600 : vector<8x8xf32>
    %c4_181 = arith.constant 4 : index
    %c0_182 = arith.constant 0 : index
    %c0_183 = arith.constant 0 : index
    %602 = vector.load %arg3[%c4_181, %c0_182, %c0_183] : memref<11x8x15xf32, #tpu.memory_space<vmem>>, vector<1x8x8xf32>
    %603 = vector.shape_cast %602 : vector<1x8x8xf32> to vector<8x8xf32>
    %c60 = arith.constant 60 : index
    %604 = memref.load %arg1[%c60] : memref<330xf32, #tpu.memory_space<smem>>
    %605 = vector.broadcast %604 : f32 to vector<8x8xf32>
    %606 = arith.mulf %605, %603 : vector<8x8xf32>
    %607 = arith.addf %597, %606 : vector<8x8xf32>
    %c225 = arith.constant 225 : index
    %608 = memref.load %arg1[%c225] : memref<330xf32, #tpu.memory_space<smem>>
    %609 = vector.broadcast %608 : f32 to vector<8x8xf32>
    %610 = arith.mulf %609, %603 : vector<8x8xf32>
    %611 = arith.addf %601, %610 : vector<8x8xf32>
    %c4_184 = arith.constant 4 : index
    %c0_185 = arith.constant 0 : index
    %c1_186 = arith.constant 1 : index
    %612 = vector.load %arg3[%c4_184, %c0_185, %c1_186] : memref<11x8x15xf32, #tpu.memory_space<vmem>>, vector<1x8x8xf32>
    %613 = vector.shape_cast %612 : vector<1x8x8xf32> to vector<8x8xf32>
    %c62 = arith.constant 62 : index
    %614 = memref.load %arg1[%c62] : memref<330xf32, #tpu.memory_space<smem>>
    %615 = vector.broadcast %614 : f32 to vector<8x8xf32>
    %616 = arith.mulf %615, %613 : vector<8x8xf32>
    %617 = arith.addf %607, %616 : vector<8x8xf32>
    %c227 = arith.constant 227 : index
    %618 = memref.load %arg1[%c227] : memref<330xf32, #tpu.memory_space<smem>>
    %619 = vector.broadcast %618 : f32 to vector<8x8xf32>
    %620 = arith.mulf %619, %613 : vector<8x8xf32>
    %621 = arith.addf %611, %620 : vector<8x8xf32>
    %c4_187 = arith.constant 4 : index
    %c0_188 = arith.constant 0 : index
    %c2_189 = arith.constant 2 : index
    %622 = vector.load %arg3[%c4_187, %c0_188, %c2_189] : memref<11x8x15xf32, #tpu.memory_space<vmem>>, vector<1x8x8xf32>
    %623 = vector.shape_cast %622 : vector<1x8x8xf32> to vector<8x8xf32>
    %c64 = arith.constant 64 : index
    %624 = memref.load %arg1[%c64] : memref<330xf32, #tpu.memory_space<smem>>
    %625 = vector.broadcast %624 : f32 to vector<8x8xf32>
    %626 = arith.mulf %625, %623 : vector<8x8xf32>
    %627 = arith.addf %617, %626 : vector<8x8xf32>
    %c229 = arith.constant 229 : index
    %628 = memref.load %arg1[%c229] : memref<330xf32, #tpu.memory_space<smem>>
    %629 = vector.broadcast %628 : f32 to vector<8x8xf32>
    %630 = arith.mulf %629, %623 : vector<8x8xf32>
    %631 = arith.addf %621, %630 : vector<8x8xf32>
    %c4_190 = arith.constant 4 : index
    %c0_191 = arith.constant 0 : index
    %c3_192 = arith.constant 3 : index
    %632 = vector.load %arg3[%c4_190, %c0_191, %c3_192] : memref<11x8x15xf32, #tpu.memory_space<vmem>>, vector<1x8x8xf32>
    %633 = vector.shape_cast %632 : vector<1x8x8xf32> to vector<8x8xf32>
    %c66 = arith.constant 66 : index
    %634 = memref.load %arg1[%c66] : memref<330xf32, #tpu.memory_space<smem>>
    %635 = vector.broadcast %634 : f32 to vector<8x8xf32>
    %636 = arith.mulf %635, %633 : vector<8x8xf32>
    %637 = arith.addf %627, %636 : vector<8x8xf32>
    %c231 = arith.constant 231 : index
    %638 = memref.load %arg1[%c231] : memref<330xf32, #tpu.memory_space<smem>>
    %639 = vector.broadcast %638 : f32 to vector<8x8xf32>
    %640 = arith.mulf %639, %633 : vector<8x8xf32>
    %641 = arith.addf %631, %640 : vector<8x8xf32>
    %c4_193 = arith.constant 4 : index
    %c0_194 = arith.constant 0 : index
    %c4_195 = arith.constant 4 : index
    %642 = vector.load %arg3[%c4_193, %c0_194, %c4_195] : memref<11x8x15xf32, #tpu.memory_space<vmem>>, vector<1x8x8xf32>
    %643 = vector.shape_cast %642 : vector<1x8x8xf32> to vector<8x8xf32>
    %c68 = arith.constant 68 : index
    %644 = memref.load %arg1[%c68] : memref<330xf32, #tpu.memory_space<smem>>
    %645 = vector.broadcast %644 : f32 to vector<8x8xf32>
    %646 = arith.mulf %645, %643 : vector<8x8xf32>
    %647 = arith.addf %637, %646 : vector<8x8xf32>
    %c233 = arith.constant 233 : index
    %648 = memref.load %arg1[%c233] : memref<330xf32, #tpu.memory_space<smem>>
    %649 = vector.broadcast %648 : f32 to vector<8x8xf32>
    %650 = arith.mulf %649, %643 : vector<8x8xf32>
    %651 = arith.addf %641, %650 : vector<8x8xf32>
    %c4_196 = arith.constant 4 : index
    %c0_197 = arith.constant 0 : index
    %c5_198 = arith.constant 5 : index
    %652 = vector.load %arg3[%c4_196, %c0_197, %c5_198] : memref<11x8x15xf32, #tpu.memory_space<vmem>>, vector<1x8x8xf32>
    %653 = vector.shape_cast %652 : vector<1x8x8xf32> to vector<8x8xf32>
    %c70 = arith.constant 70 : index
    %654 = memref.load %arg1[%c70] : memref<330xf32, #tpu.memory_space<smem>>
    %655 = vector.broadcast %654 : f32 to vector<8x8xf32>
    %656 = arith.mulf %655, %653 : vector<8x8xf32>
    %657 = arith.addf %647, %656 : vector<8x8xf32>
    %c235 = arith.constant 235 : index
    %658 = memref.load %arg1[%c235] : memref<330xf32, #tpu.memory_space<smem>>
    %659 = vector.broadcast %658 : f32 to vector<8x8xf32>
    %660 = arith.mulf %659, %653 : vector<8x8xf32>
    %661 = arith.addf %651, %660 : vector<8x8xf32>
    %c4_199 = arith.constant 4 : index
    %c0_200 = arith.constant 0 : index
    %c6_201 = arith.constant 6 : index
    %662 = vector.load %arg3[%c4_199, %c0_200, %c6_201] : memref<11x8x15xf32, #tpu.memory_space<vmem>>, vector<1x8x8xf32>
    %663 = vector.shape_cast %662 : vector<1x8x8xf32> to vector<8x8xf32>
    %c72 = arith.constant 72 : index
    %664 = memref.load %arg1[%c72] : memref<330xf32, #tpu.memory_space<smem>>
    %665 = vector.broadcast %664 : f32 to vector<8x8xf32>
    %666 = arith.mulf %665, %663 : vector<8x8xf32>
    %667 = arith.addf %657, %666 : vector<8x8xf32>
    %c237 = arith.constant 237 : index
    %668 = memref.load %arg1[%c237] : memref<330xf32, #tpu.memory_space<smem>>
    %669 = vector.broadcast %668 : f32 to vector<8x8xf32>
    %670 = arith.mulf %669, %663 : vector<8x8xf32>
    %671 = arith.addf %661, %670 : vector<8x8xf32>
    %c4_202 = arith.constant 4 : index
    %c0_203 = arith.constant 0 : index
    %c7_204 = arith.constant 7 : index
    %672 = vector.load %arg3[%c4_202, %c0_203, %c7_204] : memref<11x8x15xf32, #tpu.memory_space<vmem>>, vector<1x8x8xf32>
    %673 = vector.shape_cast %672 : vector<1x8x8xf32> to vector<8x8xf32>
    %c74 = arith.constant 74 : index
    %674 = memref.load %arg1[%c74] : memref<330xf32, #tpu.memory_space<smem>>
    %675 = vector.broadcast %674 : f32 to vector<8x8xf32>
    %676 = arith.mulf %675, %673 : vector<8x8xf32>
    %677 = arith.addf %667, %676 : vector<8x8xf32>
    %c239 = arith.constant 239 : index
    %678 = memref.load %arg1[%c239] : memref<330xf32, #tpu.memory_space<smem>>
    %679 = vector.broadcast %678 : f32 to vector<8x8xf32>
    %680 = arith.mulf %679, %673 : vector<8x8xf32>
    %681 = arith.addf %671, %680 : vector<8x8xf32>
    %c4_205 = arith.constant 4 : index
    %c0_206 = arith.constant 0 : index
    %c0_207 = arith.constant 0 : index
    %682 = vector.load %arg4[%c4_205, %c0_206, %c0_207] : memref<11x8x15xf32, #tpu.memory_space<vmem>>, vector<1x8x8xf32>
    %683 = vector.shape_cast %682 : vector<1x8x8xf32> to vector<8x8xf32>
    %c61 = arith.constant 61 : index
    %684 = memref.load %arg1[%c61] : memref<330xf32, #tpu.memory_space<smem>>
    %685 = vector.broadcast %684 : f32 to vector<8x8xf32>
    %686 = arith.mulf %685, %683 : vector<8x8xf32>
    %687 = arith.addf %677, %686 : vector<8x8xf32>
    %c226 = arith.constant 226 : index
    %688 = memref.load %arg1[%c226] : memref<330xf32, #tpu.memory_space<smem>>
    %689 = vector.broadcast %688 : f32 to vector<8x8xf32>
    %690 = arith.mulf %689, %683 : vector<8x8xf32>
    %691 = arith.addf %681, %690 : vector<8x8xf32>
    %c4_208 = arith.constant 4 : index
    %c0_209 = arith.constant 0 : index
    %c1_210 = arith.constant 1 : index
    %692 = vector.load %arg4[%c4_208, %c0_209, %c1_210] : memref<11x8x15xf32, #tpu.memory_space<vmem>>, vector<1x8x8xf32>
    %693 = vector.shape_cast %692 : vector<1x8x8xf32> to vector<8x8xf32>
    %c63 = arith.constant 63 : index
    %694 = memref.load %arg1[%c63] : memref<330xf32, #tpu.memory_space<smem>>
    %695 = vector.broadcast %694 : f32 to vector<8x8xf32>
    %696 = arith.mulf %695, %693 : vector<8x8xf32>
    %697 = arith.addf %687, %696 : vector<8x8xf32>
    %c228 = arith.constant 228 : index
    %698 = memref.load %arg1[%c228] : memref<330xf32, #tpu.memory_space<smem>>
    %699 = vector.broadcast %698 : f32 to vector<8x8xf32>
    %700 = arith.mulf %699, %693 : vector<8x8xf32>
    %701 = arith.addf %691, %700 : vector<8x8xf32>
    %c4_211 = arith.constant 4 : index
    %c0_212 = arith.constant 0 : index
    %c2_213 = arith.constant 2 : index
    %702 = vector.load %arg4[%c4_211, %c0_212, %c2_213] : memref<11x8x15xf32, #tpu.memory_space<vmem>>, vector<1x8x8xf32>
    %703 = vector.shape_cast %702 : vector<1x8x8xf32> to vector<8x8xf32>
    %c65 = arith.constant 65 : index
    %704 = memref.load %arg1[%c65] : memref<330xf32, #tpu.memory_space<smem>>
    %705 = vector.broadcast %704 : f32 to vector<8x8xf32>
    %706 = arith.mulf %705, %703 : vector<8x8xf32>
    %707 = arith.addf %697, %706 : vector<8x8xf32>
    %c230 = arith.constant 230 : index
    %708 = memref.load %arg1[%c230] : memref<330xf32, #tpu.memory_space<smem>>
    %709 = vector.broadcast %708 : f32 to vector<8x8xf32>
    %710 = arith.mulf %709, %703 : vector<8x8xf32>
    %711 = arith.addf %701, %710 : vector<8x8xf32>
    %c4_214 = arith.constant 4 : index
    %c0_215 = arith.constant 0 : index
    %c3_216 = arith.constant 3 : index
    %712 = vector.load %arg4[%c4_214, %c0_215, %c3_216] : memref<11x8x15xf32, #tpu.memory_space<vmem>>, vector<1x8x8xf32>
    %713 = vector.shape_cast %712 : vector<1x8x8xf32> to vector<8x8xf32>
    %c67 = arith.constant 67 : index
    %714 = memref.load %arg1[%c67] : memref<330xf32, #tpu.memory_space<smem>>
    %715 = vector.broadcast %714 : f32 to vector<8x8xf32>
    %716 = arith.mulf %715, %713 : vector<8x8xf32>
    %717 = arith.addf %707, %716 : vector<8x8xf32>
    %c232 = arith.constant 232 : index
    %718 = memref.load %arg1[%c232] : memref<330xf32, #tpu.memory_space<smem>>
    %719 = vector.broadcast %718 : f32 to vector<8x8xf32>
    %720 = arith.mulf %719, %713 : vector<8x8xf32>
    %721 = arith.addf %711, %720 : vector<8x8xf32>
    %c4_217 = arith.constant 4 : index
    %c0_218 = arith.constant 0 : index
    %c4_219 = arith.constant 4 : index
    %722 = vector.load %arg4[%c4_217, %c0_218, %c4_219] : memref<11x8x15xf32, #tpu.memory_space<vmem>>, vector<1x8x8xf32>
    %723 = vector.shape_cast %722 : vector<1x8x8xf32> to vector<8x8xf32>
    %c69 = arith.constant 69 : index
    %724 = memref.load %arg1[%c69] : memref<330xf32, #tpu.memory_space<smem>>
    %725 = vector.broadcast %724 : f32 to vector<8x8xf32>
    %726 = arith.mulf %725, %723 : vector<8x8xf32>
    %727 = arith.addf %717, %726 : vector<8x8xf32>
    %c234 = arith.constant 234 : index
    %728 = memref.load %arg1[%c234] : memref<330xf32, #tpu.memory_space<smem>>
    %729 = vector.broadcast %728 : f32 to vector<8x8xf32>
    %730 = arith.mulf %729, %723 : vector<8x8xf32>
    %731 = arith.addf %721, %730 : vector<8x8xf32>
    %c4_220 = arith.constant 4 : index
    %c0_221 = arith.constant 0 : index
    %c5_222 = arith.constant 5 : index
    %732 = vector.load %arg4[%c4_220, %c0_221, %c5_222] : memref<11x8x15xf32, #tpu.memory_space<vmem>>, vector<1x8x8xf32>
    %733 = vector.shape_cast %732 : vector<1x8x8xf32> to vector<8x8xf32>
    %c71 = arith.constant 71 : index
    %734 = memref.load %arg1[%c71] : memref<330xf32, #tpu.memory_space<smem>>
    %735 = vector.broadcast %734 : f32 to vector<8x8xf32>
    %736 = arith.mulf %735, %733 : vector<8x8xf32>
    %737 = arith.addf %727, %736 : vector<8x8xf32>
    %c236 = arith.constant 236 : index
    %738 = memref.load %arg1[%c236] : memref<330xf32, #tpu.memory_space<smem>>
    %739 = vector.broadcast %738 : f32 to vector<8x8xf32>
    %740 = arith.mulf %739, %733 : vector<8x8xf32>
    %741 = arith.addf %731, %740 : vector<8x8xf32>
    %c4_223 = arith.constant 4 : index
    %c0_224 = arith.constant 0 : index
    %c6_225 = arith.constant 6 : index
    %742 = vector.load %arg4[%c4_223, %c0_224, %c6_225] : memref<11x8x15xf32, #tpu.memory_space<vmem>>, vector<1x8x8xf32>
    %743 = vector.shape_cast %742 : vector<1x8x8xf32> to vector<8x8xf32>
    %c73 = arith.constant 73 : index
    %744 = memref.load %arg1[%c73] : memref<330xf32, #tpu.memory_space<smem>>
    %745 = vector.broadcast %744 : f32 to vector<8x8xf32>
    %746 = arith.mulf %745, %743 : vector<8x8xf32>
    %747 = arith.addf %737, %746 : vector<8x8xf32>
    %c238 = arith.constant 238 : index
    %748 = memref.load %arg1[%c238] : memref<330xf32, #tpu.memory_space<smem>>
    %749 = vector.broadcast %748 : f32 to vector<8x8xf32>
    %750 = arith.mulf %749, %743 : vector<8x8xf32>
    %751 = arith.addf %741, %750 : vector<8x8xf32>
    %c5_226 = arith.constant 5 : index
    %c0_227 = arith.constant 0 : index
    %c0_228 = arith.constant 0 : index
    %752 = vector.load %arg3[%c5_226, %c0_227, %c0_228] : memref<11x8x15xf32, #tpu.memory_space<vmem>>, vector<1x8x8xf32>
    %753 = vector.shape_cast %752 : vector<1x8x8xf32> to vector<8x8xf32>
    %c75 = arith.constant 75 : index
    %754 = memref.load %arg1[%c75] : memref<330xf32, #tpu.memory_space<smem>>
    %755 = vector.broadcast %754 : f32 to vector<8x8xf32>
    %756 = arith.mulf %755, %753 : vector<8x8xf32>
    %757 = arith.addf %747, %756 : vector<8x8xf32>
    %c240 = arith.constant 240 : index
    %758 = memref.load %arg1[%c240] : memref<330xf32, #tpu.memory_space<smem>>
    %759 = vector.broadcast %758 : f32 to vector<8x8xf32>
    %760 = arith.mulf %759, %753 : vector<8x8xf32>
    %761 = arith.addf %751, %760 : vector<8x8xf32>
    %c5_229 = arith.constant 5 : index
    %c0_230 = arith.constant 0 : index
    %c1_231 = arith.constant 1 : index
    %762 = vector.load %arg3[%c5_229, %c0_230, %c1_231] : memref<11x8x15xf32, #tpu.memory_space<vmem>>, vector<1x8x8xf32>
    %763 = vector.shape_cast %762 : vector<1x8x8xf32> to vector<8x8xf32>
    %c77 = arith.constant 77 : index
    %764 = memref.load %arg1[%c77] : memref<330xf32, #tpu.memory_space<smem>>
    %765 = vector.broadcast %764 : f32 to vector<8x8xf32>
    %766 = arith.mulf %765, %763 : vector<8x8xf32>
    %767 = arith.addf %757, %766 : vector<8x8xf32>
    %c242 = arith.constant 242 : index
    %768 = memref.load %arg1[%c242] : memref<330xf32, #tpu.memory_space<smem>>
    %769 = vector.broadcast %768 : f32 to vector<8x8xf32>
    %770 = arith.mulf %769, %763 : vector<8x8xf32>
    %771 = arith.addf %761, %770 : vector<8x8xf32>
    %c5_232 = arith.constant 5 : index
    %c0_233 = arith.constant 0 : index
    %c2_234 = arith.constant 2 : index
    %772 = vector.load %arg3[%c5_232, %c0_233, %c2_234] : memref<11x8x15xf32, #tpu.memory_space<vmem>>, vector<1x8x8xf32>
    %773 = vector.shape_cast %772 : vector<1x8x8xf32> to vector<8x8xf32>
    %c79 = arith.constant 79 : index
    %774 = memref.load %arg1[%c79] : memref<330xf32, #tpu.memory_space<smem>>
    %775 = vector.broadcast %774 : f32 to vector<8x8xf32>
    %776 = arith.mulf %775, %773 : vector<8x8xf32>
    %777 = arith.addf %767, %776 : vector<8x8xf32>
    %c244 = arith.constant 244 : index
    %778 = memref.load %arg1[%c244] : memref<330xf32, #tpu.memory_space<smem>>
    %779 = vector.broadcast %778 : f32 to vector<8x8xf32>
    %780 = arith.mulf %779, %773 : vector<8x8xf32>
    %781 = arith.addf %771, %780 : vector<8x8xf32>
    %c5_235 = arith.constant 5 : index
    %c0_236 = arith.constant 0 : index
    %c3_237 = arith.constant 3 : index
    %782 = vector.load %arg3[%c5_235, %c0_236, %c3_237] : memref<11x8x15xf32, #tpu.memory_space<vmem>>, vector<1x8x8xf32>
    %783 = vector.shape_cast %782 : vector<1x8x8xf32> to vector<8x8xf32>
    %c81 = arith.constant 81 : index
    %784 = memref.load %arg1[%c81] : memref<330xf32, #tpu.memory_space<smem>>
    %785 = vector.broadcast %784 : f32 to vector<8x8xf32>
    %786 = arith.mulf %785, %783 : vector<8x8xf32>
    %787 = arith.addf %777, %786 : vector<8x8xf32>
    %c246 = arith.constant 246 : index
    %788 = memref.load %arg1[%c246] : memref<330xf32, #tpu.memory_space<smem>>
    %789 = vector.broadcast %788 : f32 to vector<8x8xf32>
    %790 = arith.mulf %789, %783 : vector<8x8xf32>
    %791 = arith.addf %781, %790 : vector<8x8xf32>
    %c5_238 = arith.constant 5 : index
    %c0_239 = arith.constant 0 : index
    %c4_240 = arith.constant 4 : index
    %792 = vector.load %arg3[%c5_238, %c0_239, %c4_240] : memref<11x8x15xf32, #tpu.memory_space<vmem>>, vector<1x8x8xf32>
    %793 = vector.shape_cast %792 : vector<1x8x8xf32> to vector<8x8xf32>
    %c83 = arith.constant 83 : index
    %794 = memref.load %arg1[%c83] : memref<330xf32, #tpu.memory_space<smem>>
    %795 = vector.broadcast %794 : f32 to vector<8x8xf32>
    %796 = arith.mulf %795, %793 : vector<8x8xf32>
    %797 = arith.addf %787, %796 : vector<8x8xf32>
    %c248 = arith.constant 248 : index
    %798 = memref.load %arg1[%c248] : memref<330xf32, #tpu.memory_space<smem>>
    %799 = vector.broadcast %798 : f32 to vector<8x8xf32>
    %800 = arith.mulf %799, %793 : vector<8x8xf32>
    %801 = arith.addf %791, %800 : vector<8x8xf32>
    %c5_241 = arith.constant 5 : index
    %c0_242 = arith.constant 0 : index
    %c5_243 = arith.constant 5 : index
    %802 = vector.load %arg3[%c5_241, %c0_242, %c5_243] : memref<11x8x15xf32, #tpu.memory_space<vmem>>, vector<1x8x8xf32>
    %803 = vector.shape_cast %802 : vector<1x8x8xf32> to vector<8x8xf32>
    %c85 = arith.constant 85 : index
    %804 = memref.load %arg1[%c85] : memref<330xf32, #tpu.memory_space<smem>>
    %805 = vector.broadcast %804 : f32 to vector<8x8xf32>
    %806 = arith.mulf %805, %803 : vector<8x8xf32>
    %807 = arith.addf %797, %806 : vector<8x8xf32>
    %c250 = arith.constant 250 : index
    %808 = memref.load %arg1[%c250] : memref<330xf32, #tpu.memory_space<smem>>
    %809 = vector.broadcast %808 : f32 to vector<8x8xf32>
    %810 = arith.mulf %809, %803 : vector<8x8xf32>
    %811 = arith.addf %801, %810 : vector<8x8xf32>
    %c5_244 = arith.constant 5 : index
    %c0_245 = arith.constant 0 : index
    %c6_246 = arith.constant 6 : index
    %812 = vector.load %arg3[%c5_244, %c0_245, %c6_246] : memref<11x8x15xf32, #tpu.memory_space<vmem>>, vector<1x8x8xf32>
    %813 = vector.shape_cast %812 : vector<1x8x8xf32> to vector<8x8xf32>
    %c87 = arith.constant 87 : index
    %814 = memref.load %arg1[%c87] : memref<330xf32, #tpu.memory_space<smem>>
    %815 = vector.broadcast %814 : f32 to vector<8x8xf32>
    %816 = arith.mulf %815, %813 : vector<8x8xf32>
    %817 = arith.addf %807, %816 : vector<8x8xf32>
    %c252 = arith.constant 252 : index
    %818 = memref.load %arg1[%c252] : memref<330xf32, #tpu.memory_space<smem>>
    %819 = vector.broadcast %818 : f32 to vector<8x8xf32>
    %820 = arith.mulf %819, %813 : vector<8x8xf32>
    %821 = arith.addf %811, %820 : vector<8x8xf32>
    %c5_247 = arith.constant 5 : index
    %c0_248 = arith.constant 0 : index
    %c7_249 = arith.constant 7 : index
    %822 = vector.load %arg3[%c5_247, %c0_248, %c7_249] : memref<11x8x15xf32, #tpu.memory_space<vmem>>, vector<1x8x8xf32>
    %823 = vector.shape_cast %822 : vector<1x8x8xf32> to vector<8x8xf32>
    %c89 = arith.constant 89 : index
    %824 = memref.load %arg1[%c89] : memref<330xf32, #tpu.memory_space<smem>>
    %825 = vector.broadcast %824 : f32 to vector<8x8xf32>
    %826 = arith.mulf %825, %823 : vector<8x8xf32>
    %827 = arith.addf %817, %826 : vector<8x8xf32>
    %c254 = arith.constant 254 : index
    %828 = memref.load %arg1[%c254] : memref<330xf32, #tpu.memory_space<smem>>
    %829 = vector.broadcast %828 : f32 to vector<8x8xf32>
    %830 = arith.mulf %829, %823 : vector<8x8xf32>
    %831 = arith.addf %821, %830 : vector<8x8xf32>
    %c5_250 = arith.constant 5 : index
    %c0_251 = arith.constant 0 : index
    %c0_252 = arith.constant 0 : index
    %832 = vector.load %arg4[%c5_250, %c0_251, %c0_252] : memref<11x8x15xf32, #tpu.memory_space<vmem>>, vector<1x8x8xf32>
    %833 = vector.shape_cast %832 : vector<1x8x8xf32> to vector<8x8xf32>
    %c76 = arith.constant 76 : index
    %834 = memref.load %arg1[%c76] : memref<330xf32, #tpu.memory_space<smem>>
    %835 = vector.broadcast %834 : f32 to vector<8x8xf32>
    %836 = arith.mulf %835, %833 : vector<8x8xf32>
    %837 = arith.addf %827, %836 : vector<8x8xf32>
    %c241 = arith.constant 241 : index
    %838 = memref.load %arg1[%c241] : memref<330xf32, #tpu.memory_space<smem>>
    %839 = vector.broadcast %838 : f32 to vector<8x8xf32>
    %840 = arith.mulf %839, %833 : vector<8x8xf32>
    %841 = arith.addf %831, %840 : vector<8x8xf32>
    %c5_253 = arith.constant 5 : index
    %c0_254 = arith.constant 0 : index
    %c1_255 = arith.constant 1 : index
    %842 = vector.load %arg4[%c5_253, %c0_254, %c1_255] : memref<11x8x15xf32, #tpu.memory_space<vmem>>, vector<1x8x8xf32>
    %843 = vector.shape_cast %842 : vector<1x8x8xf32> to vector<8x8xf32>
    %c78 = arith.constant 78 : index
    %844 = memref.load %arg1[%c78] : memref<330xf32, #tpu.memory_space<smem>>
    %845 = vector.broadcast %844 : f32 to vector<8x8xf32>
    %846 = arith.mulf %845, %843 : vector<8x8xf32>
    %847 = arith.addf %837, %846 : vector<8x8xf32>
    %c243 = arith.constant 243 : index
    %848 = memref.load %arg1[%c243] : memref<330xf32, #tpu.memory_space<smem>>
    %849 = vector.broadcast %848 : f32 to vector<8x8xf32>
    %850 = arith.mulf %849, %843 : vector<8x8xf32>
    %851 = arith.addf %841, %850 : vector<8x8xf32>
    %c5_256 = arith.constant 5 : index
    %c0_257 = arith.constant 0 : index
    %c2_258 = arith.constant 2 : index
    %852 = vector.load %arg4[%c5_256, %c0_257, %c2_258] : memref<11x8x15xf32, #tpu.memory_space<vmem>>, vector<1x8x8xf32>
    %853 = vector.shape_cast %852 : vector<1x8x8xf32> to vector<8x8xf32>
    %c80 = arith.constant 80 : index
    %854 = memref.load %arg1[%c80] : memref<330xf32, #tpu.memory_space<smem>>
    %855 = vector.broadcast %854 : f32 to vector<8x8xf32>
    %856 = arith.mulf %855, %853 : vector<8x8xf32>
    %857 = arith.addf %847, %856 : vector<8x8xf32>
    %c245 = arith.constant 245 : index
    %858 = memref.load %arg1[%c245] : memref<330xf32, #tpu.memory_space<smem>>
    %859 = vector.broadcast %858 : f32 to vector<8x8xf32>
    %860 = arith.mulf %859, %853 : vector<8x8xf32>
    %861 = arith.addf %851, %860 : vector<8x8xf32>
    %c5_259 = arith.constant 5 : index
    %c0_260 = arith.constant 0 : index
    %c3_261 = arith.constant 3 : index
    %862 = vector.load %arg4[%c5_259, %c0_260, %c3_261] : memref<11x8x15xf32, #tpu.memory_space<vmem>>, vector<1x8x8xf32>
    %863 = vector.shape_cast %862 : vector<1x8x8xf32> to vector<8x8xf32>
    %c82 = arith.constant 82 : index
    %864 = memref.load %arg1[%c82] : memref<330xf32, #tpu.memory_space<smem>>
    %865 = vector.broadcast %864 : f32 to vector<8x8xf32>
    %866 = arith.mulf %865, %863 : vector<8x8xf32>
    %867 = arith.addf %857, %866 : vector<8x8xf32>
    %c247 = arith.constant 247 : index
    %868 = memref.load %arg1[%c247] : memref<330xf32, #tpu.memory_space<smem>>
    %869 = vector.broadcast %868 : f32 to vector<8x8xf32>
    %870 = arith.mulf %869, %863 : vector<8x8xf32>
    %871 = arith.addf %861, %870 : vector<8x8xf32>
    %c5_262 = arith.constant 5 : index
    %c0_263 = arith.constant 0 : index
    %c4_264 = arith.constant 4 : index
    %872 = vector.load %arg4[%c5_262, %c0_263, %c4_264] : memref<11x8x15xf32, #tpu.memory_space<vmem>>, vector<1x8x8xf32>
    %873 = vector.shape_cast %872 : vector<1x8x8xf32> to vector<8x8xf32>
    %c84 = arith.constant 84 : index
    %874 = memref.load %arg1[%c84] : memref<330xf32, #tpu.memory_space<smem>>
    %875 = vector.broadcast %874 : f32 to vector<8x8xf32>
    %876 = arith.mulf %875, %873 : vector<8x8xf32>
    %877 = arith.addf %867, %876 : vector<8x8xf32>
    %c249 = arith.constant 249 : index
    %878 = memref.load %arg1[%c249] : memref<330xf32, #tpu.memory_space<smem>>
    %879 = vector.broadcast %878 : f32 to vector<8x8xf32>
    %880 = arith.mulf %879, %873 : vector<8x8xf32>
    %881 = arith.addf %871, %880 : vector<8x8xf32>
    %c5_265 = arith.constant 5 : index
    %c0_266 = arith.constant 0 : index
    %c5_267 = arith.constant 5 : index
    %882 = vector.load %arg4[%c5_265, %c0_266, %c5_267] : memref<11x8x15xf32, #tpu.memory_space<vmem>>, vector<1x8x8xf32>
    %883 = vector.shape_cast %882 : vector<1x8x8xf32> to vector<8x8xf32>
    %c86 = arith.constant 86 : index
    %884 = memref.load %arg1[%c86] : memref<330xf32, #tpu.memory_space<smem>>
    %885 = vector.broadcast %884 : f32 to vector<8x8xf32>
    %886 = arith.mulf %885, %883 : vector<8x8xf32>
    %887 = arith.addf %877, %886 : vector<8x8xf32>
    %c251 = arith.constant 251 : index
    %888 = memref.load %arg1[%c251] : memref<330xf32, #tpu.memory_space<smem>>
    %889 = vector.broadcast %888 : f32 to vector<8x8xf32>
    %890 = arith.mulf %889, %883 : vector<8x8xf32>
    %891 = arith.addf %881, %890 : vector<8x8xf32>
    %c5_268 = arith.constant 5 : index
    %c0_269 = arith.constant 0 : index
    %c6_270 = arith.constant 6 : index
    %892 = vector.load %arg4[%c5_268, %c0_269, %c6_270] : memref<11x8x15xf32, #tpu.memory_space<vmem>>, vector<1x8x8xf32>
    %893 = vector.shape_cast %892 : vector<1x8x8xf32> to vector<8x8xf32>
    %c88 = arith.constant 88 : index
    %894 = memref.load %arg1[%c88] : memref<330xf32, #tpu.memory_space<smem>>
    %895 = vector.broadcast %894 : f32 to vector<8x8xf32>
    %896 = arith.mulf %895, %893 : vector<8x8xf32>
    %897 = arith.addf %887, %896 : vector<8x8xf32>
    %c253 = arith.constant 253 : index
    %898 = memref.load %arg1[%c253] : memref<330xf32, #tpu.memory_space<smem>>
    %899 = vector.broadcast %898 : f32 to vector<8x8xf32>
    %900 = arith.mulf %899, %893 : vector<8x8xf32>
    %901 = arith.addf %891, %900 : vector<8x8xf32>
    %c6_271 = arith.constant 6 : index
    %c0_272 = arith.constant 0 : index
    %c0_273 = arith.constant 0 : index
    %902 = vector.load %arg3[%c6_271, %c0_272, %c0_273] : memref<11x8x15xf32, #tpu.memory_space<vmem>>, vector<1x8x8xf32>
    %903 = vector.shape_cast %902 : vector<1x8x8xf32> to vector<8x8xf32>
    %c90 = arith.constant 90 : index
    %904 = memref.load %arg1[%c90] : memref<330xf32, #tpu.memory_space<smem>>
    %905 = vector.broadcast %904 : f32 to vector<8x8xf32>
    %906 = arith.mulf %905, %903 : vector<8x8xf32>
    %907 = arith.addf %897, %906 : vector<8x8xf32>
    %c255 = arith.constant 255 : index
    %908 = memref.load %arg1[%c255] : memref<330xf32, #tpu.memory_space<smem>>
    %909 = vector.broadcast %908 : f32 to vector<8x8xf32>
    %910 = arith.mulf %909, %903 : vector<8x8xf32>
    %911 = arith.addf %901, %910 : vector<8x8xf32>
    %c6_274 = arith.constant 6 : index
    %c0_275 = arith.constant 0 : index
    %c1_276 = arith.constant 1 : index
    %912 = vector.load %arg3[%c6_274, %c0_275, %c1_276] : memref<11x8x15xf32, #tpu.memory_space<vmem>>, vector<1x8x8xf32>
    %913 = vector.shape_cast %912 : vector<1x8x8xf32> to vector<8x8xf32>
    %c92 = arith.constant 92 : index
    %914 = memref.load %arg1[%c92] : memref<330xf32, #tpu.memory_space<smem>>
    %915 = vector.broadcast %914 : f32 to vector<8x8xf32>
    %916 = arith.mulf %915, %913 : vector<8x8xf32>
    %917 = arith.addf %907, %916 : vector<8x8xf32>
    %c257 = arith.constant 257 : index
    %918 = memref.load %arg1[%c257] : memref<330xf32, #tpu.memory_space<smem>>
    %919 = vector.broadcast %918 : f32 to vector<8x8xf32>
    %920 = arith.mulf %919, %913 : vector<8x8xf32>
    %921 = arith.addf %911, %920 : vector<8x8xf32>
    %c6_277 = arith.constant 6 : index
    %c0_278 = arith.constant 0 : index
    %c2_279 = arith.constant 2 : index
    %922 = vector.load %arg3[%c6_277, %c0_278, %c2_279] : memref<11x8x15xf32, #tpu.memory_space<vmem>>, vector<1x8x8xf32>
    %923 = vector.shape_cast %922 : vector<1x8x8xf32> to vector<8x8xf32>
    %c94 = arith.constant 94 : index
    %924 = memref.load %arg1[%c94] : memref<330xf32, #tpu.memory_space<smem>>
    %925 = vector.broadcast %924 : f32 to vector<8x8xf32>
    %926 = arith.mulf %925, %923 : vector<8x8xf32>
    %927 = arith.addf %917, %926 : vector<8x8xf32>
    %c259 = arith.constant 259 : index
    %928 = memref.load %arg1[%c259] : memref<330xf32, #tpu.memory_space<smem>>
    %929 = vector.broadcast %928 : f32 to vector<8x8xf32>
    %930 = arith.mulf %929, %923 : vector<8x8xf32>
    %931 = arith.addf %921, %930 : vector<8x8xf32>
    %c6_280 = arith.constant 6 : index
    %c0_281 = arith.constant 0 : index
    %c3_282 = arith.constant 3 : index
    %932 = vector.load %arg3[%c6_280, %c0_281, %c3_282] : memref<11x8x15xf32, #tpu.memory_space<vmem>>, vector<1x8x8xf32>
    %933 = vector.shape_cast %932 : vector<1x8x8xf32> to vector<8x8xf32>
    %c96 = arith.constant 96 : index
    %934 = memref.load %arg1[%c96] : memref<330xf32, #tpu.memory_space<smem>>
    %935 = vector.broadcast %934 : f32 to vector<8x8xf32>
    %936 = arith.mulf %935, %933 : vector<8x8xf32>
    %937 = arith.addf %927, %936 : vector<8x8xf32>
    %c261 = arith.constant 261 : index
    %938 = memref.load %arg1[%c261] : memref<330xf32, #tpu.memory_space<smem>>
    %939 = vector.broadcast %938 : f32 to vector<8x8xf32>
    %940 = arith.mulf %939, %933 : vector<8x8xf32>
    %941 = arith.addf %931, %940 : vector<8x8xf32>
    %c6_283 = arith.constant 6 : index
    %c0_284 = arith.constant 0 : index
    %c4_285 = arith.constant 4 : index
    %942 = vector.load %arg3[%c6_283, %c0_284, %c4_285] : memref<11x8x15xf32, #tpu.memory_space<vmem>>, vector<1x8x8xf32>
    %943 = vector.shape_cast %942 : vector<1x8x8xf32> to vector<8x8xf32>
    %c98 = arith.constant 98 : index
    %944 = memref.load %arg1[%c98] : memref<330xf32, #tpu.memory_space<smem>>
    %945 = vector.broadcast %944 : f32 to vector<8x8xf32>
    %946 = arith.mulf %945, %943 : vector<8x8xf32>
    %947 = arith.addf %937, %946 : vector<8x8xf32>
    %c263 = arith.constant 263 : index
    %948 = memref.load %arg1[%c263] : memref<330xf32, #tpu.memory_space<smem>>
    %949 = vector.broadcast %948 : f32 to vector<8x8xf32>
    %950 = arith.mulf %949, %943 : vector<8x8xf32>
    %951 = arith.addf %941, %950 : vector<8x8xf32>
    %c6_286 = arith.constant 6 : index
    %c0_287 = arith.constant 0 : index
    %c5_288 = arith.constant 5 : index
    %952 = vector.load %arg3[%c6_286, %c0_287, %c5_288] : memref<11x8x15xf32, #tpu.memory_space<vmem>>, vector<1x8x8xf32>
    %953 = vector.shape_cast %952 : vector<1x8x8xf32> to vector<8x8xf32>
    %c100 = arith.constant 100 : index
    %954 = memref.load %arg1[%c100] : memref<330xf32, #tpu.memory_space<smem>>
    %955 = vector.broadcast %954 : f32 to vector<8x8xf32>
    %956 = arith.mulf %955, %953 : vector<8x8xf32>
    %957 = arith.addf %947, %956 : vector<8x8xf32>
    %c265 = arith.constant 265 : index
    %958 = memref.load %arg1[%c265] : memref<330xf32, #tpu.memory_space<smem>>
    %959 = vector.broadcast %958 : f32 to vector<8x8xf32>
    %960 = arith.mulf %959, %953 : vector<8x8xf32>
    %961 = arith.addf %951, %960 : vector<8x8xf32>
    %c6_289 = arith.constant 6 : index
    %c0_290 = arith.constant 0 : index
    %c6_291 = arith.constant 6 : index
    %962 = vector.load %arg3[%c6_289, %c0_290, %c6_291] : memref<11x8x15xf32, #tpu.memory_space<vmem>>, vector<1x8x8xf32>
    %963 = vector.shape_cast %962 : vector<1x8x8xf32> to vector<8x8xf32>
    %c102 = arith.constant 102 : index
    %964 = memref.load %arg1[%c102] : memref<330xf32, #tpu.memory_space<smem>>
    %965 = vector.broadcast %964 : f32 to vector<8x8xf32>
    %966 = arith.mulf %965, %963 : vector<8x8xf32>
    %967 = arith.addf %957, %966 : vector<8x8xf32>
    %c267 = arith.constant 267 : index
    %968 = memref.load %arg1[%c267] : memref<330xf32, #tpu.memory_space<smem>>
    %969 = vector.broadcast %968 : f32 to vector<8x8xf32>
    %970 = arith.mulf %969, %963 : vector<8x8xf32>
    %971 = arith.addf %961, %970 : vector<8x8xf32>
    %c6_292 = arith.constant 6 : index
    %c0_293 = arith.constant 0 : index
    %c7_294 = arith.constant 7 : index
    %972 = vector.load %arg3[%c6_292, %c0_293, %c7_294] : memref<11x8x15xf32, #tpu.memory_space<vmem>>, vector<1x8x8xf32>
    %973 = vector.shape_cast %972 : vector<1x8x8xf32> to vector<8x8xf32>
    %c104 = arith.constant 104 : index
    %974 = memref.load %arg1[%c104] : memref<330xf32, #tpu.memory_space<smem>>
    %975 = vector.broadcast %974 : f32 to vector<8x8xf32>
    %976 = arith.mulf %975, %973 : vector<8x8xf32>
    %977 = arith.addf %967, %976 : vector<8x8xf32>
    %c269 = arith.constant 269 : index
    %978 = memref.load %arg1[%c269] : memref<330xf32, #tpu.memory_space<smem>>
    %979 = vector.broadcast %978 : f32 to vector<8x8xf32>
    %980 = arith.mulf %979, %973 : vector<8x8xf32>
    %981 = arith.addf %971, %980 : vector<8x8xf32>
    %c6_295 = arith.constant 6 : index
    %c0_296 = arith.constant 0 : index
    %c0_297 = arith.constant 0 : index
    %982 = vector.load %arg4[%c6_295, %c0_296, %c0_297] : memref<11x8x15xf32, #tpu.memory_space<vmem>>, vector<1x8x8xf32>
    %983 = vector.shape_cast %982 : vector<1x8x8xf32> to vector<8x8xf32>
    %c91 = arith.constant 91 : index
    %984 = memref.load %arg1[%c91] : memref<330xf32, #tpu.memory_space<smem>>
    %985 = vector.broadcast %984 : f32 to vector<8x8xf32>
    %986 = arith.mulf %985, %983 : vector<8x8xf32>
    %987 = arith.addf %977, %986 : vector<8x8xf32>
    %c256 = arith.constant 256 : index
    %988 = memref.load %arg1[%c256] : memref<330xf32, #tpu.memory_space<smem>>
    %989 = vector.broadcast %988 : f32 to vector<8x8xf32>
    %990 = arith.mulf %989, %983 : vector<8x8xf32>
    %991 = arith.addf %981, %990 : vector<8x8xf32>
    %c6_298 = arith.constant 6 : index
    %c0_299 = arith.constant 0 : index
    %c1_300 = arith.constant 1 : index
    %992 = vector.load %arg4[%c6_298, %c0_299, %c1_300] : memref<11x8x15xf32, #tpu.memory_space<vmem>>, vector<1x8x8xf32>
    %993 = vector.shape_cast %992 : vector<1x8x8xf32> to vector<8x8xf32>
    %c93 = arith.constant 93 : index
    %994 = memref.load %arg1[%c93] : memref<330xf32, #tpu.memory_space<smem>>
    %995 = vector.broadcast %994 : f32 to vector<8x8xf32>
    %996 = arith.mulf %995, %993 : vector<8x8xf32>
    %997 = arith.addf %987, %996 : vector<8x8xf32>
    %c258 = arith.constant 258 : index
    %998 = memref.load %arg1[%c258] : memref<330xf32, #tpu.memory_space<smem>>
    %999 = vector.broadcast %998 : f32 to vector<8x8xf32>
    %1000 = arith.mulf %999, %993 : vector<8x8xf32>
    %1001 = arith.addf %991, %1000 : vector<8x8xf32>
    %c6_301 = arith.constant 6 : index
    %c0_302 = arith.constant 0 : index
    %c2_303 = arith.constant 2 : index
    %1002 = vector.load %arg4[%c6_301, %c0_302, %c2_303] : memref<11x8x15xf32, #tpu.memory_space<vmem>>, vector<1x8x8xf32>
    %1003 = vector.shape_cast %1002 : vector<1x8x8xf32> to vector<8x8xf32>
    %c95 = arith.constant 95 : index
    %1004 = memref.load %arg1[%c95] : memref<330xf32, #tpu.memory_space<smem>>
    %1005 = vector.broadcast %1004 : f32 to vector<8x8xf32>
    %1006 = arith.mulf %1005, %1003 : vector<8x8xf32>
    %1007 = arith.addf %997, %1006 : vector<8x8xf32>
    %c260 = arith.constant 260 : index
    %1008 = memref.load %arg1[%c260] : memref<330xf32, #tpu.memory_space<smem>>
    %1009 = vector.broadcast %1008 : f32 to vector<8x8xf32>
    %1010 = arith.mulf %1009, %1003 : vector<8x8xf32>
    %1011 = arith.addf %1001, %1010 : vector<8x8xf32>
    %c6_304 = arith.constant 6 : index
    %c0_305 = arith.constant 0 : index
    %c3_306 = arith.constant 3 : index
    %1012 = vector.load %arg4[%c6_304, %c0_305, %c3_306] : memref<11x8x15xf32, #tpu.memory_space<vmem>>, vector<1x8x8xf32>
    %1013 = vector.shape_cast %1012 : vector<1x8x8xf32> to vector<8x8xf32>
    %c97 = arith.constant 97 : index
    %1014 = memref.load %arg1[%c97] : memref<330xf32, #tpu.memory_space<smem>>
    %1015 = vector.broadcast %1014 : f32 to vector<8x8xf32>
    %1016 = arith.mulf %1015, %1013 : vector<8x8xf32>
    %1017 = arith.addf %1007, %1016 : vector<8x8xf32>
    %c262 = arith.constant 262 : index
    %1018 = memref.load %arg1[%c262] : memref<330xf32, #tpu.memory_space<smem>>
    %1019 = vector.broadcast %1018 : f32 to vector<8x8xf32>
    %1020 = arith.mulf %1019, %1013 : vector<8x8xf32>
    %1021 = arith.addf %1011, %1020 : vector<8x8xf32>
    %c6_307 = arith.constant 6 : index
    %c0_308 = arith.constant 0 : index
    %c4_309 = arith.constant 4 : index
    %1022 = vector.load %arg4[%c6_307, %c0_308, %c4_309] : memref<11x8x15xf32, #tpu.memory_space<vmem>>, vector<1x8x8xf32>
    %1023 = vector.shape_cast %1022 : vector<1x8x8xf32> to vector<8x8xf32>
    %c99 = arith.constant 99 : index
    %1024 = memref.load %arg1[%c99] : memref<330xf32, #tpu.memory_space<smem>>
    %1025 = vector.broadcast %1024 : f32 to vector<8x8xf32>
    %1026 = arith.mulf %1025, %1023 : vector<8x8xf32>
    %1027 = arith.addf %1017, %1026 : vector<8x8xf32>
    %c264 = arith.constant 264 : index
    %1028 = memref.load %arg1[%c264] : memref<330xf32, #tpu.memory_space<smem>>
    %1029 = vector.broadcast %1028 : f32 to vector<8x8xf32>
    %1030 = arith.mulf %1029, %1023 : vector<8x8xf32>
    %1031 = arith.addf %1021, %1030 : vector<8x8xf32>
    %c6_310 = arith.constant 6 : index
    %c0_311 = arith.constant 0 : index
    %c5_312 = arith.constant 5 : index
    %1032 = vector.load %arg4[%c6_310, %c0_311, %c5_312] : memref<11x8x15xf32, #tpu.memory_space<vmem>>, vector<1x8x8xf32>
    %1033 = vector.shape_cast %1032 : vector<1x8x8xf32> to vector<8x8xf32>
    %c101 = arith.constant 101 : index
    %1034 = memref.load %arg1[%c101] : memref<330xf32, #tpu.memory_space<smem>>
    %1035 = vector.broadcast %1034 : f32 to vector<8x8xf32>
    %1036 = arith.mulf %1035, %1033 : vector<8x8xf32>
    %1037 = arith.addf %1027, %1036 : vector<8x8xf32>
    %c266 = arith.constant 266 : index
    %1038 = memref.load %arg1[%c266] : memref<330xf32, #tpu.memory_space<smem>>
    %1039 = vector.broadcast %1038 : f32 to vector<8x8xf32>
    %1040 = arith.mulf %1039, %1033 : vector<8x8xf32>
    %1041 = arith.addf %1031, %1040 : vector<8x8xf32>
    %c6_313 = arith.constant 6 : index
    %c0_314 = arith.constant 0 : index
    %c6_315 = arith.constant 6 : index
    %1042 = vector.load %arg4[%c6_313, %c0_314, %c6_315] : memref<11x8x15xf32, #tpu.memory_space<vmem>>, vector<1x8x8xf32>
    %1043 = vector.shape_cast %1042 : vector<1x8x8xf32> to vector<8x8xf32>
    %c103 = arith.constant 103 : index
    %1044 = memref.load %arg1[%c103] : memref<330xf32, #tpu.memory_space<smem>>
    %1045 = vector.broadcast %1044 : f32 to vector<8x8xf32>
    %1046 = arith.mulf %1045, %1043 : vector<8x8xf32>
    %1047 = arith.addf %1037, %1046 : vector<8x8xf32>
    %c268 = arith.constant 268 : index
    %1048 = memref.load %arg1[%c268] : memref<330xf32, #tpu.memory_space<smem>>
    %1049 = vector.broadcast %1048 : f32 to vector<8x8xf32>
    %1050 = arith.mulf %1049, %1043 : vector<8x8xf32>
    %1051 = arith.addf %1041, %1050 : vector<8x8xf32>
    %c7_316 = arith.constant 7 : index
    %c0_317 = arith.constant 0 : index
    %c0_318 = arith.constant 0 : index
    %1052 = vector.load %arg3[%c7_316, %c0_317, %c0_318] : memref<11x8x15xf32, #tpu.memory_space<vmem>>, vector<1x8x8xf32>
    %1053 = vector.shape_cast %1052 : vector<1x8x8xf32> to vector<8x8xf32>
    %c105 = arith.constant 105 : index
    %1054 = memref.load %arg1[%c105] : memref<330xf32, #tpu.memory_space<smem>>
    %1055 = vector.broadcast %1054 : f32 to vector<8x8xf32>
    %1056 = arith.mulf %1055, %1053 : vector<8x8xf32>
    %1057 = arith.addf %1047, %1056 : vector<8x8xf32>
    %c270 = arith.constant 270 : index
    %1058 = memref.load %arg1[%c270] : memref<330xf32, #tpu.memory_space<smem>>
    %1059 = vector.broadcast %1058 : f32 to vector<8x8xf32>
    %1060 = arith.mulf %1059, %1053 : vector<8x8xf32>
    %1061 = arith.addf %1051, %1060 : vector<8x8xf32>
    %c7_319 = arith.constant 7 : index
    %c0_320 = arith.constant 0 : index
    %c1_321 = arith.constant 1 : index
    %1062 = vector.load %arg3[%c7_319, %c0_320, %c1_321] : memref<11x8x15xf32, #tpu.memory_space<vmem>>, vector<1x8x8xf32>
    %1063 = vector.shape_cast %1062 : vector<1x8x8xf32> to vector<8x8xf32>
    %c107 = arith.constant 107 : index
    %1064 = memref.load %arg1[%c107] : memref<330xf32, #tpu.memory_space<smem>>
    %1065 = vector.broadcast %1064 : f32 to vector<8x8xf32>
    %1066 = arith.mulf %1065, %1063 : vector<8x8xf32>
    %1067 = arith.addf %1057, %1066 : vector<8x8xf32>
    %c272 = arith.constant 272 : index
    %1068 = memref.load %arg1[%c272] : memref<330xf32, #tpu.memory_space<smem>>
    %1069 = vector.broadcast %1068 : f32 to vector<8x8xf32>
    %1070 = arith.mulf %1069, %1063 : vector<8x8xf32>
    %1071 = arith.addf %1061, %1070 : vector<8x8xf32>
    %c7_322 = arith.constant 7 : index
    %c0_323 = arith.constant 0 : index
    %c2_324 = arith.constant 2 : index
    %1072 = vector.load %arg3[%c7_322, %c0_323, %c2_324] : memref<11x8x15xf32, #tpu.memory_space<vmem>>, vector<1x8x8xf32>
    %1073 = vector.shape_cast %1072 : vector<1x8x8xf32> to vector<8x8xf32>
    %c109 = arith.constant 109 : index
    %1074 = memref.load %arg1[%c109] : memref<330xf32, #tpu.memory_space<smem>>
    %1075 = vector.broadcast %1074 : f32 to vector<8x8xf32>
    %1076 = arith.mulf %1075, %1073 : vector<8x8xf32>
    %1077 = arith.addf %1067, %1076 : vector<8x8xf32>
    %c274 = arith.constant 274 : index
    %1078 = memref.load %arg1[%c274] : memref<330xf32, #tpu.memory_space<smem>>
    %1079 = vector.broadcast %1078 : f32 to vector<8x8xf32>
    %1080 = arith.mulf %1079, %1073 : vector<8x8xf32>
    %1081 = arith.addf %1071, %1080 : vector<8x8xf32>
    %c7_325 = arith.constant 7 : index
    %c0_326 = arith.constant 0 : index
    %c3_327 = arith.constant 3 : index
    %1082 = vector.load %arg3[%c7_325, %c0_326, %c3_327] : memref<11x8x15xf32, #tpu.memory_space<vmem>>, vector<1x8x8xf32>
    %1083 = vector.shape_cast %1082 : vector<1x8x8xf32> to vector<8x8xf32>
    %c111 = arith.constant 111 : index
    %1084 = memref.load %arg1[%c111] : memref<330xf32, #tpu.memory_space<smem>>
    %1085 = vector.broadcast %1084 : f32 to vector<8x8xf32>
    %1086 = arith.mulf %1085, %1083 : vector<8x8xf32>
    %1087 = arith.addf %1077, %1086 : vector<8x8xf32>
    %c276 = arith.constant 276 : index
    %1088 = memref.load %arg1[%c276] : memref<330xf32, #tpu.memory_space<smem>>
    %1089 = vector.broadcast %1088 : f32 to vector<8x8xf32>
    %1090 = arith.mulf %1089, %1083 : vector<8x8xf32>
    %1091 = arith.addf %1081, %1090 : vector<8x8xf32>
    %c7_328 = arith.constant 7 : index
    %c0_329 = arith.constant 0 : index
    %c4_330 = arith.constant 4 : index
    %1092 = vector.load %arg3[%c7_328, %c0_329, %c4_330] : memref<11x8x15xf32, #tpu.memory_space<vmem>>, vector<1x8x8xf32>
    %1093 = vector.shape_cast %1092 : vector<1x8x8xf32> to vector<8x8xf32>
    %c113 = arith.constant 113 : index
    %1094 = memref.load %arg1[%c113] : memref<330xf32, #tpu.memory_space<smem>>
    %1095 = vector.broadcast %1094 : f32 to vector<8x8xf32>
    %1096 = arith.mulf %1095, %1093 : vector<8x8xf32>
    %1097 = arith.addf %1087, %1096 : vector<8x8xf32>
    %c278 = arith.constant 278 : index
    %1098 = memref.load %arg1[%c278] : memref<330xf32, #tpu.memory_space<smem>>
    %1099 = vector.broadcast %1098 : f32 to vector<8x8xf32>
    %1100 = arith.mulf %1099, %1093 : vector<8x8xf32>
    %1101 = arith.addf %1091, %1100 : vector<8x8xf32>
    %c7_331 = arith.constant 7 : index
    %c0_332 = arith.constant 0 : index
    %c5_333 = arith.constant 5 : index
    %1102 = vector.load %arg3[%c7_331, %c0_332, %c5_333] : memref<11x8x15xf32, #tpu.memory_space<vmem>>, vector<1x8x8xf32>
    %1103 = vector.shape_cast %1102 : vector<1x8x8xf32> to vector<8x8xf32>
    %c115 = arith.constant 115 : index
    %1104 = memref.load %arg1[%c115] : memref<330xf32, #tpu.memory_space<smem>>
    %1105 = vector.broadcast %1104 : f32 to vector<8x8xf32>
    %1106 = arith.mulf %1105, %1103 : vector<8x8xf32>
    %1107 = arith.addf %1097, %1106 : vector<8x8xf32>
    %c280 = arith.constant 280 : index
    %1108 = memref.load %arg1[%c280] : memref<330xf32, #tpu.memory_space<smem>>
    %1109 = vector.broadcast %1108 : f32 to vector<8x8xf32>
    %1110 = arith.mulf %1109, %1103 : vector<8x8xf32>
    %1111 = arith.addf %1101, %1110 : vector<8x8xf32>
    %c7_334 = arith.constant 7 : index
    %c0_335 = arith.constant 0 : index
    %c6_336 = arith.constant 6 : index
    %1112 = vector.load %arg3[%c7_334, %c0_335, %c6_336] : memref<11x8x15xf32, #tpu.memory_space<vmem>>, vector<1x8x8xf32>
    %1113 = vector.shape_cast %1112 : vector<1x8x8xf32> to vector<8x8xf32>
    %c117 = arith.constant 117 : index
    %1114 = memref.load %arg1[%c117] : memref<330xf32, #tpu.memory_space<smem>>
    %1115 = vector.broadcast %1114 : f32 to vector<8x8xf32>
    %1116 = arith.mulf %1115, %1113 : vector<8x8xf32>
    %1117 = arith.addf %1107, %1116 : vector<8x8xf32>
    %c282 = arith.constant 282 : index
    %1118 = memref.load %arg1[%c282] : memref<330xf32, #tpu.memory_space<smem>>
    %1119 = vector.broadcast %1118 : f32 to vector<8x8xf32>
    %1120 = arith.mulf %1119, %1113 : vector<8x8xf32>
    %1121 = arith.addf %1111, %1120 : vector<8x8xf32>
    %c7_337 = arith.constant 7 : index
    %c0_338 = arith.constant 0 : index
    %c7_339 = arith.constant 7 : index
    %1122 = vector.load %arg3[%c7_337, %c0_338, %c7_339] : memref<11x8x15xf32, #tpu.memory_space<vmem>>, vector<1x8x8xf32>
    %1123 = vector.shape_cast %1122 : vector<1x8x8xf32> to vector<8x8xf32>
    %c119 = arith.constant 119 : index
    %1124 = memref.load %arg1[%c119] : memref<330xf32, #tpu.memory_space<smem>>
    %1125 = vector.broadcast %1124 : f32 to vector<8x8xf32>
    %1126 = arith.mulf %1125, %1123 : vector<8x8xf32>
    %1127 = arith.addf %1117, %1126 : vector<8x8xf32>
    %c284 = arith.constant 284 : index
    %1128 = memref.load %arg1[%c284] : memref<330xf32, #tpu.memory_space<smem>>
    %1129 = vector.broadcast %1128 : f32 to vector<8x8xf32>
    %1130 = arith.mulf %1129, %1123 : vector<8x8xf32>
    %1131 = arith.addf %1121, %1130 : vector<8x8xf32>
    %c7_340 = arith.constant 7 : index
    %c0_341 = arith.constant 0 : index
    %c0_342 = arith.constant 0 : index
    %1132 = vector.load %arg4[%c7_340, %c0_341, %c0_342] : memref<11x8x15xf32, #tpu.memory_space<vmem>>, vector<1x8x8xf32>
    %1133 = vector.shape_cast %1132 : vector<1x8x8xf32> to vector<8x8xf32>
    %c106 = arith.constant 106 : index
    %1134 = memref.load %arg1[%c106] : memref<330xf32, #tpu.memory_space<smem>>
    %1135 = vector.broadcast %1134 : f32 to vector<8x8xf32>
    %1136 = arith.mulf %1135, %1133 : vector<8x8xf32>
    %1137 = arith.addf %1127, %1136 : vector<8x8xf32>
    %c271 = arith.constant 271 : index
    %1138 = memref.load %arg1[%c271] : memref<330xf32, #tpu.memory_space<smem>>
    %1139 = vector.broadcast %1138 : f32 to vector<8x8xf32>
    %1140 = arith.mulf %1139, %1133 : vector<8x8xf32>
    %1141 = arith.addf %1131, %1140 : vector<8x8xf32>
    %c7_343 = arith.constant 7 : index
    %c0_344 = arith.constant 0 : index
    %c1_345 = arith.constant 1 : index
    %1142 = vector.load %arg4[%c7_343, %c0_344, %c1_345] : memref<11x8x15xf32, #tpu.memory_space<vmem>>, vector<1x8x8xf32>
    %1143 = vector.shape_cast %1142 : vector<1x8x8xf32> to vector<8x8xf32>
    %c108 = arith.constant 108 : index
    %1144 = memref.load %arg1[%c108] : memref<330xf32, #tpu.memory_space<smem>>
    %1145 = vector.broadcast %1144 : f32 to vector<8x8xf32>
    %1146 = arith.mulf %1145, %1143 : vector<8x8xf32>
    %1147 = arith.addf %1137, %1146 : vector<8x8xf32>
    %c273 = arith.constant 273 : index
    %1148 = memref.load %arg1[%c273] : memref<330xf32, #tpu.memory_space<smem>>
    %1149 = vector.broadcast %1148 : f32 to vector<8x8xf32>
    %1150 = arith.mulf %1149, %1143 : vector<8x8xf32>
    %1151 = arith.addf %1141, %1150 : vector<8x8xf32>
    %c7_346 = arith.constant 7 : index
    %c0_347 = arith.constant 0 : index
    %c2_348 = arith.constant 2 : index
    %1152 = vector.load %arg4[%c7_346, %c0_347, %c2_348] : memref<11x8x15xf32, #tpu.memory_space<vmem>>, vector<1x8x8xf32>
    %1153 = vector.shape_cast %1152 : vector<1x8x8xf32> to vector<8x8xf32>
    %c110 = arith.constant 110 : index
    %1154 = memref.load %arg1[%c110] : memref<330xf32, #tpu.memory_space<smem>>
    %1155 = vector.broadcast %1154 : f32 to vector<8x8xf32>
    %1156 = arith.mulf %1155, %1153 : vector<8x8xf32>
    %1157 = arith.addf %1147, %1156 : vector<8x8xf32>
    %c275 = arith.constant 275 : index
    %1158 = memref.load %arg1[%c275] : memref<330xf32, #tpu.memory_space<smem>>
    %1159 = vector.broadcast %1158 : f32 to vector<8x8xf32>
    %1160 = arith.mulf %1159, %1153 : vector<8x8xf32>
    %1161 = arith.addf %1151, %1160 : vector<8x8xf32>
    %c7_349 = arith.constant 7 : index
    %c0_350 = arith.constant 0 : index
    %c3_351 = arith.constant 3 : index
    %1162 = vector.load %arg4[%c7_349, %c0_350, %c3_351] : memref<11x8x15xf32, #tpu.memory_space<vmem>>, vector<1x8x8xf32>
    %1163 = vector.shape_cast %1162 : vector<1x8x8xf32> to vector<8x8xf32>
    %c112 = arith.constant 112 : index
    %1164 = memref.load %arg1[%c112] : memref<330xf32, #tpu.memory_space<smem>>
    %1165 = vector.broadcast %1164 : f32 to vector<8x8xf32>
    %1166 = arith.mulf %1165, %1163 : vector<8x8xf32>
    %1167 = arith.addf %1157, %1166 : vector<8x8xf32>
    %c277 = arith.constant 277 : index
    %1168 = memref.load %arg1[%c277] : memref<330xf32, #tpu.memory_space<smem>>
    %1169 = vector.broadcast %1168 : f32 to vector<8x8xf32>
    %1170 = arith.mulf %1169, %1163 : vector<8x8xf32>
    %1171 = arith.addf %1161, %1170 : vector<8x8xf32>
    %c7_352 = arith.constant 7 : index
    %c0_353 = arith.constant 0 : index
    %c4_354 = arith.constant 4 : index
    %1172 = vector.load %arg4[%c7_352, %c0_353, %c4_354] : memref<11x8x15xf32, #tpu.memory_space<vmem>>, vector<1x8x8xf32>
    %1173 = vector.shape_cast %1172 : vector<1x8x8xf32> to vector<8x8xf32>
    %c114 = arith.constant 114 : index
    %1174 = memref.load %arg1[%c114] : memref<330xf32, #tpu.memory_space<smem>>
    %1175 = vector.broadcast %1174 : f32 to vector<8x8xf32>
    %1176 = arith.mulf %1175, %1173 : vector<8x8xf32>
    %1177 = arith.addf %1167, %1176 : vector<8x8xf32>
    %c279 = arith.constant 279 : index
    %1178 = memref.load %arg1[%c279] : memref<330xf32, #tpu.memory_space<smem>>
    %1179 = vector.broadcast %1178 : f32 to vector<8x8xf32>
    %1180 = arith.mulf %1179, %1173 : vector<8x8xf32>
    %1181 = arith.addf %1171, %1180 : vector<8x8xf32>
    %c7_355 = arith.constant 7 : index
    %c0_356 = arith.constant 0 : index
    %c5_357 = arith.constant 5 : index
    %1182 = vector.load %arg4[%c7_355, %c0_356, %c5_357] : memref<11x8x15xf32, #tpu.memory_space<vmem>>, vector<1x8x8xf32>
    %1183 = vector.shape_cast %1182 : vector<1x8x8xf32> to vector<8x8xf32>
    %c116 = arith.constant 116 : index
    %1184 = memref.load %arg1[%c116] : memref<330xf32, #tpu.memory_space<smem>>
    %1185 = vector.broadcast %1184 : f32 to vector<8x8xf32>
    %1186 = arith.mulf %1185, %1183 : vector<8x8xf32>
    %1187 = arith.addf %1177, %1186 : vector<8x8xf32>
    %c281 = arith.constant 281 : index
    %1188 = memref.load %arg1[%c281] : memref<330xf32, #tpu.memory_space<smem>>
    %1189 = vector.broadcast %1188 : f32 to vector<8x8xf32>
    %1190 = arith.mulf %1189, %1183 : vector<8x8xf32>
    %1191 = arith.addf %1181, %1190 : vector<8x8xf32>
    %c7_358 = arith.constant 7 : index
    %c0_359 = arith.constant 0 : index
    %c6_360 = arith.constant 6 : index
    %1192 = vector.load %arg4[%c7_358, %c0_359, %c6_360] : memref<11x8x15xf32, #tpu.memory_space<vmem>>, vector<1x8x8xf32>
    %1193 = vector.shape_cast %1192 : vector<1x8x8xf32> to vector<8x8xf32>
    %c118 = arith.constant 118 : index
    %1194 = memref.load %arg1[%c118] : memref<330xf32, #tpu.memory_space<smem>>
    %1195 = vector.broadcast %1194 : f32 to vector<8x8xf32>
    %1196 = arith.mulf %1195, %1193 : vector<8x8xf32>
    %1197 = arith.addf %1187, %1196 : vector<8x8xf32>
    %c283 = arith.constant 283 : index
    %1198 = memref.load %arg1[%c283] : memref<330xf32, #tpu.memory_space<smem>>
    %1199 = vector.broadcast %1198 : f32 to vector<8x8xf32>
    %1200 = arith.mulf %1199, %1193 : vector<8x8xf32>
    %1201 = arith.addf %1191, %1200 : vector<8x8xf32>
    %c8_361 = arith.constant 8 : index
    %c0_362 = arith.constant 0 : index
    %c0_363 = arith.constant 0 : index
    %1202 = vector.load %arg3[%c8_361, %c0_362, %c0_363] : memref<11x8x15xf32, #tpu.memory_space<vmem>>, vector<1x8x8xf32>
    %1203 = vector.shape_cast %1202 : vector<1x8x8xf32> to vector<8x8xf32>
    %c120 = arith.constant 120 : index
    %1204 = memref.load %arg1[%c120] : memref<330xf32, #tpu.memory_space<smem>>
    %1205 = vector.broadcast %1204 : f32 to vector<8x8xf32>
    %1206 = arith.mulf %1205, %1203 : vector<8x8xf32>
    %1207 = arith.addf %1197, %1206 : vector<8x8xf32>
    %c285 = arith.constant 285 : index
    %1208 = memref.load %arg1[%c285] : memref<330xf32, #tpu.memory_space<smem>>
    %1209 = vector.broadcast %1208 : f32 to vector<8x8xf32>
    %1210 = arith.mulf %1209, %1203 : vector<8x8xf32>
    %1211 = arith.addf %1201, %1210 : vector<8x8xf32>
    %c8_364 = arith.constant 8 : index
    %c0_365 = arith.constant 0 : index
    %c1_366 = arith.constant 1 : index
    %1212 = vector.load %arg3[%c8_364, %c0_365, %c1_366] : memref<11x8x15xf32, #tpu.memory_space<vmem>>, vector<1x8x8xf32>
    %1213 = vector.shape_cast %1212 : vector<1x8x8xf32> to vector<8x8xf32>
    %c122 = arith.constant 122 : index
    %1214 = memref.load %arg1[%c122] : memref<330xf32, #tpu.memory_space<smem>>
    %1215 = vector.broadcast %1214 : f32 to vector<8x8xf32>
    %1216 = arith.mulf %1215, %1213 : vector<8x8xf32>
    %1217 = arith.addf %1207, %1216 : vector<8x8xf32>
    %c287 = arith.constant 287 : index
    %1218 = memref.load %arg1[%c287] : memref<330xf32, #tpu.memory_space<smem>>
    %1219 = vector.broadcast %1218 : f32 to vector<8x8xf32>
    %1220 = arith.mulf %1219, %1213 : vector<8x8xf32>
    %1221 = arith.addf %1211, %1220 : vector<8x8xf32>
    %c8_367 = arith.constant 8 : index
    %c0_368 = arith.constant 0 : index
    %c2_369 = arith.constant 2 : index
    %1222 = vector.load %arg3[%c8_367, %c0_368, %c2_369] : memref<11x8x15xf32, #tpu.memory_space<vmem>>, vector<1x8x8xf32>
    %1223 = vector.shape_cast %1222 : vector<1x8x8xf32> to vector<8x8xf32>
    %c124 = arith.constant 124 : index
    %1224 = memref.load %arg1[%c124] : memref<330xf32, #tpu.memory_space<smem>>
    %1225 = vector.broadcast %1224 : f32 to vector<8x8xf32>
    %1226 = arith.mulf %1225, %1223 : vector<8x8xf32>
    %1227 = arith.addf %1217, %1226 : vector<8x8xf32>
    %c289 = arith.constant 289 : index
    %1228 = memref.load %arg1[%c289] : memref<330xf32, #tpu.memory_space<smem>>
    %1229 = vector.broadcast %1228 : f32 to vector<8x8xf32>
    %1230 = arith.mulf %1229, %1223 : vector<8x8xf32>
    %1231 = arith.addf %1221, %1230 : vector<8x8xf32>
    %c8_370 = arith.constant 8 : index
    %c0_371 = arith.constant 0 : index
    %c3_372 = arith.constant 3 : index
    %1232 = vector.load %arg3[%c8_370, %c0_371, %c3_372] : memref<11x8x15xf32, #tpu.memory_space<vmem>>, vector<1x8x8xf32>
    %1233 = vector.shape_cast %1232 : vector<1x8x8xf32> to vector<8x8xf32>
    %c126 = arith.constant 126 : index
    %1234 = memref.load %arg1[%c126] : memref<330xf32, #tpu.memory_space<smem>>
    %1235 = vector.broadcast %1234 : f32 to vector<8x8xf32>
    %1236 = arith.mulf %1235, %1233 : vector<8x8xf32>
    %1237 = arith.addf %1227, %1236 : vector<8x8xf32>
    %c291 = arith.constant 291 : index
    %1238 = memref.load %arg1[%c291] : memref<330xf32, #tpu.memory_space<smem>>
    %1239 = vector.broadcast %1238 : f32 to vector<8x8xf32>
    %1240 = arith.mulf %1239, %1233 : vector<8x8xf32>
    %1241 = arith.addf %1231, %1240 : vector<8x8xf32>
    %c8_373 = arith.constant 8 : index
    %c0_374 = arith.constant 0 : index
    %c4_375 = arith.constant 4 : index
    %1242 = vector.load %arg3[%c8_373, %c0_374, %c4_375] : memref<11x8x15xf32, #tpu.memory_space<vmem>>, vector<1x8x8xf32>
    %1243 = vector.shape_cast %1242 : vector<1x8x8xf32> to vector<8x8xf32>
    %c128 = arith.constant 128 : index
    %1244 = memref.load %arg1[%c128] : memref<330xf32, #tpu.memory_space<smem>>
    %1245 = vector.broadcast %1244 : f32 to vector<8x8xf32>
    %1246 = arith.mulf %1245, %1243 : vector<8x8xf32>
    %1247 = arith.addf %1237, %1246 : vector<8x8xf32>
    %c293 = arith.constant 293 : index
    %1248 = memref.load %arg1[%c293] : memref<330xf32, #tpu.memory_space<smem>>
    %1249 = vector.broadcast %1248 : f32 to vector<8x8xf32>
    %1250 = arith.mulf %1249, %1243 : vector<8x8xf32>
    %1251 = arith.addf %1241, %1250 : vector<8x8xf32>
    %c8_376 = arith.constant 8 : index
    %c0_377 = arith.constant 0 : index
    %c5_378 = arith.constant 5 : index
    %1252 = vector.load %arg3[%c8_376, %c0_377, %c5_378] : memref<11x8x15xf32, #tpu.memory_space<vmem>>, vector<1x8x8xf32>
    %1253 = vector.shape_cast %1252 : vector<1x8x8xf32> to vector<8x8xf32>
    %c130 = arith.constant 130 : index
    %1254 = memref.load %arg1[%c130] : memref<330xf32, #tpu.memory_space<smem>>
    %1255 = vector.broadcast %1254 : f32 to vector<8x8xf32>
    %1256 = arith.mulf %1255, %1253 : vector<8x8xf32>
    %1257 = arith.addf %1247, %1256 : vector<8x8xf32>
    %c295 = arith.constant 295 : index
    %1258 = memref.load %arg1[%c295] : memref<330xf32, #tpu.memory_space<smem>>
    %1259 = vector.broadcast %1258 : f32 to vector<8x8xf32>
    %1260 = arith.mulf %1259, %1253 : vector<8x8xf32>
    %1261 = arith.addf %1251, %1260 : vector<8x8xf32>
    %c8_379 = arith.constant 8 : index
    %c0_380 = arith.constant 0 : index
    %c6_381 = arith.constant 6 : index
    %1262 = vector.load %arg3[%c8_379, %c0_380, %c6_381] : memref<11x8x15xf32, #tpu.memory_space<vmem>>, vector<1x8x8xf32>
    %1263 = vector.shape_cast %1262 : vector<1x8x8xf32> to vector<8x8xf32>
    %c132 = arith.constant 132 : index
    %1264 = memref.load %arg1[%c132] : memref<330xf32, #tpu.memory_space<smem>>
    %1265 = vector.broadcast %1264 : f32 to vector<8x8xf32>
    %1266 = arith.mulf %1265, %1263 : vector<8x8xf32>
    %1267 = arith.addf %1257, %1266 : vector<8x8xf32>
    %c297 = arith.constant 297 : index
    %1268 = memref.load %arg1[%c297] : memref<330xf32, #tpu.memory_space<smem>>
    %1269 = vector.broadcast %1268 : f32 to vector<8x8xf32>
    %1270 = arith.mulf %1269, %1263 : vector<8x8xf32>
    %1271 = arith.addf %1261, %1270 : vector<8x8xf32>
    %c8_382 = arith.constant 8 : index
    %c0_383 = arith.constant 0 : index
    %c7_384 = arith.constant 7 : index
    %1272 = vector.load %arg3[%c8_382, %c0_383, %c7_384] : memref<11x8x15xf32, #tpu.memory_space<vmem>>, vector<1x8x8xf32>
    %1273 = vector.shape_cast %1272 : vector<1x8x8xf32> to vector<8x8xf32>
    %c134 = arith.constant 134 : index
    %1274 = memref.load %arg1[%c134] : memref<330xf32, #tpu.memory_space<smem>>
    %1275 = vector.broadcast %1274 : f32 to vector<8x8xf32>
    %1276 = arith.mulf %1275, %1273 : vector<8x8xf32>
    %1277 = arith.addf %1267, %1276 : vector<8x8xf32>
    %c299 = arith.constant 299 : index
    %1278 = memref.load %arg1[%c299] : memref<330xf32, #tpu.memory_space<smem>>
    %1279 = vector.broadcast %1278 : f32 to vector<8x8xf32>
    %1280 = arith.mulf %1279, %1273 : vector<8x8xf32>
    %1281 = arith.addf %1271, %1280 : vector<8x8xf32>
    %c8_385 = arith.constant 8 : index
    %c0_386 = arith.constant 0 : index
    %c0_387 = arith.constant 0 : index
    %1282 = vector.load %arg4[%c8_385, %c0_386, %c0_387] : memref<11x8x15xf32, #tpu.memory_space<vmem>>, vector<1x8x8xf32>
    %1283 = vector.shape_cast %1282 : vector<1x8x8xf32> to vector<8x8xf32>
    %c121 = arith.constant 121 : index
    %1284 = memref.load %arg1[%c121] : memref<330xf32, #tpu.memory_space<smem>>
    %1285 = vector.broadcast %1284 : f32 to vector<8x8xf32>
    %1286 = arith.mulf %1285, %1283 : vector<8x8xf32>
    %1287 = arith.addf %1277, %1286 : vector<8x8xf32>
    %c286 = arith.constant 286 : index
    %1288 = memref.load %arg1[%c286] : memref<330xf32, #tpu.memory_space<smem>>
    %1289 = vector.broadcast %1288 : f32 to vector<8x8xf32>
    %1290 = arith.mulf %1289, %1283 : vector<8x8xf32>
    %1291 = arith.addf %1281, %1290 : vector<8x8xf32>
    %c8_388 = arith.constant 8 : index
    %c0_389 = arith.constant 0 : index
    %c1_390 = arith.constant 1 : index
    %1292 = vector.load %arg4[%c8_388, %c0_389, %c1_390] : memref<11x8x15xf32, #tpu.memory_space<vmem>>, vector<1x8x8xf32>
    %1293 = vector.shape_cast %1292 : vector<1x8x8xf32> to vector<8x8xf32>
    %c123 = arith.constant 123 : index
    %1294 = memref.load %arg1[%c123] : memref<330xf32, #tpu.memory_space<smem>>
    %1295 = vector.broadcast %1294 : f32 to vector<8x8xf32>
    %1296 = arith.mulf %1295, %1293 : vector<8x8xf32>
    %1297 = arith.addf %1287, %1296 : vector<8x8xf32>
    %c288 = arith.constant 288 : index
    %1298 = memref.load %arg1[%c288] : memref<330xf32, #tpu.memory_space<smem>>
    %1299 = vector.broadcast %1298 : f32 to vector<8x8xf32>
    %1300 = arith.mulf %1299, %1293 : vector<8x8xf32>
    %1301 = arith.addf %1291, %1300 : vector<8x8xf32>
    %c8_391 = arith.constant 8 : index
    %c0_392 = arith.constant 0 : index
    %c2_393 = arith.constant 2 : index
    %1302 = vector.load %arg4[%c8_391, %c0_392, %c2_393] : memref<11x8x15xf32, #tpu.memory_space<vmem>>, vector<1x8x8xf32>
    %1303 = vector.shape_cast %1302 : vector<1x8x8xf32> to vector<8x8xf32>
    %c125 = arith.constant 125 : index
    %1304 = memref.load %arg1[%c125] : memref<330xf32, #tpu.memory_space<smem>>
    %1305 = vector.broadcast %1304 : f32 to vector<8x8xf32>
    %1306 = arith.mulf %1305, %1303 : vector<8x8xf32>
    %1307 = arith.addf %1297, %1306 : vector<8x8xf32>
    %c290 = arith.constant 290 : index
    %1308 = memref.load %arg1[%c290] : memref<330xf32, #tpu.memory_space<smem>>
    %1309 = vector.broadcast %1308 : f32 to vector<8x8xf32>
    %1310 = arith.mulf %1309, %1303 : vector<8x8xf32>
    %1311 = arith.addf %1301, %1310 : vector<8x8xf32>
    %c8_394 = arith.constant 8 : index
    %c0_395 = arith.constant 0 : index
    %c3_396 = arith.constant 3 : index
    %1312 = vector.load %arg4[%c8_394, %c0_395, %c3_396] : memref<11x8x15xf32, #tpu.memory_space<vmem>>, vector<1x8x8xf32>
    %1313 = vector.shape_cast %1312 : vector<1x8x8xf32> to vector<8x8xf32>
    %c127 = arith.constant 127 : index
    %1314 = memref.load %arg1[%c127] : memref<330xf32, #tpu.memory_space<smem>>
    %1315 = vector.broadcast %1314 : f32 to vector<8x8xf32>
    %1316 = arith.mulf %1315, %1313 : vector<8x8xf32>
    %1317 = arith.addf %1307, %1316 : vector<8x8xf32>
    %c292 = arith.constant 292 : index
    %1318 = memref.load %arg1[%c292] : memref<330xf32, #tpu.memory_space<smem>>
    %1319 = vector.broadcast %1318 : f32 to vector<8x8xf32>
    %1320 = arith.mulf %1319, %1313 : vector<8x8xf32>
    %1321 = arith.addf %1311, %1320 : vector<8x8xf32>
    %c8_397 = arith.constant 8 : index
    %c0_398 = arith.constant 0 : index
    %c4_399 = arith.constant 4 : index
    %1322 = vector.load %arg4[%c8_397, %c0_398, %c4_399] : memref<11x8x15xf32, #tpu.memory_space<vmem>>, vector<1x8x8xf32>
    %1323 = vector.shape_cast %1322 : vector<1x8x8xf32> to vector<8x8xf32>
    %c129 = arith.constant 129 : index
    %1324 = memref.load %arg1[%c129] : memref<330xf32, #tpu.memory_space<smem>>
    %1325 = vector.broadcast %1324 : f32 to vector<8x8xf32>
    %1326 = arith.mulf %1325, %1323 : vector<8x8xf32>
    %1327 = arith.addf %1317, %1326 : vector<8x8xf32>
    %c294 = arith.constant 294 : index
    %1328 = memref.load %arg1[%c294] : memref<330xf32, #tpu.memory_space<smem>>
    %1329 = vector.broadcast %1328 : f32 to vector<8x8xf32>
    %1330 = arith.mulf %1329, %1323 : vector<8x8xf32>
    %1331 = arith.addf %1321, %1330 : vector<8x8xf32>
    %c8_400 = arith.constant 8 : index
    %c0_401 = arith.constant 0 : index
    %c5_402 = arith.constant 5 : index
    %1332 = vector.load %arg4[%c8_400, %c0_401, %c5_402] : memref<11x8x15xf32, #tpu.memory_space<vmem>>, vector<1x8x8xf32>
    %1333 = vector.shape_cast %1332 : vector<1x8x8xf32> to vector<8x8xf32>
    %c131 = arith.constant 131 : index
    %1334 = memref.load %arg1[%c131] : memref<330xf32, #tpu.memory_space<smem>>
    %1335 = vector.broadcast %1334 : f32 to vector<8x8xf32>
    %1336 = arith.mulf %1335, %1333 : vector<8x8xf32>
    %1337 = arith.addf %1327, %1336 : vector<8x8xf32>
    %c296 = arith.constant 296 : index
    %1338 = memref.load %arg1[%c296] : memref<330xf32, #tpu.memory_space<smem>>
    %1339 = vector.broadcast %1338 : f32 to vector<8x8xf32>
    %1340 = arith.mulf %1339, %1333 : vector<8x8xf32>
    %1341 = arith.addf %1331, %1340 : vector<8x8xf32>
    %c8_403 = arith.constant 8 : index
    %c0_404 = arith.constant 0 : index
    %c6_405 = arith.constant 6 : index
    %1342 = vector.load %arg4[%c8_403, %c0_404, %c6_405] : memref<11x8x15xf32, #tpu.memory_space<vmem>>, vector<1x8x8xf32>
    %1343 = vector.shape_cast %1342 : vector<1x8x8xf32> to vector<8x8xf32>
    %c133 = arith.constant 133 : index
    %1344 = memref.load %arg1[%c133] : memref<330xf32, #tpu.memory_space<smem>>
    %1345 = vector.broadcast %1344 : f32 to vector<8x8xf32>
    %1346 = arith.mulf %1345, %1343 : vector<8x8xf32>
    %1347 = arith.addf %1337, %1346 : vector<8x8xf32>
    %c298 = arith.constant 298 : index
    %1348 = memref.load %arg1[%c298] : memref<330xf32, #tpu.memory_space<smem>>
    %1349 = vector.broadcast %1348 : f32 to vector<8x8xf32>
    %1350 = arith.mulf %1349, %1343 : vector<8x8xf32>
    %1351 = arith.addf %1341, %1350 : vector<8x8xf32>
    %c9_406 = arith.constant 9 : index
    %c0_407 = arith.constant 0 : index
    %c0_408 = arith.constant 0 : index
    %1352 = vector.load %arg3[%c9_406, %c0_407, %c0_408] : memref<11x8x15xf32, #tpu.memory_space<vmem>>, vector<1x8x8xf32>
    %1353 = vector.shape_cast %1352 : vector<1x8x8xf32> to vector<8x8xf32>
    %c135 = arith.constant 135 : index
    %1354 = memref.load %arg1[%c135] : memref<330xf32, #tpu.memory_space<smem>>
    %1355 = vector.broadcast %1354 : f32 to vector<8x8xf32>
    %1356 = arith.mulf %1355, %1353 : vector<8x8xf32>
    %1357 = arith.addf %1347, %1356 : vector<8x8xf32>
    %c300 = arith.constant 300 : index
    %1358 = memref.load %arg1[%c300] : memref<330xf32, #tpu.memory_space<smem>>
    %1359 = vector.broadcast %1358 : f32 to vector<8x8xf32>
    %1360 = arith.mulf %1359, %1353 : vector<8x8xf32>
    %1361 = arith.addf %1351, %1360 : vector<8x8xf32>
    %c9_409 = arith.constant 9 : index
    %c0_410 = arith.constant 0 : index
    %c1_411 = arith.constant 1 : index
    %1362 = vector.load %arg3[%c9_409, %c0_410, %c1_411] : memref<11x8x15xf32, #tpu.memory_space<vmem>>, vector<1x8x8xf32>
    %1363 = vector.shape_cast %1362 : vector<1x8x8xf32> to vector<8x8xf32>
    %c137 = arith.constant 137 : index
    %1364 = memref.load %arg1[%c137] : memref<330xf32, #tpu.memory_space<smem>>
    %1365 = vector.broadcast %1364 : f32 to vector<8x8xf32>
    %1366 = arith.mulf %1365, %1363 : vector<8x8xf32>
    %1367 = arith.addf %1357, %1366 : vector<8x8xf32>
    %c302 = arith.constant 302 : index
    %1368 = memref.load %arg1[%c302] : memref<330xf32, #tpu.memory_space<smem>>
    %1369 = vector.broadcast %1368 : f32 to vector<8x8xf32>
    %1370 = arith.mulf %1369, %1363 : vector<8x8xf32>
    %1371 = arith.addf %1361, %1370 : vector<8x8xf32>
    %c9_412 = arith.constant 9 : index
    %c0_413 = arith.constant 0 : index
    %c2_414 = arith.constant 2 : index
    %1372 = vector.load %arg3[%c9_412, %c0_413, %c2_414] : memref<11x8x15xf32, #tpu.memory_space<vmem>>, vector<1x8x8xf32>
    %1373 = vector.shape_cast %1372 : vector<1x8x8xf32> to vector<8x8xf32>
    %c139 = arith.constant 139 : index
    %1374 = memref.load %arg1[%c139] : memref<330xf32, #tpu.memory_space<smem>>
    %1375 = vector.broadcast %1374 : f32 to vector<8x8xf32>
    %1376 = arith.mulf %1375, %1373 : vector<8x8xf32>
    %1377 = arith.addf %1367, %1376 : vector<8x8xf32>
    %c304 = arith.constant 304 : index
    %1378 = memref.load %arg1[%c304] : memref<330xf32, #tpu.memory_space<smem>>
    %1379 = vector.broadcast %1378 : f32 to vector<8x8xf32>
    %1380 = arith.mulf %1379, %1373 : vector<8x8xf32>
    %1381 = arith.addf %1371, %1380 : vector<8x8xf32>
    %c9_415 = arith.constant 9 : index
    %c0_416 = arith.constant 0 : index
    %c3_417 = arith.constant 3 : index
    %1382 = vector.load %arg3[%c9_415, %c0_416, %c3_417] : memref<11x8x15xf32, #tpu.memory_space<vmem>>, vector<1x8x8xf32>
    %1383 = vector.shape_cast %1382 : vector<1x8x8xf32> to vector<8x8xf32>
    %c141 = arith.constant 141 : index
    %1384 = memref.load %arg1[%c141] : memref<330xf32, #tpu.memory_space<smem>>
    %1385 = vector.broadcast %1384 : f32 to vector<8x8xf32>
    %1386 = arith.mulf %1385, %1383 : vector<8x8xf32>
    %1387 = arith.addf %1377, %1386 : vector<8x8xf32>
    %c306 = arith.constant 306 : index
    %1388 = memref.load %arg1[%c306] : memref<330xf32, #tpu.memory_space<smem>>
    %1389 = vector.broadcast %1388 : f32 to vector<8x8xf32>
    %1390 = arith.mulf %1389, %1383 : vector<8x8xf32>
    %1391 = arith.addf %1381, %1390 : vector<8x8xf32>
    %c9_418 = arith.constant 9 : index
    %c0_419 = arith.constant 0 : index
    %c4_420 = arith.constant 4 : index
    %1392 = vector.load %arg3[%c9_418, %c0_419, %c4_420] : memref<11x8x15xf32, #tpu.memory_space<vmem>>, vector<1x8x8xf32>
    %1393 = vector.shape_cast %1392 : vector<1x8x8xf32> to vector<8x8xf32>
    %c143 = arith.constant 143 : index
    %1394 = memref.load %arg1[%c143] : memref<330xf32, #tpu.memory_space<smem>>
    %1395 = vector.broadcast %1394 : f32 to vector<8x8xf32>
    %1396 = arith.mulf %1395, %1393 : vector<8x8xf32>
    %1397 = arith.addf %1387, %1396 : vector<8x8xf32>
    %c308 = arith.constant 308 : index
    %1398 = memref.load %arg1[%c308] : memref<330xf32, #tpu.memory_space<smem>>
    %1399 = vector.broadcast %1398 : f32 to vector<8x8xf32>
    %1400 = arith.mulf %1399, %1393 : vector<8x8xf32>
    %1401 = arith.addf %1391, %1400 : vector<8x8xf32>
    %c9_421 = arith.constant 9 : index
    %c0_422 = arith.constant 0 : index
    %c5_423 = arith.constant 5 : index
    %1402 = vector.load %arg3[%c9_421, %c0_422, %c5_423] : memref<11x8x15xf32, #tpu.memory_space<vmem>>, vector<1x8x8xf32>
    %1403 = vector.shape_cast %1402 : vector<1x8x8xf32> to vector<8x8xf32>
    %c145 = arith.constant 145 : index
    %1404 = memref.load %arg1[%c145] : memref<330xf32, #tpu.memory_space<smem>>
    %1405 = vector.broadcast %1404 : f32 to vector<8x8xf32>
    %1406 = arith.mulf %1405, %1403 : vector<8x8xf32>
    %1407 = arith.addf %1397, %1406 : vector<8x8xf32>
    %c310 = arith.constant 310 : index
    %1408 = memref.load %arg1[%c310] : memref<330xf32, #tpu.memory_space<smem>>
    %1409 = vector.broadcast %1408 : f32 to vector<8x8xf32>
    %1410 = arith.mulf %1409, %1403 : vector<8x8xf32>
    %1411 = arith.addf %1401, %1410 : vector<8x8xf32>
    %c9_424 = arith.constant 9 : index
    %c0_425 = arith.constant 0 : index
    %c6_426 = arith.constant 6 : index
    %1412 = vector.load %arg3[%c9_424, %c0_425, %c6_426] : memref<11x8x15xf32, #tpu.memory_space<vmem>>, vector<1x8x8xf32>
    %1413 = vector.shape_cast %1412 : vector<1x8x8xf32> to vector<8x8xf32>
    %c147 = arith.constant 147 : index
    %1414 = memref.load %arg1[%c147] : memref<330xf32, #tpu.memory_space<smem>>
    %1415 = vector.broadcast %1414 : f32 to vector<8x8xf32>
    %1416 = arith.mulf %1415, %1413 : vector<8x8xf32>
    %1417 = arith.addf %1407, %1416 : vector<8x8xf32>
    %c312 = arith.constant 312 : index
    %1418 = memref.load %arg1[%c312] : memref<330xf32, #tpu.memory_space<smem>>
    %1419 = vector.broadcast %1418 : f32 to vector<8x8xf32>
    %1420 = arith.mulf %1419, %1413 : vector<8x8xf32>
    %1421 = arith.addf %1411, %1420 : vector<8x8xf32>
    %c9_427 = arith.constant 9 : index
    %c0_428 = arith.constant 0 : index
    %c7_429 = arith.constant 7 : index
    %1422 = vector.load %arg3[%c9_427, %c0_428, %c7_429] : memref<11x8x15xf32, #tpu.memory_space<vmem>>, vector<1x8x8xf32>
    %1423 = vector.shape_cast %1422 : vector<1x8x8xf32> to vector<8x8xf32>
    %c149 = arith.constant 149 : index
    %1424 = memref.load %arg1[%c149] : memref<330xf32, #tpu.memory_space<smem>>
    %1425 = vector.broadcast %1424 : f32 to vector<8x8xf32>
    %1426 = arith.mulf %1425, %1423 : vector<8x8xf32>
    %1427 = arith.addf %1417, %1426 : vector<8x8xf32>
    %c314 = arith.constant 314 : index
    %1428 = memref.load %arg1[%c314] : memref<330xf32, #tpu.memory_space<smem>>
    %1429 = vector.broadcast %1428 : f32 to vector<8x8xf32>
    %1430 = arith.mulf %1429, %1423 : vector<8x8xf32>
    %1431 = arith.addf %1421, %1430 : vector<8x8xf32>
    %c9_430 = arith.constant 9 : index
    %c0_431 = arith.constant 0 : index
    %c0_432 = arith.constant 0 : index
    %1432 = vector.load %arg4[%c9_430, %c0_431, %c0_432] : memref<11x8x15xf32, #tpu.memory_space<vmem>>, vector<1x8x8xf32>
    %1433 = vector.shape_cast %1432 : vector<1x8x8xf32> to vector<8x8xf32>
    %c136 = arith.constant 136 : index
    %1434 = memref.load %arg1[%c136] : memref<330xf32, #tpu.memory_space<smem>>
    %1435 = vector.broadcast %1434 : f32 to vector<8x8xf32>
    %1436 = arith.mulf %1435, %1433 : vector<8x8xf32>
    %1437 = arith.addf %1427, %1436 : vector<8x8xf32>
    %c301 = arith.constant 301 : index
    %1438 = memref.load %arg1[%c301] : memref<330xf32, #tpu.memory_space<smem>>
    %1439 = vector.broadcast %1438 : f32 to vector<8x8xf32>
    %1440 = arith.mulf %1439, %1433 : vector<8x8xf32>
    %1441 = arith.addf %1431, %1440 : vector<8x8xf32>
    %c9_433 = arith.constant 9 : index
    %c0_434 = arith.constant 0 : index
    %c1_435 = arith.constant 1 : index
    %1442 = vector.load %arg4[%c9_433, %c0_434, %c1_435] : memref<11x8x15xf32, #tpu.memory_space<vmem>>, vector<1x8x8xf32>
    %1443 = vector.shape_cast %1442 : vector<1x8x8xf32> to vector<8x8xf32>
    %c138 = arith.constant 138 : index
    %1444 = memref.load %arg1[%c138] : memref<330xf32, #tpu.memory_space<smem>>
    %1445 = vector.broadcast %1444 : f32 to vector<8x8xf32>
    %1446 = arith.mulf %1445, %1443 : vector<8x8xf32>
    %1447 = arith.addf %1437, %1446 : vector<8x8xf32>
    %c303 = arith.constant 303 : index
    %1448 = memref.load %arg1[%c303] : memref<330xf32, #tpu.memory_space<smem>>
    %1449 = vector.broadcast %1448 : f32 to vector<8x8xf32>
    %1450 = arith.mulf %1449, %1443 : vector<8x8xf32>
    %1451 = arith.addf %1441, %1450 : vector<8x8xf32>
    %c9_436 = arith.constant 9 : index
    %c0_437 = arith.constant 0 : index
    %c2_438 = arith.constant 2 : index
    %1452 = vector.load %arg4[%c9_436, %c0_437, %c2_438] : memref<11x8x15xf32, #tpu.memory_space<vmem>>, vector<1x8x8xf32>
    %1453 = vector.shape_cast %1452 : vector<1x8x8xf32> to vector<8x8xf32>
    %c140 = arith.constant 140 : index
    %1454 = memref.load %arg1[%c140] : memref<330xf32, #tpu.memory_space<smem>>
    %1455 = vector.broadcast %1454 : f32 to vector<8x8xf32>
    %1456 = arith.mulf %1455, %1453 : vector<8x8xf32>
    %1457 = arith.addf %1447, %1456 : vector<8x8xf32>
    %c305 = arith.constant 305 : index
    %1458 = memref.load %arg1[%c305] : memref<330xf32, #tpu.memory_space<smem>>
    %1459 = vector.broadcast %1458 : f32 to vector<8x8xf32>
    %1460 = arith.mulf %1459, %1453 : vector<8x8xf32>
    %1461 = arith.addf %1451, %1460 : vector<8x8xf32>
    %c9_439 = arith.constant 9 : index
    %c0_440 = arith.constant 0 : index
    %c3_441 = arith.constant 3 : index
    %1462 = vector.load %arg4[%c9_439, %c0_440, %c3_441] : memref<11x8x15xf32, #tpu.memory_space<vmem>>, vector<1x8x8xf32>
    %1463 = vector.shape_cast %1462 : vector<1x8x8xf32> to vector<8x8xf32>
    %c142 = arith.constant 142 : index
    %1464 = memref.load %arg1[%c142] : memref<330xf32, #tpu.memory_space<smem>>
    %1465 = vector.broadcast %1464 : f32 to vector<8x8xf32>
    %1466 = arith.mulf %1465, %1463 : vector<8x8xf32>
    %1467 = arith.addf %1457, %1466 : vector<8x8xf32>
    %c307 = arith.constant 307 : index
    %1468 = memref.load %arg1[%c307] : memref<330xf32, #tpu.memory_space<smem>>
    %1469 = vector.broadcast %1468 : f32 to vector<8x8xf32>
    %1470 = arith.mulf %1469, %1463 : vector<8x8xf32>
    %1471 = arith.addf %1461, %1470 : vector<8x8xf32>
    %c9_442 = arith.constant 9 : index
    %c0_443 = arith.constant 0 : index
    %c4_444 = arith.constant 4 : index
    %1472 = vector.load %arg4[%c9_442, %c0_443, %c4_444] : memref<11x8x15xf32, #tpu.memory_space<vmem>>, vector<1x8x8xf32>
    %1473 = vector.shape_cast %1472 : vector<1x8x8xf32> to vector<8x8xf32>
    %c144 = arith.constant 144 : index
    %1474 = memref.load %arg1[%c144] : memref<330xf32, #tpu.memory_space<smem>>
    %1475 = vector.broadcast %1474 : f32 to vector<8x8xf32>
    %1476 = arith.mulf %1475, %1473 : vector<8x8xf32>
    %1477 = arith.addf %1467, %1476 : vector<8x8xf32>
    %c309 = arith.constant 309 : index
    %1478 = memref.load %arg1[%c309] : memref<330xf32, #tpu.memory_space<smem>>
    %1479 = vector.broadcast %1478 : f32 to vector<8x8xf32>
    %1480 = arith.mulf %1479, %1473 : vector<8x8xf32>
    %1481 = arith.addf %1471, %1480 : vector<8x8xf32>
    %c9_445 = arith.constant 9 : index
    %c0_446 = arith.constant 0 : index
    %c5_447 = arith.constant 5 : index
    %1482 = vector.load %arg4[%c9_445, %c0_446, %c5_447] : memref<11x8x15xf32, #tpu.memory_space<vmem>>, vector<1x8x8xf32>
    %1483 = vector.shape_cast %1482 : vector<1x8x8xf32> to vector<8x8xf32>
    %c146 = arith.constant 146 : index
    %1484 = memref.load %arg1[%c146] : memref<330xf32, #tpu.memory_space<smem>>
    %1485 = vector.broadcast %1484 : f32 to vector<8x8xf32>
    %1486 = arith.mulf %1485, %1483 : vector<8x8xf32>
    %1487 = arith.addf %1477, %1486 : vector<8x8xf32>
    %c311 = arith.constant 311 : index
    %1488 = memref.load %arg1[%c311] : memref<330xf32, #tpu.memory_space<smem>>
    %1489 = vector.broadcast %1488 : f32 to vector<8x8xf32>
    %1490 = arith.mulf %1489, %1483 : vector<8x8xf32>
    %1491 = arith.addf %1481, %1490 : vector<8x8xf32>
    %c9_448 = arith.constant 9 : index
    %c0_449 = arith.constant 0 : index
    %c6_450 = arith.constant 6 : index
    %1492 = vector.load %arg4[%c9_448, %c0_449, %c6_450] : memref<11x8x15xf32, #tpu.memory_space<vmem>>, vector<1x8x8xf32>
    %1493 = vector.shape_cast %1492 : vector<1x8x8xf32> to vector<8x8xf32>
    %c148 = arith.constant 148 : index
    %1494 = memref.load %arg1[%c148] : memref<330xf32, #tpu.memory_space<smem>>
    %1495 = vector.broadcast %1494 : f32 to vector<8x8xf32>
    %1496 = arith.mulf %1495, %1493 : vector<8x8xf32>
    %1497 = arith.addf %1487, %1496 : vector<8x8xf32>
    %c313 = arith.constant 313 : index
    %1498 = memref.load %arg1[%c313] : memref<330xf32, #tpu.memory_space<smem>>
    %1499 = vector.broadcast %1498 : f32 to vector<8x8xf32>
    %1500 = arith.mulf %1499, %1493 : vector<8x8xf32>
    %1501 = arith.addf %1491, %1500 : vector<8x8xf32>
    %c10_451 = arith.constant 10 : index
    %c0_452 = arith.constant 0 : index
    %c0_453 = arith.constant 0 : index
    %1502 = vector.load %arg3[%c10_451, %c0_452, %c0_453] : memref<11x8x15xf32, #tpu.memory_space<vmem>>, vector<1x8x8xf32>
    %1503 = vector.shape_cast %1502 : vector<1x8x8xf32> to vector<8x8xf32>
    %c150 = arith.constant 150 : index
    %1504 = memref.load %arg1[%c150] : memref<330xf32, #tpu.memory_space<smem>>
    %1505 = vector.broadcast %1504 : f32 to vector<8x8xf32>
    %1506 = arith.mulf %1505, %1503 : vector<8x8xf32>
    %1507 = arith.addf %1497, %1506 : vector<8x8xf32>
    %c315 = arith.constant 315 : index
    %1508 = memref.load %arg1[%c315] : memref<330xf32, #tpu.memory_space<smem>>
    %1509 = vector.broadcast %1508 : f32 to vector<8x8xf32>
    %1510 = arith.mulf %1509, %1503 : vector<8x8xf32>
    %1511 = arith.addf %1501, %1510 : vector<8x8xf32>
    %c10_454 = arith.constant 10 : index
    %c0_455 = arith.constant 0 : index
    %c1_456 = arith.constant 1 : index
    %1512 = vector.load %arg3[%c10_454, %c0_455, %c1_456] : memref<11x8x15xf32, #tpu.memory_space<vmem>>, vector<1x8x8xf32>
    %1513 = vector.shape_cast %1512 : vector<1x8x8xf32> to vector<8x8xf32>
    %c152 = arith.constant 152 : index
    %1514 = memref.load %arg1[%c152] : memref<330xf32, #tpu.memory_space<smem>>
    %1515 = vector.broadcast %1514 : f32 to vector<8x8xf32>
    %1516 = arith.mulf %1515, %1513 : vector<8x8xf32>
    %1517 = arith.addf %1507, %1516 : vector<8x8xf32>
    %c317 = arith.constant 317 : index
    %1518 = memref.load %arg1[%c317] : memref<330xf32, #tpu.memory_space<smem>>
    %1519 = vector.broadcast %1518 : f32 to vector<8x8xf32>
    %1520 = arith.mulf %1519, %1513 : vector<8x8xf32>
    %1521 = arith.addf %1511, %1520 : vector<8x8xf32>
    %c10_457 = arith.constant 10 : index
    %c0_458 = arith.constant 0 : index
    %c2_459 = arith.constant 2 : index
    %1522 = vector.load %arg3[%c10_457, %c0_458, %c2_459] : memref<11x8x15xf32, #tpu.memory_space<vmem>>, vector<1x8x8xf32>
    %1523 = vector.shape_cast %1522 : vector<1x8x8xf32> to vector<8x8xf32>
    %c154 = arith.constant 154 : index
    %1524 = memref.load %arg1[%c154] : memref<330xf32, #tpu.memory_space<smem>>
    %1525 = vector.broadcast %1524 : f32 to vector<8x8xf32>
    %1526 = arith.mulf %1525, %1523 : vector<8x8xf32>
    %1527 = arith.addf %1517, %1526 : vector<8x8xf32>
    %c319 = arith.constant 319 : index
    %1528 = memref.load %arg1[%c319] : memref<330xf32, #tpu.memory_space<smem>>
    %1529 = vector.broadcast %1528 : f32 to vector<8x8xf32>
    %1530 = arith.mulf %1529, %1523 : vector<8x8xf32>
    %1531 = arith.addf %1521, %1530 : vector<8x8xf32>
    %c10_460 = arith.constant 10 : index
    %c0_461 = arith.constant 0 : index
    %c3_462 = arith.constant 3 : index
    %1532 = vector.load %arg3[%c10_460, %c0_461, %c3_462] : memref<11x8x15xf32, #tpu.memory_space<vmem>>, vector<1x8x8xf32>
    %1533 = vector.shape_cast %1532 : vector<1x8x8xf32> to vector<8x8xf32>
    %c156 = arith.constant 156 : index
    %1534 = memref.load %arg1[%c156] : memref<330xf32, #tpu.memory_space<smem>>
    %1535 = vector.broadcast %1534 : f32 to vector<8x8xf32>
    %1536 = arith.mulf %1535, %1533 : vector<8x8xf32>
    %1537 = arith.addf %1527, %1536 : vector<8x8xf32>
    %c321 = arith.constant 321 : index
    %1538 = memref.load %arg1[%c321] : memref<330xf32, #tpu.memory_space<smem>>
    %1539 = vector.broadcast %1538 : f32 to vector<8x8xf32>
    %1540 = arith.mulf %1539, %1533 : vector<8x8xf32>
    %1541 = arith.addf %1531, %1540 : vector<8x8xf32>
    %c10_463 = arith.constant 10 : index
    %c0_464 = arith.constant 0 : index
    %c4_465 = arith.constant 4 : index
    %1542 = vector.load %arg3[%c10_463, %c0_464, %c4_465] : memref<11x8x15xf32, #tpu.memory_space<vmem>>, vector<1x8x8xf32>
    %1543 = vector.shape_cast %1542 : vector<1x8x8xf32> to vector<8x8xf32>
    %c158 = arith.constant 158 : index
    %1544 = memref.load %arg1[%c158] : memref<330xf32, #tpu.memory_space<smem>>
    %1545 = vector.broadcast %1544 : f32 to vector<8x8xf32>
    %1546 = arith.mulf %1545, %1543 : vector<8x8xf32>
    %1547 = arith.addf %1537, %1546 : vector<8x8xf32>
    %c323 = arith.constant 323 : index
    %1548 = memref.load %arg1[%c323] : memref<330xf32, #tpu.memory_space<smem>>
    %1549 = vector.broadcast %1548 : f32 to vector<8x8xf32>
    %1550 = arith.mulf %1549, %1543 : vector<8x8xf32>
    %1551 = arith.addf %1541, %1550 : vector<8x8xf32>
    %c10_466 = arith.constant 10 : index
    %c0_467 = arith.constant 0 : index
    %c5_468 = arith.constant 5 : index
    %1552 = vector.load %arg3[%c10_466, %c0_467, %c5_468] : memref<11x8x15xf32, #tpu.memory_space<vmem>>, vector<1x8x8xf32>
    %1553 = vector.shape_cast %1552 : vector<1x8x8xf32> to vector<8x8xf32>
    %c160 = arith.constant 160 : index
    %1554 = memref.load %arg1[%c160] : memref<330xf32, #tpu.memory_space<smem>>
    %1555 = vector.broadcast %1554 : f32 to vector<8x8xf32>
    %1556 = arith.mulf %1555, %1553 : vector<8x8xf32>
    %1557 = arith.addf %1547, %1556 : vector<8x8xf32>
    %c325 = arith.constant 325 : index
    %1558 = memref.load %arg1[%c325] : memref<330xf32, #tpu.memory_space<smem>>
    %1559 = vector.broadcast %1558 : f32 to vector<8x8xf32>
    %1560 = arith.mulf %1559, %1553 : vector<8x8xf32>
    %1561 = arith.addf %1551, %1560 : vector<8x8xf32>
    %c10_469 = arith.constant 10 : index
    %c0_470 = arith.constant 0 : index
    %c6_471 = arith.constant 6 : index
    %1562 = vector.load %arg3[%c10_469, %c0_470, %c6_471] : memref<11x8x15xf32, #tpu.memory_space<vmem>>, vector<1x8x8xf32>
    %1563 = vector.shape_cast %1562 : vector<1x8x8xf32> to vector<8x8xf32>
    %c162 = arith.constant 162 : index
    %1564 = memref.load %arg1[%c162] : memref<330xf32, #tpu.memory_space<smem>>
    %1565 = vector.broadcast %1564 : f32 to vector<8x8xf32>
    %1566 = arith.mulf %1565, %1563 : vector<8x8xf32>
    %1567 = arith.addf %1557, %1566 : vector<8x8xf32>
    %c327 = arith.constant 327 : index
    %1568 = memref.load %arg1[%c327] : memref<330xf32, #tpu.memory_space<smem>>
    %1569 = vector.broadcast %1568 : f32 to vector<8x8xf32>
    %1570 = arith.mulf %1569, %1563 : vector<8x8xf32>
    %1571 = arith.addf %1561, %1570 : vector<8x8xf32>
    %c10_472 = arith.constant 10 : index
    %c0_473 = arith.constant 0 : index
    %c7_474 = arith.constant 7 : index
    %1572 = vector.load %arg3[%c10_472, %c0_473, %c7_474] : memref<11x8x15xf32, #tpu.memory_space<vmem>>, vector<1x8x8xf32>
    %1573 = vector.shape_cast %1572 : vector<1x8x8xf32> to vector<8x8xf32>
    %c164 = arith.constant 164 : index
    %1574 = memref.load %arg1[%c164] : memref<330xf32, #tpu.memory_space<smem>>
    %1575 = vector.broadcast %1574 : f32 to vector<8x8xf32>
    %1576 = arith.mulf %1575, %1573 : vector<8x8xf32>
    %1577 = arith.addf %1567, %1576 : vector<8x8xf32>
    %c329 = arith.constant 329 : index
    %1578 = memref.load %arg1[%c329] : memref<330xf32, #tpu.memory_space<smem>>
    %1579 = vector.broadcast %1578 : f32 to vector<8x8xf32>
    %1580 = arith.mulf %1579, %1573 : vector<8x8xf32>
    %1581 = arith.addf %1571, %1580 : vector<8x8xf32>
    %c10_475 = arith.constant 10 : index
    %c0_476 = arith.constant 0 : index
    %c0_477 = arith.constant 0 : index
    %1582 = vector.load %arg4[%c10_475, %c0_476, %c0_477] : memref<11x8x15xf32, #tpu.memory_space<vmem>>, vector<1x8x8xf32>
    %1583 = vector.shape_cast %1582 : vector<1x8x8xf32> to vector<8x8xf32>
    %c151 = arith.constant 151 : index
    %1584 = memref.load %arg1[%c151] : memref<330xf32, #tpu.memory_space<smem>>
    %1585 = vector.broadcast %1584 : f32 to vector<8x8xf32>
    %1586 = arith.mulf %1585, %1583 : vector<8x8xf32>
    %1587 = arith.addf %1577, %1586 : vector<8x8xf32>
    %c316 = arith.constant 316 : index
    %1588 = memref.load %arg1[%c316] : memref<330xf32, #tpu.memory_space<smem>>
    %1589 = vector.broadcast %1588 : f32 to vector<8x8xf32>
    %1590 = arith.mulf %1589, %1583 : vector<8x8xf32>
    %1591 = arith.addf %1581, %1590 : vector<8x8xf32>
    %c10_478 = arith.constant 10 : index
    %c0_479 = arith.constant 0 : index
    %c1_480 = arith.constant 1 : index
    %1592 = vector.load %arg4[%c10_478, %c0_479, %c1_480] : memref<11x8x15xf32, #tpu.memory_space<vmem>>, vector<1x8x8xf32>
    %1593 = vector.shape_cast %1592 : vector<1x8x8xf32> to vector<8x8xf32>
    %c153 = arith.constant 153 : index
    %1594 = memref.load %arg1[%c153] : memref<330xf32, #tpu.memory_space<smem>>
    %1595 = vector.broadcast %1594 : f32 to vector<8x8xf32>
    %1596 = arith.mulf %1595, %1593 : vector<8x8xf32>
    %1597 = arith.addf %1587, %1596 : vector<8x8xf32>
    %c318 = arith.constant 318 : index
    %1598 = memref.load %arg1[%c318] : memref<330xf32, #tpu.memory_space<smem>>
    %1599 = vector.broadcast %1598 : f32 to vector<8x8xf32>
    %1600 = arith.mulf %1599, %1593 : vector<8x8xf32>
    %1601 = arith.addf %1591, %1600 : vector<8x8xf32>
    %c10_481 = arith.constant 10 : index
    %c0_482 = arith.constant 0 : index
    %c2_483 = arith.constant 2 : index
    %1602 = vector.load %arg4[%c10_481, %c0_482, %c2_483] : memref<11x8x15xf32, #tpu.memory_space<vmem>>, vector<1x8x8xf32>
    %1603 = vector.shape_cast %1602 : vector<1x8x8xf32> to vector<8x8xf32>
    %c155 = arith.constant 155 : index
    %1604 = memref.load %arg1[%c155] : memref<330xf32, #tpu.memory_space<smem>>
    %1605 = vector.broadcast %1604 : f32 to vector<8x8xf32>
    %1606 = arith.mulf %1605, %1603 : vector<8x8xf32>
    %1607 = arith.addf %1597, %1606 : vector<8x8xf32>
    %c320 = arith.constant 320 : index
    %1608 = memref.load %arg1[%c320] : memref<330xf32, #tpu.memory_space<smem>>
    %1609 = vector.broadcast %1608 : f32 to vector<8x8xf32>
    %1610 = arith.mulf %1609, %1603 : vector<8x8xf32>
    %1611 = arith.addf %1601, %1610 : vector<8x8xf32>
    %c10_484 = arith.constant 10 : index
    %c0_485 = arith.constant 0 : index
    %c3_486 = arith.constant 3 : index
    %1612 = vector.load %arg4[%c10_484, %c0_485, %c3_486] : memref<11x8x15xf32, #tpu.memory_space<vmem>>, vector<1x8x8xf32>
    %1613 = vector.shape_cast %1612 : vector<1x8x8xf32> to vector<8x8xf32>
    %c157 = arith.constant 157 : index
    %1614 = memref.load %arg1[%c157] : memref<330xf32, #tpu.memory_space<smem>>
    %1615 = vector.broadcast %1614 : f32 to vector<8x8xf32>
    %1616 = arith.mulf %1615, %1613 : vector<8x8xf32>
    %1617 = arith.addf %1607, %1616 : vector<8x8xf32>
    %c322 = arith.constant 322 : index
    %1618 = memref.load %arg1[%c322] : memref<330xf32, #tpu.memory_space<smem>>
    %1619 = vector.broadcast %1618 : f32 to vector<8x8xf32>
    %1620 = arith.mulf %1619, %1613 : vector<8x8xf32>
    %1621 = arith.addf %1611, %1620 : vector<8x8xf32>
    %c10_487 = arith.constant 10 : index
    %c0_488 = arith.constant 0 : index
    %c4_489 = arith.constant 4 : index
    %1622 = vector.load %arg4[%c10_487, %c0_488, %c4_489] : memref<11x8x15xf32, #tpu.memory_space<vmem>>, vector<1x8x8xf32>
    %1623 = vector.shape_cast %1622 : vector<1x8x8xf32> to vector<8x8xf32>
    %c159 = arith.constant 159 : index
    %1624 = memref.load %arg1[%c159] : memref<330xf32, #tpu.memory_space<smem>>
    %1625 = vector.broadcast %1624 : f32 to vector<8x8xf32>
    %1626 = arith.mulf %1625, %1623 : vector<8x8xf32>
    %1627 = arith.addf %1617, %1626 : vector<8x8xf32>
    %c324 = arith.constant 324 : index
    %1628 = memref.load %arg1[%c324] : memref<330xf32, #tpu.memory_space<smem>>
    %1629 = vector.broadcast %1628 : f32 to vector<8x8xf32>
    %1630 = arith.mulf %1629, %1623 : vector<8x8xf32>
    %1631 = arith.addf %1621, %1630 : vector<8x8xf32>
    %c10_490 = arith.constant 10 : index
    %c0_491 = arith.constant 0 : index
    %c5_492 = arith.constant 5 : index
    %1632 = vector.load %arg4[%c10_490, %c0_491, %c5_492] : memref<11x8x15xf32, #tpu.memory_space<vmem>>, vector<1x8x8xf32>
    %1633 = vector.shape_cast %1632 : vector<1x8x8xf32> to vector<8x8xf32>
    %c161 = arith.constant 161 : index
    %1634 = memref.load %arg1[%c161] : memref<330xf32, #tpu.memory_space<smem>>
    %1635 = vector.broadcast %1634 : f32 to vector<8x8xf32>
    %1636 = arith.mulf %1635, %1633 : vector<8x8xf32>
    %1637 = arith.addf %1627, %1636 : vector<8x8xf32>
    %c326 = arith.constant 326 : index
    %1638 = memref.load %arg1[%c326] : memref<330xf32, #tpu.memory_space<smem>>
    %1639 = vector.broadcast %1638 : f32 to vector<8x8xf32>
    %1640 = arith.mulf %1639, %1633 : vector<8x8xf32>
    %1641 = arith.addf %1631, %1640 : vector<8x8xf32>
    %c10_493 = arith.constant 10 : index
    %c0_494 = arith.constant 0 : index
    %c6_495 = arith.constant 6 : index
    %1642 = vector.load %arg4[%c10_493, %c0_494, %c6_495] : memref<11x8x15xf32, #tpu.memory_space<vmem>>, vector<1x8x8xf32>
    %1643 = vector.shape_cast %1642 : vector<1x8x8xf32> to vector<8x8xf32>
    %c163 = arith.constant 163 : index
    %1644 = memref.load %arg1[%c163] : memref<330xf32, #tpu.memory_space<smem>>
    %1645 = vector.broadcast %1644 : f32 to vector<8x8xf32>
    %1646 = arith.mulf %1645, %1643 : vector<8x8xf32>
    %1647 = arith.addf %1637, %1646 : vector<8x8xf32>
    %c328 = arith.constant 328 : index
    %1648 = memref.load %arg1[%c328] : memref<330xf32, #tpu.memory_space<smem>>
    %1649 = vector.broadcast %1648 : f32 to vector<8x8xf32>
    %1650 = arith.mulf %1649, %1643 : vector<8x8xf32>
    %1651 = arith.addf %1641, %1650 : vector<8x8xf32>
    %c0_496 = arith.constant 0 : index
    %1652 = memref.load %arg2[%c0_496] : memref<2xf32, #tpu.memory_space<smem>>
    %1653 = vector.broadcast %1652 : f32 to vector<8x8xf32>
    %1654 = arith.addf %1647, %1653 : vector<8x8xf32>
    %c1_497 = arith.constant 1 : index
    %1655 = memref.load %arg2[%c1_497] : memref<2xf32, #tpu.memory_space<smem>>
    %1656 = vector.broadcast %1655 : f32 to vector<8x8xf32>
    %1657 = arith.addf %1651, %1656 : vector<8x8xf32>
    %1658 = arith.mulf %1654, %1654 : vector<8x8xf32>
    %1659 = arith.mulf %1657, %1657 : vector<8x8xf32>
    %1660 = arith.addf %1658, %1659 : vector<8x8xf32>
    %1661 = math.sqrt %1660 : vector<8x8xf32>
    %cst_498 = arith.constant 9.99999996E-13 : f32
    %1662 = vector.broadcast %cst_498 : f32 to vector<8x8xf32>
    %1663 = arith.addf %1661, %1662 : vector<8x8xf32>
    %1664 = arith.divf %1654, %1663 : vector<8x8xf32>
    %cst_499 = arith.constant 1.000000e+00 : f32
    %1665 = vector.broadcast %cst_499 : f32 to vector<8x8xf32>
    %1666 = arith.addf %1664, %1665 : vector<8x8xf32>
    %cst_500 = arith.constant 5.000000e-01 : f32
    %1667 = vector.broadcast %cst_500 : f32 to vector<8x8xf32>
    %1668 = arith.mulf %1666, %1667 : vector<8x8xf32>
    %c0_501 = arith.constant 0 : index
    %c0_502 = arith.constant 0 : index
    %c0_503 = arith.constant 0 : index
    %1669 = vector.load %arg5[%c0_501, %c0_502, %c0_503] : memref<2x8x8xf32, #tpu.memory_space<vmem>>, vector<1x8x8xf32>
    %1670 = vector.shape_cast %1669 : vector<1x8x8xf32> to vector<8x8xf32>
    %1671 = vector.shape_cast %1668 : vector<8x8xf32> to vector<1x8x8xf32>
    tpu.vector_store %arg5[%c0_501, %c0_502, %c0_503], %1671 {strides = array<i32>} : memref<2x8x8xf32, #tpu.memory_space<vmem>>, vector<1x8x8xf32>,
    %1672 = arith.divf %1657, %1663 : vector<8x8xf32>
    %cst_504 = arith.constant 1.000000e+00 : f32
    %1673 = vector.broadcast %cst_504 : f32 to vector<8x8xf32>
    %1674 = arith.addf %1672, %1673 : vector<8x8xf32>
    %cst_505 = arith.constant 5.000000e-01 : f32
    %1675 = vector.broadcast %cst_505 : f32 to vector<8x8xf32>
    %1676 = arith.mulf %1674, %1675 : vector<8x8xf32>
    %c1_506 = arith.constant 1 : index
    %c0_507 = arith.constant 0 : index
    %c0_508 = arith.constant 0 : index
    %1677 = vector.load %arg5[%c1_506, %c0_507, %c0_508] : memref<2x8x8xf32, #tpu.memory_space<vmem>>, vector<1x8x8xf32>
    %1678 = vector.shape_cast %1677 : vector<1x8x8xf32> to vector<8x8xf32>
    %1679 = vector.shape_cast %1676 : vector<8x8xf32> to vector<1x8x8xf32>
    tpu.vector_store %arg5[%c1_506, %c0_507, %c0_508], %1679 {strides = array<i32>} : memref<2x8x8xf32, #tpu.memory_space<vmem>>, vector<1x8x8xf32>,
    return
  }
  func.func @transform_0(%arg0: i32) -> i32 {
    %c0_i32 = arith.constant 0 : i32
    %c0_i32_0 = arith.constant 0 : i32
    return %c0_i32 : i32
  }
  func.func @transform_1(%arg0: i32) -> i32 {
    %c0_i32 = arith.constant 0 : i32
    %c0_i32_0 = arith.constant 0 : i32
    return %c0_i32 : i32
  }
  func.func @transform_2(%arg0: i32) -> (i32, i32, i32) {
    %c0_i32 = arith.constant 0 : i32
    %c0_i32_0 = arith.constant 0 : i32
    %c0_i32_1 = arith.constant 0 : i32
    return %c0_i32, %arg0, %c0_i32_0 : i32, i32, i32
  }
  func.func @transform_3(%arg0: i32) -> (i32, i32, i32) {
    %c0_i32 = arith.constant 0 : i32
    %c0_i32_0 = arith.constant 0 : i32
    %c0_i32_1 = arith.constant 0 : i32
    return %c0_i32, %arg0, %c0_i32_0 : i32, i32, i32
  }
  func.func @transform_4(%arg0: i32) -> (i32, i32, i32) {
    %c0_i32 = arith.constant 0 : i32
    %c0_i32_0 = arith.constant 0 : i32
    %c0_i32_1 = arith.constant 0 : i32
    return %c0_i32, %arg0, %c0_i32_0 : i32, i32, i32
  }
}

</mosaic_0001>

<llo_original>
// kernel: tpu_custom_call.1
$region0: #{tpu_custom_call.1}
  #allocation0 [shape = 'u32[]', space=smem, size = 0x4, offset = 0x4, fixed_abs, tag = 'smem constant byte address 0x4 - core index']
  #allocation1 [shape = 'u32[72,128]{1,0:T(1,128)}', space=vmem, size = 0x9000, scoped, tag = 'internal scratch']
  %s0 = inlined_call_operand.hbm [shape: f32[330], index: 0, kind: input, shape index: {}]
  %s1 = inlined_call_operand.hbm [shape: f32[2], index: 1, kind: input, shape index: {}]
  %s2 = inlined_call_operand.hbm [shape: f32[11,8,15], index: 2, kind: input, shape index: {}]
  %s3 = inlined_call_operand.hbm [shape: f32[11,8,15], index: 3, kind: input, shape index: {}]
  %s4 = inlined_call_operand.hbm [shape: f32[2,8,8], index: 4, kind: output, shape index: {}]
  %s5 = sld [smem:[#allocation0]]
  $region42: #{tpu_custom_call.1} parent=0
    _
  %s7 = ssub.s32 1, %s5
  %s8 = scalar_select 0, %s7, %s5
  $region1: #{tpu_custom_call.1} parent=0
    #allocation2 [shape = 'u8[1536]{0}', space=smem, size = 0x600, scoped, tag = 'input window, operand 0, single buffered']
    #allocation3 [shape = 's32[1]{0}', space=sflag, size = 0x4, scoped, tag = 'scoped memory for tpu_custom_call.1']
    #allocation4 [shape = 's32[1]{0}', space=sflag, size = 0x4, scoped, tag = 'scoped memory for tpu_custom_call.1']
    #allocation5 [shape = 's32[1]{0}', space=sflag, size = 0x4, scoped, tag = 'scoped memory for tpu_custom_call.1']
    #allocation6 [shape = 'u8[512]{0}', space=smem, size = 0x200, scoped, tag = 'input window, operand 1, single buffered']
    #allocation7 [shape = 's32[1]{0}', space=sflag, size = 0x4, scoped, tag = 'scoped memory for tpu_custom_call.1']
    #allocation8 [shape = 'u8[45056]{0}', space=vmem, size = 0xb000, scoped, tag = 'input window, operand 2, single buffered']
    #allocation9 [shape = 'u8[45056]{0}', space=vmem, size = 0xb000, scoped, tag = 'input window, operand 3, single buffered']
    #allocation10 [shape = 's32[1]{0}', space=sflag, size = 0x4, scoped, tag = 'scoped memory for tpu_custom_call.1']
    #allocation11 [shape = 'u8[8192]{0}', space=vmem, size = 0x2000, scoped, tag = 'output window, operand 0, single buffered']
    %9 = vsyncpa [#allocation5], 0
    %10 = vsyncpa [#allocation7], 0
    %11 = vsyncpa [#allocation3], 0
    %12 = vsyncpa [#allocation10], 0
    %13 = vsyncpa [#allocation4], 0
    // Predicated region
    $region2: #{tpu_custom_call.1} parent=1 // pred_check
      _
    $region3: #{tpu_custom_call.1} parent=1 // pred_check_branch
      %15 = sbr.rel (0) target = $region5
    $region4: #{tpu_custom_call.1} parent=1 // pred_region
      %17 = vsyncadd [#allocation5], 0
      %s19 = sshll.u32 %s0, 4
      %s20 = int_to_ptr.hbm [resolvable:$true] %s19
      %22 = dma.hbm_to_smem %s20, 48, [#allocation2], [#allocation5]
    $region5: #{tpu_custom_call.1} parent=1 // pred_fallthru
      _
    // Predicated region
    $region6: #{tpu_custom_call.1} parent=1 // pred_check
      _
    $region7: #{tpu_custom_call.1} parent=1 // pred_check_branch
      %24 = sbr.rel (0) target = $region9
    $region8: #{tpu_custom_call.1} parent=1 // pred_region
      %26 = vsyncadd [#allocation7], 0
      %s28 = sshll.u32 %s1, 4
      %s29 = int_to_ptr.hbm [resolvable:$true] %s28
      %31 = dma.hbm_to_smem %s29, 16, [#allocation6], [#allocation7]
    $region9: #{tpu_custom_call.1} parent=1 // pred_fallthru
      _
    // Predicated region
    $region10: #{tpu_custom_call.1} parent=1 // pred_check
      _
    $region11: #{tpu_custom_call.1} parent=1 // pred_check_branch
      %33 = sbr.rel (0) target = $region13
    $region12: #{tpu_custom_call.1} parent=1 // pred_region
      %35 = vsyncadd [#allocation3], 0
      %s36 = sshll.u32 %s2, 4
      %s37 = int_to_ptr.hbm [resolvable:$true] %s36
      %s38 = sshll.u32 [#allocation8], 4
      %s39 = int_to_ptr.vmem [resolvable:$true] %s38
      %44 = dma.hbm_to_vmem [thread:$0]  %s37, 1408, %s39, [#allocation3], 128, 128, 8
    $region13: #{tpu_custom_call.1} parent=1 // pred_fallthru
      _
    // Predicated region
    $region14: #{tpu_custom_call.1} parent=1 // pred_check
      _
    $region15: #{tpu_custom_call.1} parent=1 // pred_check_branch
      %46 = sbr.rel (0) target = $region17
    $region16: #{tpu_custom_call.1} parent=1 // pred_region
      %48 = vsyncadd [#allocation10], 0
      %s49 = sshll.u32 %s3, 4
      %s50 = int_to_ptr.hbm [resolvable:$true] %s49
      %s51 = sshll.u32 [#allocation9], 4
      %s52 = int_to_ptr.vmem [resolvable:$true] %s51
      %57 = dma.hbm_to_vmem [thread:$0]  %s50, 1408, %s52, [#allocation10], 128, 128, 8
    $region17: #{tpu_custom_call.1} parent=1 // pred_fallthru
      _
    // Predicated region
    $region18: #{tpu_custom_call.1} parent=1 // pred_check
      _
    $region19: #{tpu_custom_call.1} parent=1 // pred_check_branch
      %59 = sbr.rel (0) target = $region21
    $region20: #{tpu_custom_call.1} parent=1 // pred_region
      %61 = dma.done [#allocation5], 48
    $region21: #{tpu_custom_call.1} parent=1 // pred_fallthru
      _
    // Predicated region
    $region22: #{tpu_custom_call.1} parent=1 // pred_check
      _
    $region23: #{tpu_custom_call.1} parent=1 // pred_check_branch
      %63 = sbr.rel (0) target = $region25
    $region24: #{tpu_custom_call.1} parent=1 // pred_region
      %65 = dma.done [#allocation7], 16
    $region25: #{tpu_custom_call.1} parent=1 // pred_fallthru
      _
    // Predicated region
    $region26: #{tpu_custom_call.1} parent=1 // pred_check
      _
    $region27: #{tpu_custom_call.1} parent=1 // pred_check_branch
      %67 = sbr.rel (0) target = $region29
    $region28: #{tpu_custom_call.1} parent=1 // pred_region
      %69 = dma.done [#allocation3], 1408
    $region29: #{tpu_custom_call.1} parent=1 // pred_fallthru
      _
    // Predicated region
    $region30: #{tpu_custom_call.1} parent=1 // pred_check
      _
    $region31: #{tpu_custom_call.1} parent=1 // pred_check_branch
      %71 = sbr.rel (0) target = $region33
    $region32: #{tpu_custom_call.1} parent=1 // pred_region
      %73 = dma.done [#allocation10], 1408
    $region33: #{tpu_custom_call.1} parent=1 // pred_fallthru
      _
    %74 = sfence
    %v75 = vld [vmem:[#allocation8] sm:$0xff]
    %s76 = sld [smem:[#allocation2]]
    %v77 = vstv %s76
    %v78 = vmul.f32 %v77, %v75
    %v79 = vadd.f32 %v78, 0.0
    %s80 = sld [smem:[#allocation2 + $0xa5]]
    %v81 = vstv %s80
    %v82 = vmul.f32 %v81, %v75
    %v83 = vadd.f32 %v82, 0.0
    %s84 = sld [smem:[#allocation2 + $0x2]]
    %v85 = vstv %s84
    %v86 = vmul.f32 %v85, %v75
    %88 = vrot.lane.b32.xlu0 %v86, 127
    %v89 = vpop.permute.xlu0 %88
    %v91 = vadd.f32 %v79, %v89
    %s92 = sld [smem:[#allocation2 + $0xa7]]
    %v93 = vstv %s92
    %v94 = vmul.f32 %v93, %v75
    %96 = vrot.lane.b32.xlu0 %v94, 127
    %v97 = vpop.permute.xlu0 %96
    %v99 = vadd.f32 %v83, %v97
    %s100 = sld [smem:[#allocation2 + $0x4]]
    %v101 = vstv %s100
    %v102 = vmul.f32 %v101, %v75
    %104 = vrot.lane.b32.xlu0 %v102, 126
    %v105 = vpop.permute.xlu0 %104
    %v107 = vadd.f32 %v91, %v105
    %s108 = sld [smem:[#allocation2 + $0xa9]]
    %v109 = vstv %s108
    %v110 = vmul.f32 %v109, %v75
    %112 = vrot.lane.b32.xlu0 %v110, 126
    %v113 = vpop.permute.xlu0 %112
    %v115 = vadd.f32 %v99, %v113
    %s116 = sld [smem:[#allocation2 + $0x6]]
    %v117 = vstv %s116
    %v118 = vmul.f32 %v117, %v75
    %120 = vrot.lane.b32.xlu0 %v118, 125
    %v121 = vpop.permute.xlu0 %120
    %v123 = vadd.f32 %v107, %v121
    %s124 = sld [smem:[#allocation2 + $0xab]]
    %v125 = vstv %s124
    %v126 = vmul.f32 %v125, %v75
    %128 = vrot.lane.b32.xlu0 %v126, 125
    %v129 = vpop.permute.xlu0 %128
    %v131 = vadd.f32 %v115, %v129
    %s132 = sld [smem:[#allocation2 + $0x8]]
    %v133 = vstv %s132
    %v134 = vmul.f32 %v133, %v75
    %136 = vrot.lane.b32.xlu0 %v134, 124
    %v137 = vpop.permute.xlu0 %136
    %v139 = vadd.f32 %v123, %v137
    %s140 = sld [smem:[#allocation2 + $0xad]]
    %v141 = vstv %s140
    %v142 = vmul.f32 %v141, %v75
    %144 = vrot.lane.b32.xlu0 %v142, 124
    %v145 = vpop.permute.xlu0 %144
    %v147 = vadd.f32 %v131, %v145
    %s148 = sld [smem:[#allocation2 + $0xa]]
    %v149 = vstv %s148
    %v150 = vmul.f32 %v149, %v75
    %152 = vrot.lane.b32.xlu0 %v150, 123
    %v153 = vpop.permute.xlu0 %152
    %v155 = vadd.f32 %v139, %v153
    %s156 = sld [smem:[#allocation2 + $0xaf]]
    %v157 = vstv %s156
    %v158 = vmul.f32 %v157, %v75
    %160 = vrot.lane.b32.xlu0 %v158, 123
    %v161 = vpop.permute.xlu0 %160
    %v163 = vadd.f32 %v147, %v161
    %s164 = sld [smem:[#allocation2 + $0xc]]
    %v165 = vstv %s164
    %v166 = vmul.f32 %v165, %v75
    %168 = vrot.lane.b32.xlu0 %v166, 122
    %v169 = vpop.permute.xlu0 %168
    %v171 = vadd.f32 %v155, %v169
    %s172 = sld [smem:[#allocation2 + $0xb1]]
    %v173 = vstv %s172
    %v174 = vmul.f32 %v173, %v75
    %176 = vrot.lane.b32.xlu0 %v174, 122
    %v177 = vpop.permute.xlu0 %176
    %v179 = vadd.f32 %v163, %v177
    %s180 = sld [smem:[#allocation2 + $0xe]]
    %v181 = vstv %s180
    %v182 = vmul.f32 %v181, %v75
    %184 = vrot.lane.b32.xlu0 %v182, 121
    %v185 = vpop.permute.xlu0 %184
    %v187 = vadd.f32 %v171, %v185
    %s188 = sld [smem:[#allocation2 + $0xb3]]
    %v189 = vstv %s188
    %v190 = vmul.f32 %v189, %v75
    %192 = vrot.lane.b32.xlu0 %v190, 121
    %v193 = vpop.permute.xlu0 %192
    %v195 = vadd.f32 %v179, %v193
    %v196 = vld [vmem:[#allocation9] sm:$0xff]
    %s197 = sld [smem:[#allocation2 + $0x1]]
    %v198 = vstv %s197
    %v199 = vmul.f32 %v198, %v196
    %v200 = vadd.f32 %v187, %v199
    %s201 = sld [smem:[#allocation2 + $0xa6]]
    %v202 = vstv %s201
    %v203 = vmul.f32 %v202, %v196
    %v204 = vadd.f32 %v195, %v203
    %s205 = sld [smem:[#allocation2 + $0x3]]
    %v206 = vstv %s205
    %v207 = vmul.f32 %v206, %v196
    %209 = vrot.lane.b32.xlu0 %v207, 127
    %v210 = vpop.permute.xlu0 %209
    %v212 = vadd.f32 %v200, %v210
    %s213 = sld [smem:[#allocation2 + $0xa8]]
    %v214 = vstv %s213
    %v215 = vmul.f32 %v214, %v196
    %217 = vrot.lane.b32.xlu0 %v215, 127
    %v218 = vpop.permute.xlu0 %217
    %v220 = vadd.f32 %v204, %v218
    %s221 = sld [smem:[#allocation2 + $0x5]]
    %v222 = vstv %s221
    %v223 = vmul.f32 %v222, %v196
    %225 = vrot.lane.b32.xlu0 %v223, 126
    %v226 = vpop.permute.xlu0 %225
    %v228 = vadd.f32 %v212, %v226
    %s229 = sld [smem:[#allocation2 + $0xaa]]
    %v230 = vstv %s229
    %v231 = vmul.f32 %v230, %v196
    %233 = vrot.lane.b32.xlu0 %v231, 126
    %v234 = vpop.permute.xlu0 %233
    %v236 = vadd.f32 %v220, %v234
    %s237 = sld [smem:[#allocation2 + $0x7]]
    %v238 = vstv %s237
    %v239 = vmul.f32 %v238, %v196
    %241 = vrot.lane.b32.xlu0 %v239, 125
    %v242 = vpop.permute.xlu0 %241
    %v244 = vadd.f32 %v228, %v242
    %s245 = sld [smem:[#allocation2 + $0xac]]
    %v246 = vstv %s245
    %v247 = vmul.f32 %v246, %v196
    %249 = vrot.lane.b32.xlu0 %v247, 125
    %v250 = vpop.permute.xlu0 %249
    %v252 = vadd.f32 %v236, %v250
    %s253 = sld [smem:[#allocation2 + $0x9]]
    %v254 = vstv %s253
    %v255 = vmul.f32 %v254, %v196
    %257 = vrot.lane.b32.xlu0 %v255, 124
    %v258 = vpop.permute.xlu0 %257
    %v260 = vadd.f32 %v244, %v258
    %s261 = sld [smem:[#allocation2 + $0xae]]
    %v262 = vstv %s261
    %v263 = vmul.f32 %v262, %v196
    %265 = vrot.lane.b32.xlu0 %v263, 124
    %v266 = vpop.permute.xlu0 %265
    %v268 = vadd.f32 %v252, %v266
    %s269 = sld [smem:[#allocation2 + $0xb]]
    %v270 = vstv %s269
    %v271 = vmul.f32 %v270, %v196
    %273 = vrot.lane.b32.xlu0 %v271, 123
    %v274 = vpop.permute.xlu0 %273
    %v276 = vadd.f32 %v260, %v274
    %s277 = sld [smem:[#allocation2 + $0xb0]]
    %v278 = vstv %s277
    %v279 = vmul.f32 %v278, %v196
    %281 = vrot.lane.b32.xlu0 %v279, 123
    %v282 = vpop.permute.xlu0 %281
    %v284 = vadd.f32 %v268, %v282
    %s285 = sld [smem:[#allocation2 + $0xd]]
    %v286 = vstv %s285
    %v287 = vmul.f32 %v286, %v196
    %289 = vrot.lane.b32.xlu0 %v287, 122
    %v290 = vpop.permute.xlu0 %289
    %v292 = vadd.f32 %v276, %v290
    %s293 = sld [smem:[#allocation2 + $0xb2]]
    %v294 = vstv %s293
    %v295 = vmul.f32 %v294, %v196
    %297 = vrot.lane.b32.xlu0 %v295, 122
    %v298 = vpop.permute.xlu0 %297
    %v300 = vadd.f32 %v284, %v298
    %s301 = scalar_lea.vmem [#allocation8], 8
    %v302 = vld [vmem:[%s301] sm:$0xff]
    %s303 = sld [smem:[#allocation2 + $0xf]]
    %v304 = vstv %s303
    %v305 = vmul.f32 %v304, %v302
    %v306 = vadd.f32 %v292, %v305
    %s307 = sld [smem:[#allocation2 + $0xb4]]
    %v308 = vstv %s307
    %v309 = vmul.f32 %v308, %v302
    %v310 = vadd.f32 %v300, %v309
    %s311 = sld [smem:[#allocation2 + $0x11]]
    %v312 = vstv %s311
    %v313 = vmul.f32 %v312, %v302
    %315 = vrot.lane.b32.xlu0 %v313, 127
    %v316 = vpop.permute.xlu0 %315
    %v318 = vadd.f32 %v306, %v316
    %s319 = sld [smem:[#allocation2 + $0xb6]]
    %v320 = vstv %s319
    %v321 = vmul.f32 %v320, %v302
    %323 = vrot.lane.b32.xlu0 %v321, 127
    %v324 = vpop.permute.xlu0 %323
    %v326 = vadd.f32 %v310, %v324
    %s327 = sld [smem:[#allocation2 + $0x13]]
    %v328 = vstv %s327
    %v329 = vmul.f32 %v328, %v302
    %331 = vrot.lane.b32.xlu0 %v329, 126
    %v332 = vpop.permute.xlu0 %331
    %v334 = vadd.f32 %v318, %v332
    %s335 = sld [smem:[#allocation2 + $0xb8]]
    %v336 = vstv %s335
    %v337 = vmul.f32 %v336, %v302
    %339 = vrot.lane.b32.xlu0 %v337, 126
    %v340 = vpop.permute.xlu0 %339
    %v342 = vadd.f32 %v326, %v340
    %s343 = sld [smem:[#allocation2 + $0x15]]
    %v344 = vstv %s343
    %v345 = vmul.f32 %v344, %v302
    %347 = vrot.lane.b32.xlu0 %v345, 125
    %v348 = vpop.permute.xlu0 %347
    %v350 = vadd.f32 %v334, %v348
    %s351 = sld [smem:[#allocation2 + $0xba]]
    %v352 = vstv %s351
    %v353 = vmul.f32 %v352, %v302
    %355 = vrot.lane.b32.xlu0 %v353, 125
    %v356 = vpop.permute.xlu0 %355
    %v358 = vadd.f32 %v342, %v356
    %s359 = sld [smem:[#allocation2 + $0x17]]
    %v360 = vstv %s359
    %v361 = vmul.f32 %v360, %v302
    %363 = vrot.lane.b32.xlu0 %v361, 124
    %v364 = vpop.permute.xlu0 %363
    %v366 = vadd.f32 %v350, %v364
    %s367 = sld [smem:[#allocation2 + $0xbc]]
    %v368 = vstv %s367
    %v369 = vmul.f32 %v368, %v302
    %371 = vrot.lane.b32.xlu0 %v369, 124
    %v372 = vpop.permute.xlu0 %371
    %v374 = vadd.f32 %v358, %v372
    %s375 = sld [smem:[#allocation2 + $0x19]]
    %v376 = vstv %s375
    %v377 = vmul.f32 %v376, %v302
    %379 = vrot.lane.b32.xlu0 %v377, 123
    %v380 = vpop.permute.xlu0 %379
    %v382 = vadd.f32 %v366, %v380
    %s383 = sld [smem:[#allocation2 + $0xbe]]
    %v384 = vstv %s383
    %v385 = vmul.f32 %v384, %v302
    %387 = vrot.lane.b32.xlu0 %v385, 123
    %v388 = vpop.permute.xlu0 %387
    %v390 = vadd.f32 %v374, %v388
    %s391 = sld [smem:[#allocation2 + $0x1b]]
    %v392 = vstv %s391
    %v393 = vmul.f32 %v392, %v302
    %395 = vrot.lane.b32.xlu0 %v393, 122
    %v396 = vpop.permute.xlu0 %395
    %v398 = vadd.f32 %v382, %v396
    %s399 = sld [smem:[#allocation2 + $0xc0]]
    %v400 = vstv %s399
    %v401 = vmul.f32 %v400, %v302
    %403 = vrot.lane.b32.xlu0 %v401, 122
    %v404 = vpop.permute.xlu0 %403
    %v406 = vadd.f32 %v390, %v404
    %s407 = sld [smem:[#allocation2 + $0x1d]]
    %v408 = vstv %s407
    %v409 = vmul.f32 %v408, %v302
    %411 = vrot.lane.b32.xlu0 %v409, 121
    %v412 = vpop.permute.xlu0 %411
    %v414 = vadd.f32 %v398, %v412
    %s415 = sld [smem:[#allocation2 + $0xc2]]
    %v416 = vstv %s415
    %v417 = vmul.f32 %v416, %v302
    %419 = vrot.lane.b32.xlu0 %v417, 121
    %v420 = vpop.permute.xlu0 %419
    %v422 = vadd.f32 %v406, %v420
    %s423 = scalar_lea.vmem [#allocation9], 8
    %v424 = vld [vmem:[%s423] sm:$0xff]
    %s425 = sld [smem:[#allocation2 + $0x10]]
    %v426 = vstv %s425
    %v427 = vmul.f32 %v426, %v424
    %v428 = vadd.f32 %v414, %v427
    %s429 = sld [smem:[#allocation2 + $0xb5]]
    %v430 = vstv %s429
    %v431 = vmul.f32 %v430, %v424
    %v432 = vadd.f32 %v422, %v431
    %s433 = sld [smem:[#allocation2 + $0x12]]
    %v434 = vstv %s433
    %v435 = vmul.f32 %v434, %v424
    %437 = vrot.lane.b32.xlu0 %v435, 127
    %v438 = vpop.permute.xlu0 %437
    %v440 = vadd.f32 %v428, %v438
    %s441 = sld [smem:[#allocation2 + $0xb7]]
    %v442 = vstv %s441
    %v443 = vmul.f32 %v442, %v424
    %445 = vrot.lane.b32.xlu0 %v443, 127
    %v446 = vpop.permute.xlu0 %445
    %v448 = vadd.f32 %v432, %v446
    %s449 = sld [smem:[#allocation2 + $0x14]]
    %v450 = vstv %s449
    %v451 = vmul.f32 %v450, %v424
    %453 = vrot.lane.b32.xlu0 %v451, 126
    %v454 = vpop.permute.xlu0 %453
    %v456 = vadd.f32 %v440, %v454
    %s457 = sld [smem:[#allocation2 + $0xb9]]
    %v458 = vstv %s457
    %v459 = vmul.f32 %v458, %v424
    %461 = vrot.lane.b32.xlu0 %v459, 126
    %v462 = vpop.permute.xlu0 %461
    %v464 = vadd.f32 %v448, %v462
    %s465 = sld [smem:[#allocation2 + $0x16]]
    %v466 = vstv %s465
    %v467 = vmul.f32 %v466, %v424
    %469 = vrot.lane.b32.xlu0 %v467, 125
    %v470 = vpop.permute.xlu0 %469
    %v472 = vadd.f32 %v456, %v470
    %s473 = sld [smem:[#allocation2 + $0xbb]]
    %v474 = vstv %s473
    %v475 = vmul.f32 %v474, %v424
    %477 = vrot.lane.b32.xlu0 %v475, 125
    %v478 = vpop.permute.xlu0 %477
    %v480 = vadd.f32 %v464, %v478
    %s481 = sld [smem:[#allocation2 + $0x18]]
    %v482 = vstv %s481
    %v483 = vmul.f32 %v482, %v424
    %485 = vrot.lane.b32.xlu0 %v483, 124
    %v486 = vpop.permute.xlu0 %485
    %v488 = vadd.f32 %v472, %v486
    %s489 = sld [smem:[#allocation2 + $0xbd]]
    %v490 = vstv %s489
    %v491 = vmul.f32 %v490, %v424
    %493 = vrot.lane.b32.xlu0 %v491, 124
    %v494 = vpop.permute.xlu0 %493
    %v496 = vadd.f32 %v480, %v494
    %s497 = sld [smem:[#allocation2 + $0x1a]]
    %v498 = vstv %s497
    %v499 = vmul.f32 %v498, %v424
    %501 = vrot.lane.b32.xlu0 %v499, 123
    %v502 = vpop.permute.xlu0 %501
    %v504 = vadd.f32 %v488, %v502
    %s505 = sld [smem:[#allocation2 + $0xbf]]
    %v506 = vstv %s505
    %v507 = vmul.f32 %v506, %v424
    %509 = vrot.lane.b32.xlu0 %v507, 123
    %v510 = vpop.permute.xlu0 %509
    %v512 = vadd.f32 %v496, %v510
    %s513 = sld [smem:[#allocation2 + $0x1c]]
    %v514 = vstv %s513
    %v515 = vmul.f32 %v514, %v424
    %517 = vrot.lane.b32.xlu0 %v515, 122
    %v518 = vpop.permute.xlu0 %517
    %v520 = vadd.f32 %v504, %v518
    %s521 = sld [smem:[#allocation2 + $0xc1]]
    %v522 = vstv %s521
    %v523 = vmul.f32 %v522, %v424
    %525 = vrot.lane.b32.xlu0 %v523, 122
    %v526 = vpop.permute.xlu0 %525
    %v528 = vadd.f32 %v512, %v526
    %s529 = scalar_lea.vmem [#allocation8], 16
    %v530 = vld [vmem:[%s529] sm:$0xff]
    %s531 = sld [smem:[#allocation2 + $0x1e]]
    %v532 = vstv %s531
    %v533 = vmul.f32 %v532, %v530
    %v534 = vadd.f32 %v520, %v533
    %s535 = sld [smem:[#allocation2 + $0xc3]]
    %v536 = vstv %s535
    %v537 = vmul.f32 %v536, %v530
    %v538 = vadd.f32 %v528, %v537
    %s539 = sld [smem:[#allocation2 + $0x20]]
    %v540 = vstv %s539
    %v541 = vmul.f32 %v540, %v530
    %543 = vrot.lane.b32.xlu0 %v541, 127
    %v544 = vpop.permute.xlu0 %543
    %v546 = vadd.f32 %v534, %v544
    %s547 = sld [smem:[#allocation2 + $0xc5]]
    %v548 = vstv %s547
    %v549 = vmul.f32 %v548, %v530
    %551 = vrot.lane.b32.xlu0 %v549, 127
    %v552 = vpop.permute.xlu0 %551
    %v554 = vadd.f32 %v538, %v552
    %s555 = sld [smem:[#allocation2 + $0x22]]
    %v556 = vstv %s555
    %v557 = vmul.f32 %v556, %v530
    %559 = vrot.lane.b32.xlu0 %v557, 126
    %v560 = vpop.permute.xlu0 %559
    %v562 = vadd.f32 %v546, %v560
    %s563 = sld [smem:[#allocation2 + $0xc7]]
    %v564 = vstv %s563
    %v565 = vmul.f32 %v564, %v530
    %567 = vrot.lane.b32.xlu0 %v565, 126
    %v568 = vpop.permute.xlu0 %567
    %v570 = vadd.f32 %v554, %v568
    %s571 = sld [smem:[#allocation2 + $0x24]]
    %v572 = vstv %s571
    %v573 = vmul.f32 %v572, %v530
    %575 = vrot.lane.b32.xlu0 %v573, 125
    %v576 = vpop.permute.xlu0 %575
    %v578 = vadd.f32 %v562, %v576
    %s579 = sld [smem:[#allocation2 + $0xc9]]
    %v580 = vstv %s579
    %v581 = vmul.f32 %v580, %v530
    %583 = vrot.lane.b32.xlu0 %v581, 125
    %v584 = vpop.permute.xlu0 %583
    %v586 = vadd.f32 %v570, %v584
    %s587 = sld [smem:[#allocation2 + $0x26]]
    %v588 = vstv %s587
    %v589 = vmul.f32 %v588, %v530
    %591 = vrot.lane.b32.xlu0 %v589, 124
    %v592 = vpop.permute.xlu0 %591
    %v594 = vadd.f32 %v578, %v592
    %s595 = sld [smem:[#allocation2 + $0xcb]]
    %v596 = vstv %s595
    %v597 = vmul.f32 %v596, %v530
    %599 = vrot.lane.b32.xlu0 %v597, 124
    %v600 = vpop.permute.xlu0 %599
    %v602 = vadd.f32 %v586, %v600
    %s603 = sld [smem:[#allocation2 + $0x28]]
    %v604 = vstv %s603
    %v605 = vmul.f32 %v604, %v530
    %607 = vrot.lane.b32.xlu0 %v605, 123
    %v608 = vpop.permute.xlu0 %607
    %v610 = vadd.f32 %v594, %v608
    %s611 = sld [smem:[#allocation2 + $0xcd]]
    %v612 = vstv %s611
    %v613 = vmul.f32 %v612, %v530
    %615 = vrot.lane.b32.xlu0 %v613, 123
    %v616 = vpop.permute.xlu0 %615
    %v618 = vadd.f32 %v602, %v616
    %s619 = sld [smem:[#allocation2 + $0x2a]]
    %v620 = vstv %s619
    %v621 = vmul.f32 %v620, %v530
    %623 = vrot.lane.b32.xlu0 %v621, 122
    %v624 = vpop.permute.xlu0 %623
    %v626 = vadd.f32 %v610, %v624
    %s627 = sld [smem:[#allocation2 + $0xcf]]
    %v628 = vstv %s627
    %v629 = vmul.f32 %v628, %v530
    %631 = vrot.lane.b32.xlu0 %v629, 122
    %v632 = vpop.permute.xlu0 %631
    %v634 = vadd.f32 %v618, %v632
    %s635 = sld [smem:[#allocation2 + $0x2c]]
    %v636 = vstv %s635
    %v637 = vmul.f32 %v636, %v530
    %639 = vrot.lane.b32.xlu0 %v637, 121
    %v640 = vpop.permute.xlu0 %639
    %v642 = vadd.f32 %v626, %v640
    %s643 = sld [smem:[#allocation2 + $0xd1]]
    %v644 = vstv %s643
    %v645 = vmul.f32 %v644, %v530
    %647 = vrot.lane.b32.xlu0 %v645, 121
    %v648 = vpop.permute.xlu0 %647
    %v650 = vadd.f32 %v634, %v648
    %s651 = scalar_lea.vmem [#allocation9], 16
    %v652 = vld [vmem:[%s651] sm:$0xff]
    %s653 = sld [smem:[#allocation2 + $0x1f]]
    %v654 = vstv %s653
    %v655 = vmul.f32 %v654, %v652
    %v656 = vadd.f32 %v642, %v655
    %s657 = sld [smem:[#allocation2 + $0xc4]]
    %v658 = vstv %s657
    %v659 = vmul.f32 %v658, %v652
    %v660 = vadd.f32 %v650, %v659
    %s661 = sld [smem:[#allocation2 + $0x21]]
    %v662 = vstv %s661
    %v663 = vmul.f32 %v662, %v652
    %665 = vrot.lane.b32.xlu0 %v663, 127
    %v666 = vpop.permute.xlu0 %665
    %v668 = vadd.f32 %v656, %v666
    %s669 = sld [smem:[#allocation2 + $0xc6]]
    %v670 = vstv %s669
    %v671 = vmul.f32 %v670, %v652
    %673 = vrot.lane.b32.xlu0 %v671, 127
    %v674 = vpop.permute.xlu0 %673
    %v676 = vadd.f32 %v660, %v674
    %s677 = sld [smem:[#allocation2 + $0x23]]
    %v678 = vstv %s677
    %v679 = vmul.f32 %v678, %v652
    %681 = vrot.lane.b32.xlu0 %v679, 126
    %v682 = vpop.permute.xlu0 %681
    %v684 = vadd.f32 %v668, %v682
    %s685 = sld [smem:[#allocation2 + $0xc8]]
    %v686 = vstv %s685
    %v687 = vmul.f32 %v686, %v652
    %689 = vrot.lane.b32.xlu0 %v687, 126
    %v690 = vpop.permute.xlu0 %689
    %v692 = vadd.f32 %v676, %v690
    %s693 = sld [smem:[#allocation2 + $0x25]]
    %v694 = vstv %s693
    %v695 = vmul.f32 %v694, %v652
    %697 = vrot.lane.b32.xlu0 %v695, 125
    %v698 = vpop.permute.xlu0 %697
    %v700 = vadd.f32 %v684, %v698
    %s701 = sld [smem:[#allocation2 + $0xca]]
    %v702 = vstv %s701
    %v703 = vmul.f32 %v702, %v652
    %705 = vrot.lane.b32.xlu0 %v703, 125
    %v706 = vpop.permute.xlu0 %705
    %v708 = vadd.f32 %v692, %v706
    %s709 = sld [smem:[#allocation2 + $0x27]]
    %v710 = vstv %s709
    %v711 = vmul.f32 %v710, %v652
    %713 = vrot.lane.b32.xlu0 %v711, 124
    %v714 = vpop.permute.xlu0 %713
    %v716 = vadd.f32 %v700, %v714
    %s717 = sld [smem:[#allocation2 + $0xcc]]
    %v718 = vstv %s717
    %v719 = vmul.f32 %v718, %v652
    %721 = vrot.lane.b32.xlu0 %v719, 124
    %v722 = vpop.permute.xlu0 %721
    %v724 = vadd.f32 %v708, %v722
    %s725 = sld [smem:[#allocation2 + $0x29]]
    %v726 = vstv %s725
    %v727 = vmul.f32 %v726, %v652
    %729 = vrot.lane.b32.xlu0 %v727, 123
    %v730 = vpop.permute.xlu0 %729
    %v732 = vadd.f32 %v716, %v730
    %s733 = sld [smem:[#allocation2 + $0xce]]
    %v734 = vstv %s733
    %v735 = vmul.f32 %v734, %v652
    %737 = vrot.lane.b32.xlu0 %v735, 123
    %v738 = vpop.permute.xlu0 %737
    %v740 = vadd.f32 %v724, %v738
    %s741 = sld [smem:[#allocation2 + $0x2b]]
    %v742 = vstv %s741
    %v743 = vmul.f32 %v742, %v652
    %745 = vrot.lane.b32.xlu0 %v743, 122
    %v746 = vpop.permute.xlu0 %745
    %v748 = vadd.f32 %v732, %v746
    %s749 = sld [smem:[#allocation2 + $0xd0]]
    %v750 = vstv %s749
    %v751 = vmul.f32 %v750, %v652
    %753 = vrot.lane.b32.xlu0 %v751, 122
    %v754 = vpop.permute.xlu0 %753
    %v756 = vadd.f32 %v740, %v754
    %s757 = scalar_lea.vmem [#allocation8], 24
    %v758 = vld [vmem:[%s757] sm:$0xff]
    %s759 = sld [smem:[#allocation2 + $0x2d]]
    %v760 = vstv %s759
    %v761 = vmul.f32 %v760, %v758
    %v762 = vadd.f32 %v748, %v761
    %s763 = sld [smem:[#allocation2 + $0xd2]]
    %v764 = vstv %s763
    %v765 = vmul.f32 %v764, %v758
    %v766 = vadd.f32 %v756, %v765
    %s767 = sld [smem:[#allocation2 + $0x2f]]
    %v768 = vstv %s767
    %v769 = vmul.f32 %v768, %v758
    %771 = vrot.lane.b32.xlu0 %v769, 127
    %v772 = vpop.permute.xlu0 %771
    %v774 = vadd.f32 %v762, %v772
    %s775 = sld [smem:[#allocation2 + $0xd4]]
    %v776 = vstv %s775
    %v777 = vmul.f32 %v776, %v758
    %779 = vrot.lane.b32.xlu0 %v777, 127
    %v780 = vpop.permute.xlu0 %779
    %v782 = vadd.f32 %v766, %v780
    %s783 = sld [smem:[#allocation2 + $0x31]]
    %v784 = vstv %s783
    %v785 = vmul.f32 %v784, %v758
    %787 = vrot.lane.b32.xlu0 %v785, 126
    %v788 = vpop.permute.xlu0 %787
    %v790 = vadd.f32 %v774, %v788
    %s791 = sld [smem:[#allocation2 + $0xd6]]
    %v792 = vstv %s791
    %v793 = vmul.f32 %v792, %v758
    %795 = vrot.lane.b32.xlu0 %v793, 126
    %v796 = vpop.permute.xlu0 %795
    %v798 = vadd.f32 %v782, %v796
    %s799 = sld [smem:[#allocation2 + $0x33]]
    %v800 = vstv %s799
    %v801 = vmul.f32 %v800, %v758
    %803 = vrot.lane.b32.xlu0 %v801, 125
    %v804 = vpop.permute.xlu0 %803
    %v806 = vadd.f32 %v790, %v804
    %s807 = sld [smem:[#allocation2 + $0xd8]]
    %v808 = vstv %s807
    %v809 = vmul.f32 %v808, %v758
    %811 = vrot.lane.b32.xlu0 %v809, 125
    %v812 = vpop.permute.xlu0 %811
    %v814 = vadd.f32 %v798, %v812
    %s815 = sld [smem:[#allocation2 + $0x35]]
    %v816 = vstv %s815
    %v817 = vmul.f32 %v816, %v758
    %819 = vrot.lane.b32.xlu0 %v817, 124
    %v820 = vpop.permute.xlu0 %819
    %v822 = vadd.f32 %v806, %v820
    %s823 = sld [smem:[#allocation2 + $0xda]]
    %v824 = vstv %s823
    %v825 = vmul.f32 %v824, %v758
    %827 = vrot.lane.b32.xlu0 %v825, 124
    %v828 = vpop.permute.xlu0 %827
    %v830 = vadd.f32 %v814, %v828
    %s831 = sld [smem:[#allocation2 + $0x37]]
    %v832 = vstv %s831
    %v833 = vmul.f32 %v832, %v758
    %835 = vrot.lane.b32.xlu0 %v833, 123
    %v836 = vpop.permute.xlu0 %835
    %v838 = vadd.f32 %v822, %v836
    %s839 = sld [smem:[#allocation2 + $0xdc]]
    %v840 = vstv %s839
    %v841 = vmul.f32 %v840, %v758
    %843 = vrot.lane.b32.xlu0 %v841, 123
    %v844 = vpop.permute.xlu0 %843
    %v846 = vadd.f32 %v830, %v844
    %s847 = sld [smem:[#allocation2 + $0x39]]
    %v848 = vstv %s847
    %v849 = vmul.f32 %v848, %v758
    %851 = vrot.lane.b32.xlu0 %v849, 122
    %v852 = vpop.permute.xlu0 %851
    %v854 = vadd.f32 %v838, %v852
    %s855 = sld [smem:[#allocation2 + $0xde]]
    %v856 = vstv %s855
    %v857 = vmul.f32 %v856, %v758
    %859 = vrot.lane.b32.xlu0 %v857, 122
    %v860 = vpop.permute.xlu0 %859
    %v862 = vadd.f32 %v846, %v860
    %s863 = sld [smem:[#allocation2 + $0x3b]]
    %v864 = vstv %s863
    %v865 = vmul.f32 %v864, %v758
    %867 = vrot.lane.b32.xlu0 %v865, 121
    %v868 = vpop.permute.xlu0 %867
    %v870 = vadd.f32 %v854, %v868
    %s871 = sld [smem:[#allocation2 + $0xe0]]
    %v872 = vstv %s871
    %v873 = vmul.f32 %v872, %v758
    %875 = vrot.lane.b32.xlu0 %v873, 121
    %v876 = vpop.permute.xlu0 %875
    %v878 = vadd.f32 %v862, %v876
    %s879 = scalar_lea.vmem [#allocation9], 24
    %v880 = vld [vmem:[%s879] sm:$0xff]
    %s881 = sld [smem:[#allocation2 + $0x2e]]
    %v882 = vstv %s881
    %v883 = vmul.f32 %v882, %v880
    %v884 = vadd.f32 %v870, %v883
    %s885 = sld [smem:[#allocation2 + $0xd3]]
    %v886 = vstv %s885
    %v887 = vmul.f32 %v886, %v880
    %v888 = vadd.f32 %v878, %v887
    %s889 = sld [smem:[#allocation2 + $0x30]]
    %v890 = vstv %s889
    %v891 = vmul.f32 %v890, %v880
    %893 = vrot.lane.b32.xlu0 %v891, 127
    %v894 = vpop.permute.xlu0 %893
    %v896 = vadd.f32 %v884, %v894
    %s897 = sld [smem:[#allocation2 + $0xd5]]
    %v898 = vstv %s897
    %v899 = vmul.f32 %v898, %v880
    %901 = vrot.lane.b32.xlu0 %v899, 127
    %v902 = vpop.permute.xlu0 %901
    %v904 = vadd.f32 %v888, %v902
    %s905 = sld [smem:[#allocation2 + $0x32]]
    %v906 = vstv %s905
    %v907 = vmul.f32 %v906, %v880
    %909 = vrot.lane.b32.xlu0 %v907, 126
    %v910 = vpop.permute.xlu0 %909
    %v912 = vadd.f32 %v896, %v910
    %s913 = sld [smem:[#allocation2 + $0xd7]]
    %v914 = vstv %s913
    %v915 = vmul.f32 %v914, %v880
    %917 = vrot.lane.b32.xlu0 %v915, 126
    %v918 = vpop.permute.xlu0 %917
    %v920 = vadd.f32 %v904, %v918
    %s921 = sld [smem:[#allocation2 + $0x34]]
    %v922 = vstv %s921
    %v923 = vmul.f32 %v922, %v880
    %925 = vrot.lane.b32.xlu0 %v923, 125
    %v926 = vpop.permute.xlu0 %925
    %v928 = vadd.f32 %v912, %v926
    %s929 = sld [smem:[#allocation2 + $0xd9]]
    %v930 = vstv %s929
    %v931 = vmul.f32 %v930, %v880
    %933 = vrot.lane.b32.xlu0 %v931, 125
    %v934 = vpop.permute.xlu0 %933
    %v936 = vadd.f32 %v920, %v934
    %s937 = sld [smem:[#allocation2 + $0x36]]
    %v938 = vstv %s937
    %v939 = vmul.f32 %v938, %v880
    %941 = vrot.lane.b32.xlu0 %v939, 124
    %v942 = vpop.permute.xlu0 %941
    %v944 = vadd.f32 %v928, %v942
    %s945 = sld [smem:[#allocation2 + $0xdb]]
    %v946 = vstv %s945
    %v947 = vmul.f32 %v946, %v880
    %949 = vrot.lane.b32.xlu0 %v947, 124
    %v950 = vpop.permute.xlu0 %949
    %v952 = vadd.f32 %v936, %v950
    %s953 = sld [smem:[#allocation2 + $0x38]]
    %v954 = vstv %s953
    %v955 = vmul.f32 %v954, %v880
    %957 = vrot.lane.b32.xlu0 %v955, 123
    %v958 = vpop.permute.xlu0 %957
    %v960 = vadd.f32 %v944, %v958
    %s961 = sld [smem:[#allocation2 + $0xdd]]
    %v962 = vstv %s961
    %v963 = vmul.f32 %v962, %v880
    %965 = vrot.lane.b32.xlu0 %v963, 123
    %v966 = vpop.permute.xlu0 %965
    %v968 = vadd.f32 %v952, %v966
    %s969 = sld [smem:[#allocation2 + $0x3a]]
    %v970 = vstv %s969
    %v971 = vmul.f32 %v970, %v880
    %973 = vrot.lane.b32.xlu0 %v971, 122
    %v974 = vpop.permute.xlu0 %973
    %v976 = vadd.f32 %v960, %v974
    %s977 = sld [smem:[#allocation2 + $0xdf]]
    %v978 = vstv %s977
    %v979 = vmul.f32 %v978, %v880
    %981 = vrot.lane.b32.xlu0 %v979, 122
    %v982 = vpop.permute.xlu0 %981
    %v984 = vadd.f32 %v968, %v982
    %s985 = scalar_lea.vmem [#allocation8], 32
    %v986 = vld [vmem:[%s985] sm:$0xff]
    %s987 = sld [smem:[#allocation2 + $0x3c]]
    %v988 = vstv %s987
    %v989 = vmul.f32 %v988, %v986
    %v990 = vadd.f32 %v976, %v989
    %s991 = sld [smem:[#allocation2 + $0xe1]]
    %v992 = vstv %s991
    %v993 = vmul.f32 %v992, %v986
    %v994 = vadd.f32 %v984, %v993
    %s995 = sld [smem:[#allocation2 + $0x3e]]
    %v996 = vstv %s995
    %v997 = vmul.f32 %v996, %v986
    %999 = vrot.lane.b32.xlu0 %v997, 127
    %v1000 = vpop.permute.xlu0 %999
    %v1002 = vadd.f32 %v990, %v1000
    %s1003 = sld [smem:[#allocation2 + $0xe3]]
    %v1004 = vstv %s1003
    %v1005 = vmul.f32 %v1004, %v986
    %1007 = vrot.lane.b32.xlu0 %v1005, 127
    %v1008 = vpop.permute.xlu0 %1007
    %v1010 = vadd.f32 %v994, %v1008
    %s1011 = sld [smem:[#allocation2 + $0x40]]
    %v1012 = vstv %s1011
    %v1013 = vmul.f32 %v1012, %v986
    %1015 = vrot.lane.b32.xlu0 %v1013, 126
    %v1016 = vpop.permute.xlu0 %1015
    %v1018 = vadd.f32 %v1002, %v1016
    %s1019 = sld [smem:[#allocation2 + $0xe5]]
    %v1020 = vstv %s1019
    %v1021 = vmul.f32 %v1020, %v986
    %1023 = vrot.lane.b32.xlu0 %v1021, 126
    %v1024 = vpop.permute.xlu0 %1023
    %v1026 = vadd.f32 %v1010, %v1024
    %s1027 = sld [smem:[#allocation2 + $0x42]]
    %v1028 = vstv %s1027
    %v1029 = vmul.f32 %v1028, %v986
    %1031 = vrot.lane.b32.xlu0 %v1029, 125
    %v1032 = vpop.permute.xlu0 %1031
    %v1034 = vadd.f32 %v1018, %v1032
    %s1035 = sld [smem:[#allocation2 + $0xe7]]
    %v1036 = vstv %s1035
    %v1037 = vmul.f32 %v1036, %v986
    %1039 = vrot.lane.b32.xlu0 %v1037, 125
    %v1040 = vpop.permute.xlu0 %1039
    %v1042 = vadd.f32 %v1026, %v1040
    %s1043 = sld [smem:[#allocation2 + $0x44]]
    %v1044 = vstv %s1043
    %v1045 = vmul.f32 %v1044, %v986
    %1047 = vrot.lane.b32.xlu0 %v1045, 124
    %v1048 = vpop.permute.xlu0 %1047
    %v1050 = vadd.f32 %v1034, %v1048
    %s1051 = sld [smem:[#allocation2 + $0xe9]]
    %v1052 = vstv %s1051
    %v1053 = vmul.f32 %v1052, %v986
    %1055 = vrot.lane.b32.xlu0 %v1053, 124
    %v1056 = vpop.permute.xlu0 %1055
    %v1058 = vadd.f32 %v1042, %v1056
    %s1059 = sld [smem:[#allocation2 + $0x46]]
    %v1060 = vstv %s1059
    %v1061 = vmul.f32 %v1060, %v986
    %1063 = vrot.lane.b32.xlu0 %v1061, 123
    %v1064 = vpop.permute.xlu0 %1063
    %v1066 = vadd.f32 %v1050, %v1064
    %s1067 = sld [smem:[#allocation2 + $0xeb]]
    %v1068 = vstv %s1067
    %v1069 = vmul.f32 %v1068, %v986
    %1071 = vrot.lane.b32.xlu0 %v1069, 123
    %v1072 = vpop.permute.xlu0 %1071
    %v1074 = vadd.f32 %v1058, %v1072
    %s1075 = sld [smem:[#allocation2 + $0x48]]
    %v1076 = vstv %s1075
    %v1077 = vmul.f32 %v1076, %v986
    %1079 = vrot.lane.b32.xlu0 %v1077, 122
    %v1080 = vpop.permute.xlu0 %1079
    %v1082 = vadd.f32 %v1066, %v1080
    %s1083 = sld [smem:[#allocation2 + $0xed]]
    %v1084 = vstv %s1083
    %v1085 = vmul.f32 %v1084, %v986
    %1087 = vrot.lane.b32.xlu0 %v1085, 122
    %v1088 = vpop.permute.xlu0 %1087
    %v1090 = vadd.f32 %v1074, %v1088
    %s1091 = sld [smem:[#allocation2 + $0x4a]]
    %v1092 = vstv %s1091
    %v1093 = vmul.f32 %v1092, %v986
    %1095 = vrot.lane.b32.xlu0 %v1093, 121
    %v1096 = vpop.permute.xlu0 %1095
    %v1098 = vadd.f32 %v1082, %v1096
    %s1099 = sld [smem:[#allocation2 + $0xef]]
    %v1100 = vstv %s1099
    %v1101 = vmul.f32 %v1100, %v986
    %1103 = vrot.lane.b32.xlu0 %v1101, 121
    %v1104 = vpop.permute.xlu0 %1103
    %v1106 = vadd.f32 %v1090, %v1104
    %s1107 = scalar_lea.vmem [#allocation9], 32
    %v1108 = vld [vmem:[%s1107] sm:$0xff]
    %s1109 = sld [smem:[#allocation2 + $0x3d]]
    %v1110 = vstv %s1109
    %v1111 = vmul.f32 %v1110, %v1108
    %v1112 = vadd.f32 %v1098, %v1111
    %s1113 = sld [smem:[#allocation2 + $0xe2]]
    %v1114 = vstv %s1113
    %v1115 = vmul.f32 %v1114, %v1108
    %v1116 = vadd.f32 %v1106, %v1115
    %s1117 = sld [smem:[#allocation2 + $0x3f]]
    %v1118 = vstv %s1117
    %v1119 = vmul.f32 %v1118, %v1108
    %1121 = vrot.lane.b32.xlu0 %v1119, 127
    %v1122 = vpop.permute.xlu0 %1121
    %v1124 = vadd.f32 %v1112, %v1122
    %s1125 = sld [smem:[#allocation2 + $0xe4]]
    %v1126 = vstv %s1125
    %v1127 = vmul.f32 %v1126, %v1108
    %1129 = vrot.lane.b32.xlu0 %v1127, 127
    %v1130 = vpop.permute.xlu0 %1129
    %v1132 = vadd.f32 %v1116, %v1130
    %s1133 = sld [smem:[#allocation2 + $0x41]]
    %v1134 = vstv %s1133
    %v1135 = vmul.f32 %v1134, %v1108
    %1137 = vrot.lane.b32.xlu0 %v1135, 126
    %v1138 = vpop.permute.xlu0 %1137
    %v1140 = vadd.f32 %v1124, %v1138
    %s1141 = sld [smem:[#allocation2 + $0xe6]]
    %v1142 = vstv %s1141
    %v1143 = vmul.f32 %v1142, %v1108
    %1145 = vrot.lane.b32.xlu0 %v1143, 126
    %v1146 = vpop.permute.xlu0 %1145
    %v1148 = vadd.f32 %v1132, %v1146
    %s1149 = sld [smem:[#allocation2 + $0x43]]
    %v1150 = vstv %s1149
    %v1151 = vmul.f32 %v1150, %v1108
    %1153 = vrot.lane.b32.xlu0 %v1151, 125
    %v1154 = vpop.permute.xlu0 %1153
    %v1156 = vadd.f32 %v1140, %v1154
    %s1157 = sld [smem:[#allocation2 + $0xe8]]
    %v1158 = vstv %s1157
    %v1159 = vmul.f32 %v1158, %v1108
    %1161 = vrot.lane.b32.xlu0 %v1159, 125
    %v1162 = vpop.permute.xlu0 %1161
    %v1164 = vadd.f32 %v1148, %v1162
    %s1165 = sld [smem:[#allocation2 + $0x45]]
    %v1166 = vstv %s1165
    %v1167 = vmul.f32 %v1166, %v1108
    %1169 = vrot.lane.b32.xlu0 %v1167, 124
    %v1170 = vpop.permute.xlu0 %1169
    %v1172 = vadd.f32 %v1156, %v1170
    %s1173 = sld [smem:[#allocation2 + $0xea]]
    %v1174 = vstv %s1173
    %v1175 = vmul.f32 %v1174, %v1108
    %1177 = vrot.lane.b32.xlu0 %v1175, 124
    %v1178 = vpop.permute.xlu0 %1177
    %v1180 = vadd.f32 %v1164, %v1178
    %s1181 = sld [smem:[#allocation2 + $0x47]]
    %v1182 = vstv %s1181
    %v1183 = vmul.f32 %v1182, %v1108
    %1185 = vrot.lane.b32.xlu0 %v1183, 123
    %v1186 = vpop.permute.xlu0 %1185
    %v1188 = vadd.f32 %v1172, %v1186
    %s1189 = sld [smem:[#allocation2 + $0xec]]
    %v1190 = vstv %s1189
    %v1191 = vmul.f32 %v1190, %v1108
    %1193 = vrot.lane.b32.xlu0 %v1191, 123
    %v1194 = vpop.permute.xlu0 %1193
    %v1196 = vadd.f32 %v1180, %v1194
    %s1197 = sld [smem:[#allocation2 + $0x49]]
    %v1198 = vstv %s1197
    %v1199 = vmul.f32 %v1198, %v1108
    %1201 = vrot.lane.b32.xlu0 %v1199, 122
    %v1202 = vpop.permute.xlu0 %1201
    %v1204 = vadd.f32 %v1188, %v1202
    %s1205 = sld [smem:[#allocation2 + $0xee]]
    %v1206 = vstv %s1205
    %v1207 = vmul.f32 %v1206, %v1108
    %1209 = vrot.lane.b32.xlu0 %v1207, 122
    %v1210 = vpop.permute.xlu0 %1209
    %v1212 = vadd.f32 %v1196, %v1210
    %s1213 = scalar_lea.vmem [#allocation8], 40
    %v1214 = vld [vmem:[%s1213] sm:$0xff]
    %s1215 = sld [smem:[#allocation2 + $0x4b]]
    %v1216 = vstv %s1215
    %v1217 = vmul.f32 %v1216, %v1214
    %v1218 = vadd.f32 %v1204, %v1217
    %s1219 = sld [smem:[#allocation2 + $0xf0]]
    %v1220 = vstv %s1219
    %v1221 = vmul.f32 %v1220, %v1214
    %v1222 = vadd.f32 %v1212, %v1221
    %s1223 = sld [smem:[#allocation2 + $0x4d]]
    %v1224 = vstv %s1223
    %v1225 = vmul.f32 %v1224, %v1214
    %1227 = vrot.lane.b32.xlu0 %v1225, 127
    %v1228 = vpop.permute.xlu0 %1227
    %v1230 = vadd.f32 %v1218, %v1228
    %s1231 = sld [smem:[#allocation2 + $0xf2]]
    %v1232 = vstv %s1231
    %v1233 = vmul.f32 %v1232, %v1214
    %1235 = vrot.lane.b32.xlu0 %v1233, 127
    %v1236 = vpop.permute.xlu0 %1235
    %v1238 = vadd.f32 %v1222, %v1236
    %s1239 = sld [smem:[#allocation2 + $0x4f]]
    %v1240 = vstv %s1239
    %v1241 = vmul.f32 %v1240, %v1214
    %1243 = vrot.lane.b32.xlu0 %v1241, 126
    %v1244 = vpop.permute.xlu0 %1243
    %v1246 = vadd.f32 %v1230, %v1244
    %s1247 = sld [smem:[#allocation2 + $0xf4]]
    %v1248 = vstv %s1247
    %v1249 = vmul.f32 %v1248, %v1214
    %1251 = vrot.lane.b32.xlu0 %v1249, 126
    %v1252 = vpop.permute.xlu0 %1251
    %v1254 = vadd.f32 %v1238, %v1252
    %s1255 = sld [smem:[#allocation2 + $0x51]]
    %v1256 = vstv %s1255
    %v1257 = vmul.f32 %v1256, %v1214
    %1259 = vrot.lane.b32.xlu0 %v1257, 125
    %v1260 = vpop.permute.xlu0 %1259
    %v1262 = vadd.f32 %v1246, %v1260
    %s1263 = sld [smem:[#allocation2 + $0xf6]]
    %v1264 = vstv %s1263
    %v1265 = vmul.f32 %v1264, %v1214
    %1267 = vrot.lane.b32.xlu0 %v1265, 125
    %v1268 = vpop.permute.xlu0 %1267
    %v1270 = vadd.f32 %v1254, %v1268
    %s1271 = sld [smem:[#allocation2 + $0x53]]
    %v1272 = vstv %s1271
    %v1273 = vmul.f32 %v1272, %v1214
    %1275 = vrot.lane.b32.xlu0 %v1273, 124
    %v1276 = vpop.permute.xlu0 %1275
    %v1278 = vadd.f32 %v1262, %v1276
    %s1279 = sld [smem:[#allocation2 + $0xf8]]
    %v1280 = vstv %s1279
    %v1281 = vmul.f32 %v1280, %v1214
    %1283 = vrot.lane.b32.xlu0 %v1281, 124
    %v1284 = vpop.permute.xlu0 %1283
    %v1286 = vadd.f32 %v1270, %v1284
    %s1287 = sld [smem:[#allocation2 + $0x55]]
    %v1288 = vstv %s1287
    %v1289 = vmul.f32 %v1288, %v1214
    %1291 = vrot.lane.b32.xlu0 %v1289, 123
    %v1292 = vpop.permute.xlu0 %1291
    %v1294 = vadd.f32 %v1278, %v1292
    %s1295 = sld [smem:[#allocation2 + $0xfa]]
    %v1296 = vstv %s1295
    %v1297 = vmul.f32 %v1296, %v1214
    %1299 = vrot.lane.b32.xlu0 %v1297, 123
    %v1300 = vpop.permute.xlu0 %1299
    %v1302 = vadd.f32 %v1286, %v1300
    %s1303 = sld [smem:[#allocation2 + $0x57]]
    %v1304 = vstv %s1303
    %v1305 = vmul.f32 %v1304, %v1214
    %1307 = vrot.lane.b32.xlu0 %v1305, 122
    %v1308 = vpop.permute.xlu0 %1307
    %v1310 = vadd.f32 %v1294, %v1308
    %s1311 = sld [smem:[#allocation2 + $0xfc]]
    %v1312 = vstv %s1311
    %v1313 = vmul.f32 %v1312, %v1214
    %1315 = vrot.lane.b32.xlu0 %v1313, 122
    %v1316 = vpop.permute.xlu0 %1315
    %v1318 = vadd.f32 %v1302, %v1316
    %s1319 = sld [smem:[#allocation2 + $0x59]]
    %v1320 = vstv %s1319
    %v1321 = vmul.f32 %v1320, %v1214
    %1323 = vrot.lane.b32.xlu0 %v1321, 121
    %v1324 = vpop.permute.xlu0 %1323
    %v1326 = vadd.f32 %v1310, %v1324
    %s1327 = sld [smem:[#allocation2 + $0xfe]]
    %v1328 = vstv %s1327
    %v1329 = vmul.f32 %v1328, %v1214
    %1331 = vrot.lane.b32.xlu0 %v1329, 121
    %v1332 = vpop.permute.xlu0 %1331
    %v1334 = vadd.f32 %v1318, %v1332
    %s1335 = scalar_lea.vmem [#allocation9], 40
    %v1336 = vld [vmem:[%s1335] sm:$0xff]
    %s1337 = sld [smem:[#allocation2 + $0x4c]]
    %v1338 = vstv %s1337
    %v1339 = vmul.f32 %v1338, %v1336
    %v1340 = vadd.f32 %v1326, %v1339
    %s1341 = sld [smem:[#allocation2 + $0xf1]]
    %v1342 = vstv %s1341
    %v1343 = vmul.f32 %v1342, %v1336
    %v1344 = vadd.f32 %v1334, %v1343
    %s1345 = sld [smem:[#allocation2 + $0x4e]]
    %v1346 = vstv %s1345
    %v1347 = vmul.f32 %v1346, %v1336
    %1349 = vrot.lane.b32.xlu0 %v1347, 127
    %v1350 = vpop.permute.xlu0 %1349
    %v1352 = vadd.f32 %v1340, %v1350
    %s1353 = sld [smem:[#allocation2 + $0xf3]]
    %v1354 = vstv %s1353
    %v1355 = vmul.f32 %v1354, %v1336
    %1357 = vrot.lane.b32.xlu0 %v1355, 127
    %v1358 = vpop.permute.xlu0 %1357
    %v1360 = vadd.f32 %v1344, %v1358
    %s1361 = sld [smem:[#allocation2 + $0x50]]
    %v1362 = vstv %s1361
    %v1363 = vmul.f32 %v1362, %v1336
    %1365 = vrot.lane.b32.xlu0 %v1363, 126
    %v1366 = vpop.permute.xlu0 %1365
    %v1368 = vadd.f32 %v1352, %v1366
    %s1369 = sld [smem:[#allocation2 + $0xf5]]
    %v1370 = vstv %s1369
    %v1371 = vmul.f32 %v1370, %v1336
    %1373 = vrot.lane.b32.xlu0 %v1371, 126
    %v1374 = vpop.permute.xlu0 %1373
    %v1376 = vadd.f32 %v1360, %v1374
    %s1377 = sld [smem:[#allocation2 + $0x52]]
    %v1378 = vstv %s1377
    %v1379 = vmul.f32 %v1378, %v1336
    %1381 = vrot.lane.b32.xlu0 %v1379, 125
    %v1382 = vpop.permute.xlu0 %1381
    %v1384 = vadd.f32 %v1368, %v1382
    %s1385 = sld [smem:[#allocation2 + $0xf7]]
    %v1386 = vstv %s1385
    %v1387 = vmul.f32 %v1386, %v1336
    %1389 = vrot.lane.b32.xlu0 %v1387, 125
    %v1390 = vpop.permute.xlu0 %1389
    %v1392 = vadd.f32 %v1376, %v1390
    %s1393 = sld [smem:[#allocation2 + $0x54]]
    %v1394 = vstv %s1393
    %v1395 = vmul.f32 %v1394, %v1336
    %1397 = vrot.lane.b32.xlu0 %v1395, 124
    %v1398 = vpop.permute.xlu0 %1397
    %v1400 = vadd.f32 %v1384, %v1398
    %s1401 = sld [smem:[#allocation2 + $0xf9]]
    %v1402 = vstv %s1401
    %v1403 = vmul.f32 %v1402, %v1336
    %1405 = vrot.lane.b32.xlu0 %v1403, 124
    %v1406 = vpop.permute.xlu0 %1405
    %v1408 = vadd.f32 %v1392, %v1406
    %s1409 = sld [smem:[#allocation2 + $0x56]]
    %v1410 = vstv %s1409
    %v1411 = vmul.f32 %v1410, %v1336
    %1413 = vrot.lane.b32.xlu0 %v1411, 123
    %v1414 = vpop.permute.xlu0 %1413
    %v1416 = vadd.f32 %v1400, %v1414
    %s1417 = sld [smem:[#allocation2 + $0xfb]]
    %v1418 = vstv %s1417
    %v1419 = vmul.f32 %v1418, %v1336
    %1421 = vrot.lane.b32.xlu0 %v1419, 123
    %v1422 = vpop.permute.xlu0 %1421
    %v1424 = vadd.f32 %v1408, %v1422
    %s1425 = sld [smem:[#allocation2 + $0x58]]
    %v1426 = vstv %s1425
    %v1427 = vmul.f32 %v1426, %v1336
    %1429 = vrot.lane.b32.xlu0 %v1427, 122
    %v1430 = vpop.permute.xlu0 %1429
    %v1432 = vadd.f32 %v1416, %v1430
    %s1433 = sld [smem:[#allocation2 + $0xfd]]
    %v1434 = vstv %s1433
    %v1435 = vmul.f32 %v1434, %v1336
    %1437 = vrot.lane.b32.xlu0 %v1435, 122
    %v1438 = vpop.permute.xlu0 %1437
    %v1440 = vadd.f32 %v1424, %v1438
    %s1441 = scalar_lea.vmem [#allocation8], 48
    %v1442 = vld [vmem:[%s1441] sm:$0xff]
    %s1443 = sld [smem:[#allocation2 + $0x5a]]
    %v1444 = vstv %s1443
    %v1445 = vmul.f32 %v1444, %v1442
    %v1446 = vadd.f32 %v1432, %v1445
    %s1447 = sld [smem:[#allocation2 + $0xff]]
    %v1448 = vstv %s1447
    %v1449 = vmul.f32 %v1448, %v1442
    %v1450 = vadd.f32 %v1440, %v1449
    %s1451 = sld [smem:[#allocation2 + $0x5c]]
    %v1452 = vstv %s1451
    %v1453 = vmul.f32 %v1452, %v1442
    %1455 = vrot.lane.b32.xlu0 %v1453, 127
    %v1456 = vpop.permute.xlu0 %1455
    %v1458 = vadd.f32 %v1446, %v1456
    %s1459 = sld [smem:[#allocation2 + $0x101]]
    %v1460 = vstv %s1459
    %v1461 = vmul.f32 %v1460, %v1442
    %1463 = vrot.lane.b32.xlu0 %v1461, 127
    %v1464 = vpop.permute.xlu0 %1463
    %v1466 = vadd.f32 %v1450, %v1464
    %s1467 = sld [smem:[#allocation2 + $0x5e]]
    %v1468 = vstv %s1467
    %v1469 = vmul.f32 %v1468, %v1442
    %1471 = vrot.lane.b32.xlu0 %v1469, 126
    %v1472 = vpop.permute.xlu0 %1471
    %v1474 = vadd.f32 %v1458, %v1472
    %s1475 = sld [smem:[#allocation2 + $0x103]]
    %v1476 = vstv %s1475
    %v1477 = vmul.f32 %v1476, %v1442
    %1479 = vrot.lane.b32.xlu0 %v1477, 126
    %v1480 = vpop.permute.xlu0 %1479
    %v1482 = vadd.f32 %v1466, %v1480
    %s1483 = sld [smem:[#allocation2 + $0x60]]
    %v1484 = vstv %s1483
    %v1485 = vmul.f32 %v1484, %v1442
    %1487 = vrot.lane.b32.xlu0 %v1485, 125
    %v1488 = vpop.permute.xlu0 %1487
    %v1490 = vadd.f32 %v1474, %v1488
    %s1491 = sld [smem:[#allocation2 + $0x105]]
    %v1492 = vstv %s1491
    %v1493 = vmul.f32 %v1492, %v1442
    %1495 = vrot.lane.b32.xlu0 %v1493, 125
    %v1496 = vpop.permute.xlu0 %1495
    %v1498 = vadd.f32 %v1482, %v1496
    %s1499 = sld [smem:[#allocation2 + $0x62]]
    %v1500 = vstv %s1499
    %v1501 = vmul.f32 %v1500, %v1442
    %1503 = vrot.lane.b32.xlu0 %v1501, 124
    %v1504 = vpop.permute.xlu0 %1503
    %v1506 = vadd.f32 %v1490, %v1504
    %s1507 = sld [smem:[#allocation2 + $0x107]]
    %v1508 = vstv %s1507
    %v1509 = vmul.f32 %v1508, %v1442
    %1511 = vrot.lane.b32.xlu0 %v1509, 124
    %v1512 = vpop.permute.xlu0 %1511
    %v1514 = vadd.f32 %v1498, %v1512
    %s1515 = sld [smem:[#allocation2 + $0x64]]
    %v1516 = vstv %s1515
    %v1517 = vmul.f32 %v1516, %v1442
    %1519 = vrot.lane.b32.xlu0 %v1517, 123
    %v1520 = vpop.permute.xlu0 %1519
    %v1522 = vadd.f32 %v1506, %v1520
    %s1523 = sld [smem:[#allocation2 + $0x109]]
    %v1524 = vstv %s1523
    %v1525 = vmul.f32 %v1524, %v1442
    %1527 = vrot.lane.b32.xlu0 %v1525, 123
    %v1528 = vpop.permute.xlu0 %1527
    %v1530 = vadd.f32 %v1514, %v1528
    %s1531 = sld [smem:[#allocation2 + $0x66]]
    %v1532 = vstv %s1531
    %v1533 = vmul.f32 %v1532, %v1442
    %1535 = vrot.lane.b32.xlu0 %v1533, 122
    %v1536 = vpop.permute.xlu0 %1535
    %v1538 = vadd.f32 %v1522, %v1536
    %s1539 = sld [smem:[#allocation2 + $0x10b]]
    %v1540 = vstv %s1539
    %v1541 = vmul.f32 %v1540, %v1442
    %1543 = vrot.lane.b32.xlu0 %v1541, 122
    %v1544 = vpop.permute.xlu0 %1543
    %v1546 = vadd.f32 %v1530, %v1544
    %s1547 = sld [smem:[#allocation2 + $0x68]]
    %v1548 = vstv %s1547
    %v1549 = vmul.f32 %v1548, %v1442
    %1551 = vrot.lane.b32.xlu0 %v1549, 121
    %v1552 = vpop.permute.xlu0 %1551
    %v1554 = vadd.f32 %v1538, %v1552
    %s1555 = sld [smem:[#allocation2 + $0x10d]]
    %v1556 = vstv %s1555
    %v1557 = vmul.f32 %v1556, %v1442
    %1559 = vrot.lane.b32.xlu0 %v1557, 121
    %v1560 = vpop.permute.xlu0 %1559
    %v1562 = vadd.f32 %v1546, %v1560
    %s1563 = scalar_lea.vmem [#allocation9], 48
    %v1564 = vld [vmem:[%s1563] sm:$0xff]
    %s1565 = sld [smem:[#allocation2 + $0x5b]]
    %v1566 = vstv %s1565
    %v1567 = vmul.f32 %v1566, %v1564
    %v1568 = vadd.f32 %v1554, %v1567
    %s1569 = sld [smem:[#allocation2 + $0x100]]
    %v1570 = vstv %s1569
    %v1571 = vmul.f32 %v1570, %v1564
    %v1572 = vadd.f32 %v1562, %v1571
    %s1573 = sld [smem:[#allocation2 + $0x5d]]
    %v1574 = vstv %s1573
    %v1575 = vmul.f32 %v1574, %v1564
    %1577 = vrot.lane.b32.xlu0 %v1575, 127
    %v1578 = vpop.permute.xlu0 %1577
    %v1580 = vadd.f32 %v1568, %v1578
    %s1581 = sld [smem:[#allocation2 + $0x102]]
    %v1582 = vstv %s1581
    %v1583 = vmul.f32 %v1582, %v1564
    %1585 = vrot.lane.b32.xlu0 %v1583, 127
    %v1586 = vpop.permute.xlu0 %1585
    %v1588 = vadd.f32 %v1572, %v1586
    %s1589 = sld [smem:[#allocation2 + $0x5f]]
    %v1590 = vstv %s1589
    %v1591 = vmul.f32 %v1590, %v1564
    %1593 = vrot.lane.b32.xlu0 %v1591, 126
    %v1594 = vpop.permute.xlu0 %1593
    %v1596 = vadd.f32 %v1580, %v1594
    %s1597 = sld [smem:[#allocation2 + $0x104]]
    %v1598 = vstv %s1597
    %v1599 = vmul.f32 %v1598, %v1564
    %1601 = vrot.lane.b32.xlu0 %v1599, 126
    %v1602 = vpop.permute.xlu0 %1601
    %v1604 = vadd.f32 %v1588, %v1602
    %s1605 = sld [smem:[#allocation2 + $0x61]]
    %v1606 = vstv %s1605
    %v1607 = vmul.f32 %v1606, %v1564
    %1609 = vrot.lane.b32.xlu0 %v1607, 125
    %v1610 = vpop.permute.xlu0 %1609
    %v1612 = vadd.f32 %v1596, %v1610
    %s1613 = sld [smem:[#allocation2 + $0x106]]
    %v1614 = vstv %s1613
    %v1615 = vmul.f32 %v1614, %v1564
    %1617 = vrot.lane.b32.xlu0 %v1615, 125
    %v1618 = vpop.permute.xlu0 %1617
    %v1620 = vadd.f32 %v1604, %v1618
    %s1621 = sld [smem:[#allocation2 + $0x63]]
    %v1622 = vstv %s1621
    %v1623 = vmul.f32 %v1622, %v1564
    %1625 = vrot.lane.b32.xlu0 %v1623, 124
    %v1626 = vpop.permute.xlu0 %1625
    %v1628 = vadd.f32 %v1612, %v1626
    %s1629 = sld [smem:[#allocation2 + $0x108]]
    %v1630 = vstv %s1629
    %v1631 = vmul.f32 %v1630, %v1564
    %1633 = vrot.lane.b32.xlu0 %v1631, 124
    %v1634 = vpop.permute.xlu0 %1633
    %v1636 = vadd.f32 %v1620, %v1634
    %s1637 = sld [smem:[#allocation2 + $0x65]]
    %v1638 = vstv %s1637
    %v1639 = vmul.f32 %v1638, %v1564
    %1641 = vrot.lane.b32.xlu0 %v1639, 123
    %v1642 = vpop.permute.xlu0 %1641
    %v1644 = vadd.f32 %v1628, %v1642
    %s1645 = sld [smem:[#allocation2 + $0x10a]]
    %v1646 = vstv %s1645
    %v1647 = vmul.f32 %v1646, %v1564
    %1649 = vrot.lane.b32.xlu0 %v1647, 123
    %v1650 = vpop.permute.xlu0 %1649
    %v1652 = vadd.f32 %v1636, %v1650
    %s1653 = sld [smem:[#allocation2 + $0x67]]
    %v1654 = vstv %s1653
    %v1655 = vmul.f32 %v1654, %v1564
    %1657 = vrot.lane.b32.xlu0 %v1655, 122
    %v1658 = vpop.permute.xlu0 %1657
    %v1660 = vadd.f32 %v1644, %v1658
    %s1661 = sld [smem:[#allocation2 + $0x10c]]
    %v1662 = vstv %s1661
    %v1663 = vmul.f32 %v1662, %v1564
    %1665 = vrot.lane.b32.xlu0 %v1663, 122
    %v1666 = vpop.permute.xlu0 %1665
    %v1668 = vadd.f32 %v1652, %v1666
    %s1669 = scalar_lea.vmem [#allocation8], 56
    %v1670 = vld [vmem:[%s1669] sm:$0xff]
    %s1671 = sld [smem:[#allocation2 + $0x69]]
    %v1672 = vstv %s1671
    %v1673 = vmul.f32 %v1672, %v1670
    %v1674 = vadd.f32 %v1660, %v1673
    %s1675 = sld [smem:[#allocation2 + $0x10e]]
    %v1676 = vstv %s1675
    %v1677 = vmul.f32 %v1676, %v1670
    %v1678 = vadd.f32 %v1668, %v1677
    %s1679 = sld [smem:[#allocation2 + $0x6b]]
    %v1680 = vstv %s1679
    %v1681 = vmul.f32 %v1680, %v1670
    %1683 = vrot.lane.b32.xlu0 %v1681, 127
    %v1684 = vpop.permute.xlu0 %1683
    %v1686 = vadd.f32 %v1674, %v1684
    %s1687 = sld [smem:[#allocation2 + $0x110]]
    %v1688 = vstv %s1687
    %v1689 = vmul.f32 %v1688, %v1670
    %1691 = vrot.lane.b32.xlu0 %v1689, 127
    %v1692 = vpop.permute.xlu0 %1691
    %v1694 = vadd.f32 %v1678, %v1692
    %s1695 = sld [smem:[#allocation2 + $0x6d]]
    %v1696 = vstv %s1695
    %v1697 = vmul.f32 %v1696, %v1670
    %1699 = vrot.lane.b32.xlu0 %v1697, 126
    %v1700 = vpop.permute.xlu0 %1699
    %v1702 = vadd.f32 %v1686, %v1700
    %s1703 = sld [smem:[#allocation2 + $0x112]]
    %v1704 = vstv %s1703
    %v1705 = vmul.f32 %v1704, %v1670
    %1707 = vrot.lane.b32.xlu0 %v1705, 126
    %v1708 = vpop.permute.xlu0 %1707
    %v1710 = vadd.f32 %v1694, %v1708
    %s1711 = sld [smem:[#allocation2 + $0x6f]]
    %v1712 = vstv %s1711
    %v1713 = vmul.f32 %v1712, %v1670
    %1715 = vrot.lane.b32.xlu0 %v1713, 125
    %v1716 = vpop.permute.xlu0 %1715
    %v1718 = vadd.f32 %v1702, %v1716
    %s1719 = sld [smem:[#allocation2 + $0x114]]
    %v1720 = vstv %s1719
    %v1721 = vmul.f32 %v1720, %v1670
    %1723 = vrot.lane.b32.xlu0 %v1721, 125
    %v1724 = vpop.permute.xlu0 %1723
    %v1726 = vadd.f32 %v1710, %v1724
    %s1727 = sld [smem:[#allocation2 + $0x71]]
    %v1728 = vstv %s1727
    %v1729 = vmul.f32 %v1728, %v1670
    %1731 = vrot.lane.b32.xlu0 %v1729, 124
    %v1732 = vpop.permute.xlu0 %1731
    %v1734 = vadd.f32 %v1718, %v1732
    %s1735 = sld [smem:[#allocation2 + $0x116]]
    %v1736 = vstv %s1735
    %v1737 = vmul.f32 %v1736, %v1670
    %1739 = vrot.lane.b32.xlu0 %v1737, 124
    %v1740 = vpop.permute.xlu0 %1739
    %v1742 = vadd.f32 %v1726, %v1740
    %s1743 = sld [smem:[#allocation2 + $0x73]]
    %v1744 = vstv %s1743
    %v1745 = vmul.f32 %v1744, %v1670
    %1747 = vrot.lane.b32.xlu0 %v1745, 123
    %v1748 = vpop.permute.xlu0 %1747
    %v1750 = vadd.f32 %v1734, %v1748
    %s1751 = sld [smem:[#allocation2 + $0x118]]
    %v1752 = vstv %s1751
    %v1753 = vmul.f32 %v1752, %v1670
    %1755 = vrot.lane.b32.xlu0 %v1753, 123
    %v1756 = vpop.permute.xlu0 %1755
    %v1758 = vadd.f32 %v1742, %v1756
    %s1759 = sld [smem:[#allocation2 + $0x75]]
    %v1760 = vstv %s1759
    %v1761 = vmul.f32 %v1760, %v1670
    %1763 = vrot.lane.b32.xlu0 %v1761, 122
    %v1764 = vpop.permute.xlu0 %1763
    %v1766 = vadd.f32 %v1750, %v1764
    %s1767 = sld [smem:[#allocation2 + $0x11a]]
    %v1768 = vstv %s1767
    %v1769 = vmul.f32 %v1768, %v1670
    %1771 = vrot.lane.b32.xlu0 %v1769, 122
    %v1772 = vpop.permute.xlu0 %1771
    %v1774 = vadd.f32 %v1758, %v1772
    %s1775 = sld [smem:[#allocation2 + $0x77]]
    %v1776 = vstv %s1775
    %v1777 = vmul.f32 %v1776, %v1670
    %1779 = vrot.lane.b32.xlu0 %v1777, 121
    %v1780 = vpop.permute.xlu0 %1779
    %v1782 = vadd.f32 %v1766, %v1780
    %s1783 = sld [smem:[#allocation2 + $0x11c]]
    %v1784 = vstv %s1783
    %v1785 = vmul.f32 %v1784, %v1670
    %1787 = vrot.lane.b32.xlu0 %v1785, 121
    %v1788 = vpop.permute.xlu0 %1787
    %v1790 = vadd.f32 %v1774, %v1788
    %s1791 = scalar_lea.vmem [#allocation9], 56
    %v1792 = vld [vmem:[%s1791] sm:$0xff]
    %s1793 = sld [smem:[#allocation2 + $0x6a]]
    %v1794 = vstv %s1793
    %v1795 = vmul.f32 %v1794, %v1792
    %v1796 = vadd.f32 %v1782, %v1795
    %s1797 = sld [smem:[#allocation2 + $0x10f]]
    %v1798 = vstv %s1797
    %v1799 = vmul.f32 %v1798, %v1792
    %v1800 = vadd.f32 %v1790, %v1799
    %s1801 = sld [smem:[#allocation2 + $0x6c]]
    %v1802 = vstv %s1801
    %v1803 = vmul.f32 %v1802, %v1792
    %1805 = vrot.lane.b32.xlu0 %v1803, 127
    %v1806 = vpop.permute.xlu0 %1805
    %v1808 = vadd.f32 %v1796, %v1806
    %s1809 = sld [smem:[#allocation2 + $0x111]]
    %v1810 = vstv %s1809
    %v1811 = vmul.f32 %v1810, %v1792
    %1813 = vrot.lane.b32.xlu0 %v1811, 127
    %v1814 = vpop.permute.xlu0 %1813
    %v1816 = vadd.f32 %v1800, %v1814
    %s1817 = sld [smem:[#allocation2 + $0x6e]]
    %v1818 = vstv %s1817
    %v1819 = vmul.f32 %v1818, %v1792
    %1821 = vrot.lane.b32.xlu0 %v1819, 126
    %v1822 = vpop.permute.xlu0 %1821
    %v1824 = vadd.f32 %v1808, %v1822
    %s1825 = sld [smem:[#allocation2 + $0x113]]
    %v1826 = vstv %s1825
    %v1827 = vmul.f32 %v1826, %v1792
    %1829 = vrot.lane.b32.xlu0 %v1827, 126
    %v1830 = vpop.permute.xlu0 %1829
    %v1832 = vadd.f32 %v1816, %v1830
    %s1833 = sld [smem:[#allocation2 + $0x70]]
    %v1834 = vstv %s1833
    %v1835 = vmul.f32 %v1834, %v1792
    %1837 = vrot.lane.b32.xlu0 %v1835, 125
    %v1838 = vpop.permute.xlu0 %1837
    %v1840 = vadd.f32 %v1824, %v1838
    %s1841 = sld [smem:[#allocation2 + $0x115]]
    %v1842 = vstv %s1841
    %v1843 = vmul.f32 %v1842, %v1792
    %1845 = vrot.lane.b32.xlu0 %v1843, 125
    %v1846 = vpop.permute.xlu0 %1845
    %v1848 = vadd.f32 %v1832, %v1846
    %s1849 = sld [smem:[#allocation2 + $0x72]]
    %v1850 = vstv %s1849
    %v1851 = vmul.f32 %v1850, %v1792
    %1853 = vrot.lane.b32.xlu0 %v1851, 124
    %v1854 = vpop.permute.xlu0 %1853
    %v1856 = vadd.f32 %v1840, %v1854
    %s1857 = sld [smem:[#allocation2 + $0x117]]
    %v1858 = vstv %s1857
    %v1859 = vmul.f32 %v1858, %v1792
    %1861 = vrot.lane.b32.xlu0 %v1859, 124
    %v1862 = vpop.permute.xlu0 %1861
    %v1864 = vadd.f32 %v1848, %v1862
    %s1865 = sld [smem:[#allocation2 + $0x74]]
    %v1866 = vstv %s1865
    %v1867 = vmul.f32 %v1866, %v1792
    %1869 = vrot.lane.b32.xlu0 %v1867, 123
    %v1870 = vpop.permute.xlu0 %1869
    %v1872 = vadd.f32 %v1856, %v1870
    %s1873 = sld [smem:[#allocation2 + $0x119]]
    %v1874 = vstv %s1873
    %v1875 = vmul.f32 %v1874, %v1792
    %1877 = vrot.lane.b32.xlu0 %v1875, 123
    %v1878 = vpop.permute.xlu0 %1877
    %v1880 = vadd.f32 %v1864, %v1878
    %s1881 = sld [smem:[#allocation2 + $0x76]]
    %v1882 = vstv %s1881
    %v1883 = vmul.f32 %v1882, %v1792
    %1885 = vrot.lane.b32.xlu0 %v1883, 122
    %v1886 = vpop.permute.xlu0 %1885
    %v1888 = vadd.f32 %v1872, %v1886
    %s1889 = sld [smem:[#allocation2 + $0x11b]]
    %v1890 = vstv %s1889
    %v1891 = vmul.f32 %v1890, %v1792
    %1893 = vrot.lane.b32.xlu0 %v1891, 122
    %v1894 = vpop.permute.xlu0 %1893
    %v1896 = vadd.f32 %v1880, %v1894
    %s1897 = scalar_lea.vmem [#allocation8], 64
    %v1898 = vld [vmem:[%s1897] sm:$0xff]
    %s1899 = sld [smem:[#allocation2 + $0x78]]
    %v1900 = vstv %s1899
    %v1901 = vmul.f32 %v1900, %v1898
    %v1902 = vadd.f32 %v1888, %v1901
    %s1903 = sld [smem:[#allocation2 + $0x11d]]
    %v1904 = vstv %s1903
    %v1905 = vmul.f32 %v1904, %v1898
    %v1906 = vadd.f32 %v1896, %v1905
    %s1907 = sld [smem:[#allocation2 + $0x7a]]
    %v1908 = vstv %s1907
    %v1909 = vmul.f32 %v1908, %v1898
    %1911 = vrot.lane.b32.xlu0 %v1909, 127
    %v1912 = vpop.permute.xlu0 %1911
    %v1914 = vadd.f32 %v1902, %v1912
    %s1915 = sld [smem:[#allocation2 + $0x11f]]
    %v1916 = vstv %s1915
    %v1917 = vmul.f32 %v1916, %v1898
    %1919 = vrot.lane.b32.xlu0 %v1917, 127
    %v1920 = vpop.permute.xlu0 %1919
    %v1922 = vadd.f32 %v1906, %v1920
    %s1923 = sld [smem:[#allocation2 + $0x7c]]
    %v1924 = vstv %s1923
    %v1925 = vmul.f32 %v1924, %v1898
    %1927 = vrot.lane.b32.xlu0 %v1925, 126
    %v1928 = vpop.permute.xlu0 %1927
    %v1930 = vadd.f32 %v1914, %v1928
    %s1931 = sld [smem:[#allocation2 + $0x121]]
    %v1932 = vstv %s1931
    %v1933 = vmul.f32 %v1932, %v1898
    %1935 = vrot.lane.b32.xlu0 %v1933, 126
    %v1936 = vpop.permute.xlu0 %1935
    %v1938 = vadd.f32 %v1922, %v1936
    %s1939 = sld [smem:[#allocation2 + $0x7e]]
    %v1940 = vstv %s1939
    %v1941 = vmul.f32 %v1940, %v1898
    %1943 = vrot.lane.b32.xlu0 %v1941, 125
    %v1944 = vpop.permute.xlu0 %1943
    %v1946 = vadd.f32 %v1930, %v1944
    %s1947 = sld [smem:[#allocation2 + $0x123]]
    %v1948 = vstv %s1947
    %v1949 = vmul.f32 %v1948, %v1898
    %1951 = vrot.lane.b32.xlu0 %v1949, 125
    %v1952 = vpop.permute.xlu0 %1951
    %v1954 = vadd.f32 %v1938, %v1952
    %s1955 = sld [smem:[#allocation2 + $0x80]]
    %v1956 = vstv %s1955
    %v1957 = vmul.f32 %v1956, %v1898
    %1959 = vrot.lane.b32.xlu0 %v1957, 124
    %v1960 = vpop.permute.xlu0 %1959
    %v1962 = vadd.f32 %v1946, %v1960
    %s1963 = sld [smem:[#allocation2 + $0x125]]
    %v1964 = vstv %s1963
    %v1965 = vmul.f32 %v1964, %v1898
    %1967 = vrot.lane.b32.xlu0 %v1965, 124
    %v1968 = vpop.permute.xlu0 %1967
    %v1970 = vadd.f32 %v1954, %v1968
    %s1971 = sld [smem:[#allocation2 + $0x82]]
    %v1972 = vstv %s1971
    %v1973 = vmul.f32 %v1972, %v1898
    %1975 = vrot.lane.b32.xlu0 %v1973, 123
    %v1976 = vpop.permute.xlu0 %1975
    %v1978 = vadd.f32 %v1962, %v1976
    %s1979 = sld [smem:[#allocation2 + $0x127]]
    %v1980 = vstv %s1979
    %v1981 = vmul.f32 %v1980, %v1898
    %1983 = vrot.lane.b32.xlu0 %v1981, 123
    %v1984 = vpop.permute.xlu0 %1983
    %v1986 = vadd.f32 %v1970, %v1984
    %s1987 = sld [smem:[#allocation2 + $0x84]]
    %v1988 = vstv %s1987
    %v1989 = vmul.f32 %v1988, %v1898
    %1991 = vrot.lane.b32.xlu0 %v1989, 122
    %v1992 = vpop.permute.xlu0 %1991
    %v1994 = vadd.f32 %v1978, %v1992
    %s1995 = sld [smem:[#allocation2 + $0x129]]
    %v1996 = vstv %s1995
    %v1997 = vmul.f32 %v1996, %v1898
    %1999 = vrot.lane.b32.xlu0 %v1997, 122
    %v2000 = vpop.permute.xlu0 %1999
    %v2002 = vadd.f32 %v1986, %v2000
    %s2003 = sld [smem:[#allocation2 + $0x86]]
    %v2004 = vstv %s2003
    %v2005 = vmul.f32 %v2004, %v1898
    %2007 = vrot.lane.b32.xlu0 %v2005, 121
    %v2008 = vpop.permute.xlu0 %2007
    %v2010 = vadd.f32 %v1994, %v2008
    %s2011 = sld [smem:[#allocation2 + $0x12b]]
    %v2012 = vstv %s2011
    %v2013 = vmul.f32 %v2012, %v1898
    %2015 = vrot.lane.b32.xlu0 %v2013, 121
    %v2016 = vpop.permute.xlu0 %2015
    %v2018 = vadd.f32 %v2002, %v2016
    %s2019 = scalar_lea.vmem [#allocation9], 64
    %v2020 = vld [vmem:[%s2019] sm:$0xff]
    %s2021 = sld [smem:[#allocation2 + $0x79]]
    %v2022 = vstv %s2021
    %v2023 = vmul.f32 %v2022, %v2020
    %v2024 = vadd.f32 %v2010, %v2023
    %s2025 = sld [smem:[#allocation2 + $0x11e]]
    %v2026 = vstv %s2025
    %v2027 = vmul.f32 %v2026, %v2020
    %v2028 = vadd.f32 %v2018, %v2027
    %s2029 = sld [smem:[#allocation2 + $0x7b]]
    %v2030 = vstv %s2029
    %v2031 = vmul.f32 %v2030, %v2020
    %2033 = vrot.lane.b32.xlu0 %v2031, 127
    %v2034 = vpop.permute.xlu0 %2033
    %v2036 = vadd.f32 %v2024, %v2034
    %s2037 = sld [smem:[#allocation2 + $0x120]]
    %v2038 = vstv %s2037
    %v2039 = vmul.f32 %v2038, %v2020
    %2041 = vrot.lane.b32.xlu0 %v2039, 127
    %v2042 = vpop.permute.xlu0 %2041
    %v2044 = vadd.f32 %v2028, %v2042
    %s2045 = sld [smem:[#allocation2 + $0x7d]]
    %v2046 = vstv %s2045
    %v2047 = vmul.f32 %v2046, %v2020
    %2049 = vrot.lane.b32.xlu0 %v2047, 126
    %v2050 = vpop.permute.xlu0 %2049
    %v2052 = vadd.f32 %v2036, %v2050
    %s2053 = sld [smem:[#allocation2 + $0x122]]
    %v2054 = vstv %s2053
    %v2055 = vmul.f32 %v2054, %v2020
    %2057 = vrot.lane.b32.xlu0 %v2055, 126
    %v2058 = vpop.permute.xlu0 %2057
    %v2060 = vadd.f32 %v2044, %v2058
    %s2061 = sld [smem:[#allocation2 + $0x7f]]
    %v2062 = vstv %s2061
    %v2063 = vmul.f32 %v2062, %v2020
    %2065 = vrot.lane.b32.xlu0 %v2063, 125
    %v2066 = vpop.permute.xlu0 %2065
    %v2068 = vadd.f32 %v2052, %v2066
    %s2069 = sld [smem:[#allocation2 + $0x124]]
    %v2070 = vstv %s2069
    %v2071 = vmul.f32 %v2070, %v2020
    %2073 = vrot.lane.b32.xlu0 %v2071, 125
    %v2074 = vpop.permute.xlu0 %2073
    %v2076 = vadd.f32 %v2060, %v2074
    %s2077 = sld [smem:[#allocation2 + $0x81]]
    %v2078 = vstv %s2077
    %v2079 = vmul.f32 %v2078, %v2020
    %2081 = vrot.lane.b32.xlu0 %v2079, 124
    %v2082 = vpop.permute.xlu0 %2081
    %v2084 = vadd.f32 %v2068, %v2082
    %s2085 = sld [smem:[#allocation2 + $0x126]]
    %v2086 = vstv %s2085
    %v2087 = vmul.f32 %v2086, %v2020
    %2089 = vrot.lane.b32.xlu0 %v2087, 124
    %v2090 = vpop.permute.xlu0 %2089
    %v2092 = vadd.f32 %v2076, %v2090
    %s2093 = sld [smem:[#allocation2 + $0x83]]
    %v2094 = vstv %s2093
    %v2095 = vmul.f32 %v2094, %v2020
    %2097 = vrot.lane.b32.xlu0 %v2095, 123
    %v2098 = vpop.permute.xlu0 %2097
    %v2100 = vadd.f32 %v2084, %v2098
    %s2101 = sld [smem:[#allocation2 + $0x128]]
    %v2102 = vstv %s2101
    %v2103 = vmul.f32 %v2102, %v2020
    %2105 = vrot.lane.b32.xlu0 %v2103, 123
    %v2106 = vpop.permute.xlu0 %2105
    %v2108 = vadd.f32 %v2092, %v2106
    %s2109 = sld [smem:[#allocation2 + $0x85]]
    %v2110 = vstv %s2109
    %v2111 = vmul.f32 %v2110, %v2020
    %2113 = vrot.lane.b32.xlu0 %v2111, 122
    %v2114 = vpop.permute.xlu0 %2113
    %v2116 = vadd.f32 %v2100, %v2114
    %s2117 = sld [smem:[#allocation2 + $0x12a]]
    %v2118 = vstv %s2117
    %v2119 = vmul.f32 %v2118, %v2020
    %2121 = vrot.lane.b32.xlu0 %v2119, 122
    %v2122 = vpop.permute.xlu0 %2121
    %v2124 = vadd.f32 %v2108, %v2122
    %s2125 = scalar_lea.vmem [#allocation8], 72
    %v2126 = vld [vmem:[%s2125] sm:$0xff]
    %s2127 = sld [smem:[#allocation2 + $0x87]]
    %v2128 = vstv %s2127
    %v2129 = vmul.f32 %v2128, %v2126
    %v2130 = vadd.f32 %v2116, %v2129
    %s2131 = sld [smem:[#allocation2 + $0x12c]]
    %v2132 = vstv %s2131
    %v2133 = vmul.f32 %v2132, %v2126
    %v2134 = vadd.f32 %v2124, %v2133
    %s2135 = sld [smem:[#allocation2 + $0x89]]
    %v2136 = vstv %s2135
    %v2137 = vmul.f32 %v2136, %v2126
    %2139 = vrot.lane.b32.xlu0 %v2137, 127
    %v2140 = vpop.permute.xlu0 %2139
    %v2142 = vadd.f32 %v2130, %v2140
    %s2143 = sld [smem:[#allocation2 + $0x12e]]
    %v2144 = vstv %s2143
    %v2145 = vmul.f32 %v2144, %v2126
    %2147 = vrot.lane.b32.xlu0 %v2145, 127
    %v2148 = vpop.permute.xlu0 %2147
    %v2150 = vadd.f32 %v2134, %v2148
    %s2151 = sld [smem:[#allocation2 + $0x8b]]
    %v2152 = vstv %s2151
    %v2153 = vmul.f32 %v2152, %v2126
    %2155 = vrot.lane.b32.xlu0 %v2153, 126
    %v2156 = vpop.permute.xlu0 %2155
    %v2158 = vadd.f32 %v2142, %v2156
    %s2159 = sld [smem:[#allocation2 + $0x130]]
    %v2160 = vstv %s2159
    %v2161 = vmul.f32 %v2160, %v2126
    %2163 = vrot.lane.b32.xlu0 %v2161, 126
    %v2164 = vpop.permute.xlu0 %2163
    %v2166 = vadd.f32 %v2150, %v2164
    %s2167 = sld [smem:[#allocation2 + $0x8d]]
    %v2168 = vstv %s2167
    %v2169 = vmul.f32 %v2168, %v2126
    %2171 = vrot.lane.b32.xlu0 %v2169, 125
    %v2172 = vpop.permute.xlu0 %2171
    %v2174 = vadd.f32 %v2158, %v2172
    %s2175 = sld [smem:[#allocation2 + $0x132]]
    %v2176 = vstv %s2175
    %v2177 = vmul.f32 %v2176, %v2126
    %2179 = vrot.lane.b32.xlu0 %v2177, 125
    %v2180 = vpop.permute.xlu0 %2179
    %v2182 = vadd.f32 %v2166, %v2180
    %s2183 = sld [smem:[#allocation2 + $0x8f]]
    %v2184 = vstv %s2183
    %v2185 = vmul.f32 %v2184, %v2126
    %2187 = vrot.lane.b32.xlu0 %v2185, 124
    %v2188 = vpop.permute.xlu0 %2187
    %v2190 = vadd.f32 %v2174, %v2188
    %s2191 = sld [smem:[#allocation2 + $0x134]]
    %v2192 = vstv %s2191
    %v2193 = vmul.f32 %v2192, %v2126
    %2195 = vrot.lane.b32.xlu0 %v2193, 124
    %v2196 = vpop.permute.xlu0 %2195
    %v2198 = vadd.f32 %v2182, %v2196
    %s2199 = sld [smem:[#allocation2 + $0x91]]
    %v2200 = vstv %s2199
    %v2201 = vmul.f32 %v2200, %v2126
    %2203 = vrot.lane.b32.xlu0 %v2201, 123
    %v2204 = vpop.permute.xlu0 %2203
    %v2206 = vadd.f32 %v2190, %v2204
    %s2207 = sld [smem:[#allocation2 + $0x136]]
    %v2208 = vstv %s2207
    %v2209 = vmul.f32 %v2208, %v2126
    %2211 = vrot.lane.b32.xlu0 %v2209, 123
    %v2212 = vpop.permute.xlu0 %2211
    %v2214 = vadd.f32 %v2198, %v2212
    %s2215 = sld [smem:[#allocation2 + $0x93]]
    %v2216 = vstv %s2215
    %v2217 = vmul.f32 %v2216, %v2126
    %2219 = vrot.lane.b32.xlu0 %v2217, 122
    %v2220 = vpop.permute.xlu0 %2219
    %v2222 = vadd.f32 %v2206, %v2220
    %s2223 = sld [smem:[#allocation2 + $0x138]]
    %v2224 = vstv %s2223
    %v2225 = vmul.f32 %v2224, %v2126
    %2227 = vrot.lane.b32.xlu0 %v2225, 122
    %v2228 = vpop.permute.xlu0 %2227
    %v2230 = vadd.f32 %v2214, %v2228
    %s2231 = sld [smem:[#allocation2 + $0x95]]
    %v2232 = vstv %s2231
    %v2233 = vmul.f32 %v2232, %v2126
    %2235 = vrot.lane.b32.xlu0 %v2233, 121
    %v2236 = vpop.permute.xlu0 %2235
    %v2238 = vadd.f32 %v2222, %v2236
    %s2239 = sld [smem:[#allocation2 + $0x13a]]
    %v2240 = vstv %s2239
    %v2241 = vmul.f32 %v2240, %v2126
    %2243 = vrot.lane.b32.xlu0 %v2241, 121
    %v2244 = vpop.permute.xlu0 %2243
    %v2246 = vadd.f32 %v2230, %v2244
    %s2247 = scalar_lea.vmem [#allocation9], 72
    %v2248 = vld [vmem:[%s2247] sm:$0xff]
    %s2249 = sld [smem:[#allocation2 + $0x88]]
    %v2250 = vstv %s2249
    %v2251 = vmul.f32 %v2250, %v2248
    %v2252 = vadd.f32 %v2238, %v2251
    %s2253 = sld [smem:[#allocation2 + $0x12d]]
    %v2254 = vstv %s2253
    %v2255 = vmul.f32 %v2254, %v2248
    %v2256 = vadd.f32 %v2246, %v2255
    %s2257 = sld [smem:[#allocation2 + $0x8a]]
    %v2258 = vstv %s2257
    %v2259 = vmul.f32 %v2258, %v2248
    %2261 = vrot.lane.b32.xlu0 %v2259, 127
    %v2262 = vpop.permute.xlu0 %2261
    %v2264 = vadd.f32 %v2252, %v2262
    %s2265 = sld [smem:[#allocation2 + $0x12f]]
    %v2266 = vstv %s2265
    %v2267 = vmul.f32 %v2266, %v2248
    %2269 = vrot.lane.b32.xlu0 %v2267, 127
    %v2270 = vpop.permute.xlu0 %2269
    %v2272 = vadd.f32 %v2256, %v2270
    %s2273 = sld [smem:[#allocation2 + $0x8c]]
    %v2274 = vstv %s2273
    %v2275 = vmul.f32 %v2274, %v2248
    %2277 = vrot.lane.b32.xlu0 %v2275, 126
    %v2278 = vpop.permute.xlu0 %2277
    %v2280 = vadd.f32 %v2264, %v2278
    %s2281 = sld [smem:[#allocation2 + $0x131]]
    %v2282 = vstv %s2281
    %v2283 = vmul.f32 %v2282, %v2248
    %2285 = vrot.lane.b32.xlu0 %v2283, 126
    %v2286 = vpop.permute.xlu0 %2285
    %v2288 = vadd.f32 %v2272, %v2286
    %s2289 = sld [smem:[#allocation2 + $0x8e]]
    %v2290 = vstv %s2289
    %v2291 = vmul.f32 %v2290, %v2248
    %2293 = vrot.lane.b32.xlu0 %v2291, 125
    %v2294 = vpop.permute.xlu0 %2293
    %v2296 = vadd.f32 %v2280, %v2294
    %s2297 = sld [smem:[#allocation2 + $0x133]]
    %v2298 = vstv %s2297
    %v2299 = vmul.f32 %v2298, %v2248
    %2301 = vrot.lane.b32.xlu0 %v2299, 125
    %v2302 = vpop.permute.xlu0 %2301
    %v2304 = vadd.f32 %v2288, %v2302
    %s2305 = sld [smem:[#allocation2 + $0x90]]
    %v2306 = vstv %s2305
    %v2307 = vmul.f32 %v2306, %v2248
    %2309 = vrot.lane.b32.xlu0 %v2307, 124
    %v2310 = vpop.permute.xlu0 %2309
    %v2312 = vadd.f32 %v2296, %v2310
    %s2313 = sld [smem:[#allocation2 + $0x135]]
    %v2314 = vstv %s2313
    %v2315 = vmul.f32 %v2314, %v2248
    %2317 = vrot.lane.b32.xlu0 %v2315, 124
    %v2318 = vpop.permute.xlu0 %2317
    %v2320 = vadd.f32 %v2304, %v2318
    %s2321 = sld [smem:[#allocation2 + $0x92]]
    %v2322 = vstv %s2321
    %v2323 = vmul.f32 %v2322, %v2248
    %2325 = vrot.lane.b32.xlu0 %v2323, 123
    %v2326 = vpop.permute.xlu0 %2325
    %v2328 = vadd.f32 %v2312, %v2326
    %s2329 = sld [smem:[#allocation2 + $0x137]]
    %v2330 = vstv %s2329
    %v2331 = vmul.f32 %v2330, %v2248
    %2333 = vrot.lane.b32.xlu0 %v2331, 123
    %v2334 = vpop.permute.xlu0 %2333
    %v2336 = vadd.f32 %v2320, %v2334
    %s2337 = sld [smem:[#allocation2 + $0x94]]
    %v2338 = vstv %s2337
    %v2339 = vmul.f32 %v2338, %v2248
    %2341 = vrot.lane.b32.xlu0 %v2339, 122
    %v2342 = vpop.permute.xlu0 %2341
    %v2344 = vadd.f32 %v2328, %v2342
    %s2345 = sld [smem:[#allocation2 + $0x139]]
    %v2346 = vstv %s2345
    %v2347 = vmul.f32 %v2346, %v2248
    %2349 = vrot.lane.b32.xlu0 %v2347, 122
    %v2350 = vpop.permute.xlu0 %2349
    %v2352 = vadd.f32 %v2336, %v2350
    %s2353 = scalar_lea.vmem [#allocation8], 80
    %v2354 = vld [vmem:[%s2353] sm:$0xff]
    %s2355 = sld [smem:[#allocation2 + $0x96]]
    %v2356 = vstv %s2355
    %v2357 = vmul.f32 %v2356, %v2354
    %v2358 = vadd.f32 %v2344, %v2357
    %s2359 = sld [smem:[#allocation2 + $0x13b]]
    %v2360 = vstv %s2359
    %v2361 = vmul.f32 %v2360, %v2354
    %v2362 = vadd.f32 %v2352, %v2361
    %s2363 = sld [smem:[#allocation2 + $0x98]]
    %v2364 = vstv %s2363
    %v2365 = vmul.f32 %v2364, %v2354
    %2367 = vrot.lane.b32.xlu0 %v2365, 127
    %v2368 = vpop.permute.xlu0 %2367
    %v2370 = vadd.f32 %v2358, %v2368
    %s2371 = sld [smem:[#allocation2 + $0x13d]]
    %v2372 = vstv %s2371
    %v2373 = vmul.f32 %v2372, %v2354
    %2375 = vrot.lane.b32.xlu0 %v2373, 127
    %v2376 = vpop.permute.xlu0 %2375
    %v2378 = vadd.f32 %v2362, %v2376
    %s2379 = sld [smem:[#allocation2 + $0x9a]]
    %v2380 = vstv %s2379
    %v2381 = vmul.f32 %v2380, %v2354
    %2383 = vrot.lane.b32.xlu0 %v2381, 126
    %v2384 = vpop.permute.xlu0 %2383
    %v2386 = vadd.f32 %v2370, %v2384
    %s2387 = sld [smem:[#allocation2 + $0x13f]]
    %v2388 = vstv %s2387
    %v2389 = vmul.f32 %v2388, %v2354
    %2391 = vrot.lane.b32.xlu0 %v2389, 126
    %v2392 = vpop.permute.xlu0 %2391
    %v2394 = vadd.f32 %v2378, %v2392
    %s2395 = sld [smem:[#allocation2 + $0x9c]]
    %v2396 = vstv %s2395
    %v2397 = vmul.f32 %v2396, %v2354
    %2399 = vrot.lane.b32.xlu0 %v2397, 125
    %v2400 = vpop.permute.xlu0 %2399
    %v2402 = vadd.f32 %v2386, %v2400
    %s2403 = sld [smem:[#allocation2 + $0x141]]
    %v2404 = vstv %s2403
    %v2405 = vmul.f32 %v2404, %v2354
    %2407 = vrot.lane.b32.xlu0 %v2405, 125
    %v2408 = vpop.permute.xlu0 %2407
    %v2410 = vadd.f32 %v2394, %v2408
    %s2411 = sld [smem:[#allocation2 + $0x9e]]
    %v2412 = vstv %s2411
    %v2413 = vmul.f32 %v2412, %v2354
    %2415 = vrot.lane.b32.xlu0 %v2413, 124
    %v2416 = vpop.permute.xlu0 %2415
    %v2418 = vadd.f32 %v2402, %v2416
    %s2419 = sld [smem:[#allocation2 + $0x143]]
    %v2420 = vstv %s2419
    %v2421 = vmul.f32 %v2420, %v2354
    %2423 = vrot.lane.b32.xlu0 %v2421, 124
    %v2424 = vpop.permute.xlu0 %2423
    %v2426 = vadd.f32 %v2410, %v2424
    %s2427 = sld [smem:[#allocation2 + $0xa0]]
    %v2428 = vstv %s2427
    %v2429 = vmul.f32 %v2428, %v2354
    %2431 = vrot.lane.b32.xlu0 %v2429, 123
    %v2432 = vpop.permute.xlu0 %2431
    %v2434 = vadd.f32 %v2418, %v2432
    %s2435 = sld [smem:[#allocation2 + $0x145]]
    %v2436 = vstv %s2435
    %v2437 = vmul.f32 %v2436, %v2354
    %2439 = vrot.lane.b32.xlu0 %v2437, 123
    %v2440 = vpop.permute.xlu0 %2439
    %v2442 = vadd.f32 %v2426, %v2440
    %s2443 = sld [smem:[#allocation2 + $0xa2]]
    %v2444 = vstv %s2443
    %v2445 = vmul.f32 %v2444, %v2354
    %2447 = vrot.lane.b32.xlu0 %v2445, 122
    %v2448 = vpop.permute.xlu0 %2447
    %v2450 = vadd.f32 %v2434, %v2448
    %s2451 = sld [smem:[#allocation2 + $0x147]]
    %v2452 = vstv %s2451
    %v2453 = vmul.f32 %v2452, %v2354
    %2455 = vrot.lane.b32.xlu0 %v2453, 122
    %v2456 = vpop.permute.xlu0 %2455
    %v2458 = vadd.f32 %v2442, %v2456
    %s2459 = sld [smem:[#allocation2 + $0xa4]]
    %v2460 = vstv %s2459
    %v2461 = vmul.f32 %v2460, %v2354
    %2463 = vrot.lane.b32.xlu0 %v2461, 121
    %v2464 = vpop.permute.xlu0 %2463
    %v2466 = vadd.f32 %v2450, %v2464
    %s2467 = sld [smem:[#allocation2 + $0x149]]
    %v2468 = vstv %s2467
    %v2469 = vmul.f32 %v2468, %v2354
    %2471 = vrot.lane.b32.xlu0 %v2469, 121
    %v2472 = vpop.permute.xlu0 %2471
    %v2474 = vadd.f32 %v2458, %v2472
    %s2475 = scalar_lea.vmem [#allocation9], 80
    %v2476 = vld [vmem:[%s2475] sm:$0xff]
    %s2477 = sld [smem:[#allocation2 + $0x97]]
    %v2478 = vstv %s2477
    %v2479 = vmul.f32 %v2478, %v2476
    %v2480 = vadd.f32 %v2466, %v2479
    %s2481 = sld [smem:[#allocation2 + $0x13c]]
    %v2482 = vstv %s2481
    %v2483 = vmul.f32 %v2482, %v2476
    %v2484 = vadd.f32 %v2474, %v2483
    %s2485 = sld [smem:[#allocation2 + $0x99]]
    %v2486 = vstv %s2485
    %v2487 = vmul.f32 %v2486, %v2476
    %2489 = vrot.lane.b32.xlu0 %v2487, 127
    %v2490 = vpop.permute.xlu0 %2489
    %v2492 = vadd.f32 %v2480, %v2490
    %s2493 = sld [smem:[#allocation2 + $0x13e]]
    %v2494 = vstv %s2493
    %v2495 = vmul.f32 %v2494, %v2476
    %2497 = vrot.lane.b32.xlu0 %v2495, 127
    %v2498 = vpop.permute.xlu0 %2497
    %v2500 = vadd.f32 %v2484, %v2498
    %s2501 = sld [smem:[#allocation2 + $0x9b]]
    %v2502 = vstv %s2501
    %v2503 = vmul.f32 %v2502, %v2476
    %2505 = vrot.lane.b32.xlu0 %v2503, 126
    %v2506 = vpop.permute.xlu0 %2505
    %v2508 = vadd.f32 %v2492, %v2506
    %s2509 = sld [smem:[#allocation2 + $0x140]]
    %v2510 = vstv %s2509
    %v2511 = vmul.f32 %v2510, %v2476
    %2513 = vrot.lane.b32.xlu0 %v2511, 126
    %v2514 = vpop.permute.xlu0 %2513
    %v2516 = vadd.f32 %v2500, %v2514
    %s2517 = sld [smem:[#allocation2 + $0x9d]]
    %v2518 = vstv %s2517
    %v2519 = vmul.f32 %v2518, %v2476
    %2521 = vrot.lane.b32.xlu0 %v2519, 125
    %v2522 = vpop.permute.xlu0 %2521
    %v2524 = vadd.f32 %v2508, %v2522
    %s2525 = sld [smem:[#allocation2 + $0x142]]
    %v2526 = vstv %s2525
    %v2527 = vmul.f32 %v2526, %v2476
    %2529 = vrot.lane.b32.xlu0 %v2527, 125
    %v2530 = vpop.permute.xlu0 %2529
    %v2532 = vadd.f32 %v2516, %v2530
    %s2533 = sld [smem:[#allocation2 + $0x9f]]
    %v2534 = vstv %s2533
    %v2535 = vmul.f32 %v2534, %v2476
    %2537 = vrot.lane.b32.xlu0 %v2535, 124
    %v2538 = vpop.permute.xlu0 %2537
    %v2540 = vadd.f32 %v2524, %v2538
    %s2541 = sld [smem:[#allocation2 + $0x144]]
    %v2542 = vstv %s2541
    %v2543 = vmul.f32 %v2542, %v2476
    %2545 = vrot.lane.b32.xlu0 %v2543, 124
    %v2546 = vpop.permute.xlu0 %2545
    %v2548 = vadd.f32 %v2532, %v2546
    %s2549 = sld [smem:[#allocation2 + $0xa1]]
    %v2550 = vstv %s2549
    %v2551 = vmul.f32 %v2550, %v2476
    %2553 = vrot.lane.b32.xlu0 %v2551, 123
    %v2554 = vpop.permute.xlu0 %2553
    %v2556 = vadd.f32 %v2540, %v2554
    %s2557 = sld [smem:[#allocation2 + $0x146]]
    %v2558 = vstv %s2557
    %v2559 = vmul.f32 %v2558, %v2476
    %2561 = vrot.lane.b32.xlu0 %v2559, 123
    %v2562 = vpop.permute.xlu0 %2561
    %v2564 = vadd.f32 %v2548, %v2562
    %s2565 = sld [smem:[#allocation2 + $0xa3]]
    %v2566 = vstv %s2565
    %v2567 = vmul.f32 %v2566, %v2476
    %2569 = vrot.lane.b32.xlu0 %v2567, 122
    %v2570 = vpop.permute.xlu0 %2569
    %v2572 = vadd.f32 %v2556, %v2570
    %s2573 = sld [smem:[#allocation2 + $0x148]]
    %v2574 = vstv %s2573
    %v2575 = vmul.f32 %v2574, %v2476
    %2577 = vrot.lane.b32.xlu0 %v2575, 122
    %v2578 = vpop.permute.xlu0 %2577
    %v2580 = vadd.f32 %v2564, %v2578
    %s2581 = sld [smem:[#allocation6]]
    %v2582 = vstv %s2581
    %v2583 = vadd.f32 %v2572, %v2582
    %s2584 = sld [smem:[#allocation6 + $0x1]]
    %v2585 = vstv %s2584
    %v2586 = vadd.f32 %v2580, %v2585
    %v2587 = vmul.f32 %v2583, %v2583
    %v2588 = vmul.f32 %v2586, %v2586
    %v2589 = vadd.f32 %v2587, %v2588
    %v2590 = vrsqrt.pop %v2589
    %v2591 = vmul.f32 %v2590, %v2589
    %v2592 = vmul.f32 %v2591, %v2590
    %v2593 = vmul.f32 0.5, %v2592
    %v2594 = vsub.f32 1.5, %v2593
    %v2595 = vmul.f32 %v2590, %v2594
    %v2596 = vmul.f32 %v2589, %v2595
    %vm2597 = vcmp.eq.f32.partialorder %v2589, inf
    %v2598 = vsel %vm2597, %v2589, %v2596
    %vm2599 = vcmp.eq.f32.partialorder %v2589, 0.0
    %v2600 = vand.u32 %v2589, 2147483648
    %v2601 = vsel %vm2599, %v2600, %v2598
    %v2602 = vadd.f32 %v2601, 1e-12
    %v2603 = vrcp.pop %v2602
    %v2604 = vmul.f32 %v2602, %v2603
    %v2605 = vsub.f32 1.0, %v2604
    %v2606 = vmul.f32 %v2603, %v2605
    %v2607 = vadd.f32 %v2603, %v2606
    %vm2608 = vweird.f32 %v2602
    %vm2609 = vweird.f32 %v2603
    %vm2610 = vmor %vm2608, %vm2609
    %v2611 = vsel %vm2610, %v2603, %v2607
    %v2612 = vand.u32 2147483647, %v2602
    %vm2613 = vcmp.eq.f32.partialorder %v2612, 8.507059e+37
    %v2614 = vand.u32 %v2602, 2147483648
    %v2615 = vor.u32 1.1754944e-38, %v2614
    %v2616 = vsel %vm2613, %v2615, %v2611
    %v2617 = vmul.f32 %v2583, %v2616
    %v2618 = vadd.f32 %v2617, 1.0
    %v2619 = vmul.f32 %v2618, 0.5
    %vm2620 = vcmask 64512
    %2621 = vst.msk [vmem:[#allocation11] sm:$0xff] %vm2620, %v2619
    %v2622 = vmul.f32 %v2586, %v2616
    %v2623 = vadd.f32 %v2622, 1.0
    %v2624 = vmul.f32 %v2623, 0.5
    %s2625 = scalar_lea.vmem [#allocation11], 8
    %2626 = vst.msk [vmem:[%s2625] sm:$0xff] %vm2620, %v2624
    // Predicated region
    $region34: #{tpu_custom_call.1} parent=1 // pred_check
      _
    $region35: #{tpu_custom_call.1} parent=1 // pred_check_branch
      %2628 = sbr.rel (0) target = $region37
    $region36: #{tpu_custom_call.1} parent=1 // pred_region
      %2630 = vsyncadd [#allocation4], 0
      %s2631 = sshll.u32 [#allocation11], 4
      %s2632 = int_to_ptr.vmem [resolvable:$true] %s2631
      %s2633 = sshll.u32 %s4, 4
      %s2634 = int_to_ptr.hbm [resolvable:$true] %s2633
      %2639 = dma.vmem_to_hbm [thread:$0]  %s2632, 256, %s2634, [#allocation4], 128, 128, 8
    $region37: #{tpu_custom_call.1} parent=1 // pred_fallthru
      _
    // Predicated region
    $region38: #{tpu_custom_call.1} parent=1 // pred_check
      _
    $region39: #{tpu_custom_call.1} parent=1 // pred_check_branch
      %2641 = sbr.rel (0) target = $region41
    $region40: #{tpu_custom_call.1} parent=1 // pred_region
      %2643 = dma.done [#allocation4], 256
    $region41: #{tpu_custom_call.1} parent=1 // pred_fallthru
      _
    %2644 = vsyncpa [#allocation3], 1
    %2645 = vsyncpa [#allocation10], 1
    %2646 = vsyncpa [#allocation4], 1
    %2647 = vsyncpa [#allocation5], 1
    %2648 = vsyncpa [#allocation7], 1

</llo_original>
